<compile_context>
chip_gen: v7x
topology: tpu7x:2x2x1
jax: 0.10.0
libtpu: 0.0.40
codegen_flags: <defaults>
</compile_context>

<pallas_src>
import functools

import jax
import jax.numpy as jnp
import numpy as np
from jax.experimental import pallas as pl
from jax.experimental.pallas import tpu as pltpu


# ---------------------------------------------------------------------------
# Fused encoder + decoder kernel (single pallas_call, no grid).
#
#   src_ref       : (T_src * B_pad, D)          time-major, batch-flattened
#   enc_w_ih_ref  : (D, 4*H_pad)
#   enc_w_hh_ref  : (H_pad, 4*H_pad)
#   enc_b_ref     : (1, 4*H_pad)
#   dec_w_ref     : (O_pad + H_pad, 4*H_pad)    stacked [w_ih ; w_hh]
#   dec_b_ref     : (1, 4*H_pad)
#   dec_w_out_ref : (H_pad, O_pad)
#   dec_b_out_ref : (1, O_pad)
#   out_ref       : (target_len, B_pad, O_pad)
# ---------------------------------------------------------------------------
def fused_encdec_kernel(src_ref, enc_w_ih_ref, enc_w_hh_ref, enc_b_ref,
                        dec_w_ref, dec_b_ref, dec_w_out_ref, dec_b_out_ref,
                        out_ref):
    t_out, b, o_dim = out_ref.shape
    h_dim = enc_w_hh_ref.shape[0]
    t_src = src_ref.shape[0] // b

    # Load weights / hoist bias broadcasts once (outside the unrolled loops).
    enc_w_hh = enc_w_hh_ref[...]
    enc_b = jnp.broadcast_to(enc_b_ref[...], (b, 4 * h_dim))
    dec_w = dec_w_ref[...]
    dec_b = jnp.broadcast_to(dec_b_ref[...], (b, 4 * h_dim))
    dec_w_out = dec_w_out_ref[...]
    dec_b_out = jnp.broadcast_to(dec_b_out_ref[...], (b, o_dim))

    # Hoisted encoder input projection: one matmul for all time steps.
    x_proj = jnp.dot(src_ref[...], enc_w_ih_ref[...],
                     preferred_element_type=jnp.float32)     # (T*B, 4H)

    def act(gates, c):
        # H_pad == 128, so every slice below is a full lane-aligned vreg.
        i = jax.nn.sigmoid(gates[:, 0 * h_dim:1 * h_dim])
        f = jax.nn.sigmoid(gates[:, 1 * h_dim:2 * h_dim])
        g = jnp.tanh(gates[:, 2 * h_dim:3 * h_dim])
        o_g = jax.nn.sigmoid(gates[:, 3 * h_dim:4 * h_dim])
        c_new = f * c + i * g
        h_new = o_g * jnp.tanh(c_new)
        return h_new, c_new

    h = jnp.zeros((b, h_dim), jnp.float32)
    c = jnp.zeros((b, h_dim), jnp.float32)

    # --- encoder recurrence (fully unrolled, static trip count) ---
    for t in range(t_src):
        gates = (x_proj[t * b:(t + 1) * b, :]
                 + jnp.dot(h, enc_w_hh, preferred_element_type=jnp.float32)
                 + enc_b)
        h, c = act(gates, c)

    # --- decoder autoregressive roll-out (fully unrolled) ---
    x = jnp.zeros((b, o_dim), jnp.float32)
    for t in range(t_out):
        xh = jnp.concatenate([x, h], axis=1)                 # (B, O_pad+H_pad)
        gates = jnp.dot(xh, dec_w, preferred_element_type=jnp.float32) + dec_b
        h, c = act(gates, c)
        x = (jnp.dot(h, dec_w_out, preferred_element_type=jnp.float32)
             + dec_b_out)
        out_ref[t] = x                                       # lane-dense store


# ---------------------------------------------------------------------------
# Wrapper: pad to TPU-friendly shapes, stack decoder weights, call the kernel.
# Zero padding is exact: padded hidden/output lanes stay identically zero.
# ---------------------------------------------------------------------------
_VMEM = pl.BlockSpec(memory_space=pltpu.MemorySpace.VMEM)


def _round_up(x, m):
    return ((x + m - 1) // m) * m


def _pad_to(a, axis, size):
    pad = [(0, 0)] * a.ndim
    pad[axis] = (0, size - a.shape[axis])
    return jnp.pad(a, pad)


def _pad_gate_cols(w, h_old, h_new):
    # (..., 4*h_old) -> (..., 4*h_new), padding each of the 4 gate blocks.
    lead = w.shape[:-1]
    w4 = w.reshape(lead + (4, h_old))
    w4 = _pad_to(w4, -1, h_new)
    return w4.reshape(lead + (4 * h_new,))


@functools.partial(jax.jit, static_argnames=("target_len",))
def encoder_decoder_forward(src, params, target_len):
    """src: (B, T_src, D) float32 -> outputs: (B, target_len, output_size)."""
    B, T_src, D = src.shape
    H = params["enc_w_hh"].shape[0]
    O = params["dec_w_out"].shape[1]

    B_pad = _round_up(max(B, 8), 8)
    H_pad = _round_up(max(H, 128), 128)
    O_pad = _round_up(max(O, 128), 128)

    # Encoder weights (gate-blocked column padding, zero row padding).
    enc_w_ih = _pad_gate_cols(params["enc_w_ih"], H, H_pad)                 # (D, 4Hp)
    enc_w_hh = _pad_gate_cols(_pad_to(params["enc_w_hh"], 0, H_pad), H, H_pad)
    enc_b = _pad_gate_cols(params["enc_b"], H, H_pad)

    # Decoder: stack [w_ih ; w_hh] so each step is a single matmul.
    dec_w_ih = _pad_gate_cols(_pad_to(params["dec_w_ih"], 0, O_pad), H, H_pad)
    dec_w_hh = _pad_gate_cols(_pad_to(params["dec_w_hh"], 0, H_pad), H, H_pad)
    dec_w = jnp.concatenate([dec_w_ih, dec_w_hh], axis=0)                   # (Op+Hp, 4Hp)
    dec_b = _pad_gate_cols(params["dec_b"], H, H_pad)
    dec_w_out = _pad_to(_pad_to(params["dec_w_out"], 0, H_pad), 1, O_pad)   # (Hp, Op)
    dec_b_out = _pad_to(params["dec_b_out"], 1, O_pad)                      # (1, Op)

    # Time-major, batch-padded, batch-flattened source: (T_src*B_pad, D).
    src_tm = _pad_to(jnp.transpose(src, (1, 0, 2)), 1, B_pad)
    src_flat = src_tm.reshape(T_src * B_pad, D)

    out_tm = pl.pallas_call(
        fused_encdec_kernel,
        out_shape=jax.ShapeDtypeStruct((target_len, B_pad, O_pad), jnp.float32),
        in_specs=[_VMEM] * 8,
        out_specs=_VMEM,
    )(src_flat, enc_w_ih, enc_w_hh, enc_b, dec_w, dec_b, dec_w_out, dec_b_out)

    # (target_len, B_pad, O_pad) -> (B, target_len, O)
    return jnp.transpose(out_tm[:, :B, :O], (1, 0, 2))

    # TODO(synk): teacher forcing (trg is not None) uses a host-side
    # np.random.rand() per step in the PyTorch module; only the trg=None
    # inference path is kernelized.


# ---------------------------------------------------------------------------
# Pure-JAX reference (same math, unpadded, no Pallas) for correctness.
# ---------------------------------------------------------------------------
def reference_forward(src, params, target_len):
    B = src.shape[0]
    H = params["enc_w_hh"].shape[0]

    def step(x, h, c, w_ih, w_hh, b):
        gates = x @ w_ih + h @ w_hh + b
        i = jax.nn.sigmoid(gates[:, 0 * H:1 * H])
        f = jax.nn.sigmoid(gates[:, 1 * H:2 * H])
        g = jnp.tanh(gates[:, 2 * H:3 * H])
        o = jax.nn.sigmoid(gates[:, 3 * H:4 * H])
        c = f * c + i * g
        h = o * jnp.tanh(c)
        return h, c

    h = jnp.zeros((B, H), jnp.float32)
    c = jnp.zeros((B, H), jnp.float32)
    for t in range(src.shape[1]):
        h, c = step(src[:, t, :], h, c,
                    params["enc_w_ih"], params["enc_w_hh"], params["enc_b"])

    x = jnp.zeros((B, params["dec_w_out"].shape[1]), jnp.float32)
    outs = []
    for _ in range(target_len):
        h, c = step(x, h, c,
                    params["dec_w_ih"], params["dec_w_hh"], params["dec_b"])
        x = h @ params["dec_w_out"] + params["dec_b_out"]
        outs.append(x)
    return jnp.stack(outs, axis=1)


# ---------------------------------------------------------------------------
# Parameter construction (deterministic, synthetic)
# ---------------------------------------------------------------------------
def make_params(key, input_size, hidden_size, output_size):
    ks = jax.random.split(key, 7)
    s = 0.1
    return {
        "enc_w_ih": s * jax.random.normal(ks[0], (input_size, 4 * hidden_size), jnp.float32),
        "enc_w_hh": s * jax.random.normal(ks[1], (hidden_size, 4 * hidden_size), jnp.float32),
        "enc_b":    s * jax.random.normal(ks[2], (1, 4 * hidden_size), jnp.float32),
        "dec_w_ih": s * jax.random.normal(ks[3], (output_size, 4 * hidden_size), jnp.float32),
        "dec_w_hh": s * jax.random.normal(ks[4], (hidden_size, 4 * hidden_size), jnp.float32),
        "dec_b":    s * jax.random.normal(ks[5], (1, 4 * hidden_size), jnp.float32),
        "dec_w_out": s * jax.random.normal(ks[6], (hidden_size, output_size), jnp.float32),
        "dec_b_out": jnp.zeros((1, output_size), jnp.float32),
    }


if __name__ == "__main__":
    B, T_SRC, D_IN = 2, 8, 16          # batch, source length, source feature dim
    HIDDEN, OUT = 32, 8                # LSTM hidden size, decoder output_size
    TARGET_LEN = 10                    # matches EncoderDecoderModel(target_len=10)

    key = jax.random.PRNGKey(0)
    k_src, k_par = jax.random.split(key)
    src = jax.random.normal(k_src, (B, T_SRC, D_IN), jnp.float32)
    params = make_params(k_par, D_IN, HIDDEN, OUT)

    out = encoder_decoder_forward(src, params, TARGET_LEN)
    out = jax.block_until_ready(out)

    ref = reference_forward(src, params, TARGET_LEN)
    assert out.shape == (B, TARGET_LEN, OUT), out.shape
    np.testing.assert_allclose(np.asarray(out), np.asarray(ref), rtol=2e-5, atol=2e-5)

    print("KERNEL_OK")
</pallas_src>

<mosaic_0001>
module attributes {stable_mosaic.version = 11 : i64} {
  func.func @fused_encdec_kernel(%arg0: memref<64x16xf32, #tpu.memory_space<vmem>>, %arg1: memref<16x512xf32, #tpu.memory_space<vmem>>, %arg2: memref<128x512xf32, #tpu.memory_space<vmem>>, %arg3: memref<1x512xf32, #tpu.memory_space<vmem>>, %arg4: memref<256x512xf32, #tpu.memory_space<vmem>>, %arg5: memref<1x512xf32, #tpu.memory_space<vmem>>, %arg6: memref<128x128xf32, #tpu.memory_space<vmem>>, %arg7: memref<1x128xf32, #tpu.memory_space<vmem>>, %arg8: memref<10x8x128xf32, #tpu.memory_space<vmem>>) attributes {dimension_semantics = [], scalar_prefetch = 0 : i64, scratch_operands = 0 : i64, tpu.core_type = #tpu.core_type<tc>} {
    %c0 = arith.constant 0 : index
    %c0_0 = arith.constant 0 : index
    %0 = vector.load %arg2[%c0, %c0_0] : memref<128x512xf32, #tpu.memory_space<vmem>>, vector<128x512xf32>
    %c0_1 = arith.constant 0 : index
    %c0_2 = arith.constant 0 : index
    %1 = vector.load %arg3[%c0_1, %c0_2] : memref<1x512xf32, #tpu.memory_space<vmem>>, vector<1x512xf32>
    %2 = vector.shape_cast %1 : vector<1x512xf32> to vector<1x512xf32>
    %3 = vector.broadcast %2 : vector<1x512xf32> to vector<8x512xf32>
    %c0_3 = arith.constant 0 : index
    %c0_4 = arith.constant 0 : index
    %4 = vector.load %arg4[%c0_3, %c0_4] : memref<256x512xf32, #tpu.memory_space<vmem>>, vector<256x512xf32>
    %c0_5 = arith.constant 0 : index
    %c0_6 = arith.constant 0 : index
    %5 = vector.load %arg5[%c0_5, %c0_6] : memref<1x512xf32, #tpu.memory_space<vmem>>, vector<1x512xf32>
    %6 = vector.shape_cast %5 : vector<1x512xf32> to vector<1x512xf32>
    %7 = vector.broadcast %6 : vector<1x512xf32> to vector<8x512xf32>
    %c0_7 = arith.constant 0 : index
    %c0_8 = arith.constant 0 : index
    %8 = vector.load %arg6[%c0_7, %c0_8] : memref<128x128xf32, #tpu.memory_space<vmem>>, vector<128x128xf32>
    %c0_9 = arith.constant 0 : index
    %c0_10 = arith.constant 0 : index
    %9 = vector.load %arg7[%c0_9, %c0_10] : memref<1x128xf32, #tpu.memory_space<vmem>>, vector<1x128xf32>
    %10 = vector.shape_cast %9 : vector<1x128xf32> to vector<1x128xf32>
    %11 = vector.broadcast %10 : vector<1x128xf32> to vector<8x128xf32>
    %c0_11 = arith.constant 0 : index
    %c0_12 = arith.constant 0 : index
    %12 = vector.load %arg0[%c0_11, %c0_12] : memref<64x16xf32, #tpu.memory_space<vmem>>, vector<64x16xf32>
    %c0_13 = arith.constant 0 : index
    %c0_14 = arith.constant 0 : index
    %13 = vector.load %arg1[%c0_13, %c0_14] : memref<16x512xf32, #tpu.memory_space<vmem>>, vector<16x512xf32>
    %cst = arith.constant dense<0.000000e+00> : vector<64x512xf32>
    %14 = tpu.matmul %12, %13, %cst {dimension_numbers = #tpu.dot_dimension_numbers<[1], [0], [0], [1], [0, 0, 1, 1], [], []>} : vector<64x16xf32>, vector<16x512xf32>, vector<64x512xf32> -> vector<64x512xf32>
    %cst_15 = arith.constant 0.000000e+00 : f32
    %15 = vector.broadcast %cst_15 : f32 to vector<8x128xf32>
    %cst_16 = arith.constant 0.000000e+00 : f32
    %16 = vector.broadcast %cst_16 : f32 to vector<8x128xf32>
    %17 = vector.extract_strided_slice %14 {offsets = [0, 0], sizes = [8, 512], strides = [1, 1]} : vector<64x512xf32> to vector<8x512xf32>
    %cst_17 = arith.constant dense<0.000000e+00> : vector<8x512xf32>
    %18 = tpu.matmul %15, %0, %cst_17 {dimension_numbers = #tpu.dot_dimension_numbers<[1], [0], [0], [1], [0, 0, 1, 1], [], []>} : vector<8x128xf32>, vector<128x512xf32>, vector<8x512xf32> -> vector<8x512xf32>
    %19 = arith.addf %17, %18 : vector<8x512xf32>
    %20 = arith.addf %19, %3 : vector<8x512xf32>
    %21 = vector.extract_strided_slice %20 {offsets = [0, 0], sizes = [8, 128], strides = [1, 1]} : vector<8x512xf32> to vector<8x128xf32>
    %22 = arith.negf %21 : vector<8x128xf32>
    %23 = math.exp %22 : vector<8x128xf32>
    %cst_18 = arith.constant 1.000000e+00 : f32
    %24 = vector.broadcast %cst_18 : f32 to vector<8x128xf32>
    %25 = arith.addf %24, %23 : vector<8x128xf32>
    %26 = arith.divf %24, %25 : vector<8x128xf32>
    %27 = vector.extract_strided_slice %20 {offsets = [0, 128], sizes = [8, 128], strides = [1, 1]} : vector<8x512xf32> to vector<8x128xf32>
    %28 = arith.negf %27 : vector<8x128xf32>
    %29 = math.exp %28 : vector<8x128xf32>
    %cst_19 = arith.constant 1.000000e+00 : f32
    %30 = vector.broadcast %cst_19 : f32 to vector<8x128xf32>
    %31 = arith.addf %30, %29 : vector<8x128xf32>
    %32 = arith.divf %30, %31 : vector<8x128xf32>
    %33 = vector.extract_strided_slice %20 {offsets = [0, 256], sizes = [8, 128], strides = [1, 1]} : vector<8x512xf32> to vector<8x128xf32>
    %34 = math.tanh %33 : vector<8x128xf32>
    %35 = vector.extract_strided_slice %20 {offsets = [0, 384], sizes = [8, 128], strides = [1, 1]} : vector<8x512xf32> to vector<8x128xf32>
    %36 = arith.negf %35 : vector<8x128xf32>
    %37 = math.exp %36 : vector<8x128xf32>
    %cst_20 = arith.constant 1.000000e+00 : f32
    %38 = vector.broadcast %cst_20 : f32 to vector<8x128xf32>
    %39 = arith.addf %38, %37 : vector<8x128xf32>
    %40 = arith.divf %38, %39 : vector<8x128xf32>
    %41 = arith.mulf %32, %16 : vector<8x128xf32>
    %42 = arith.mulf %26, %34 : vector<8x128xf32>
    %43 = arith.addf %41, %42 : vector<8x128xf32>
    %44 = math.tanh %43 : vector<8x128xf32>
    %45 = arith.mulf %40, %44 : vector<8x128xf32>
    %46 = vector.extract_strided_slice %14 {offsets = [8, 0], sizes = [8, 512], strides = [1, 1]} : vector<64x512xf32> to vector<8x512xf32>
    %cst_21 = arith.constant dense<0.000000e+00> : vector<8x512xf32>
    %47 = tpu.matmul %45, %0, %cst_21 {dimension_numbers = #tpu.dot_dimension_numbers<[1], [0], [0], [1], [0, 0, 1, 1], [], []>} : vector<8x128xf32>, vector<128x512xf32>, vector<8x512xf32> -> vector<8x512xf32>
    %48 = arith.addf %46, %47 : vector<8x512xf32>
    %49 = arith.addf %48, %3 : vector<8x512xf32>
    %50 = vector.extract_strided_slice %49 {offsets = [0, 0], sizes = [8, 128], strides = [1, 1]} : vector<8x512xf32> to vector<8x128xf32>
    %51 = arith.negf %50 : vector<8x128xf32>
    %52 = math.exp %51 : vector<8x128xf32>
    %cst_22 = arith.constant 1.000000e+00 : f32
    %53 = vector.broadcast %cst_22 : f32 to vector<8x128xf32>
    %54 = arith.addf %53, %52 : vector<8x128xf32>
    %55 = arith.divf %53, %54 : vector<8x128xf32>
    %56 = vector.extract_strided_slice %49 {offsets = [0, 128], sizes = [8, 128], strides = [1, 1]} : vector<8x512xf32> to vector<8x128xf32>
    %57 = arith.negf %56 : vector<8x128xf32>
    %58 = math.exp %57 : vector<8x128xf32>
    %cst_23 = arith.constant 1.000000e+00 : f32
    %59 = vector.broadcast %cst_23 : f32 to vector<8x128xf32>
    %60 = arith.addf %59, %58 : vector<8x128xf32>
    %61 = arith.divf %59, %60 : vector<8x128xf32>
    %62 = vector.extract_strided_slice %49 {offsets = [0, 256], sizes = [8, 128], strides = [1, 1]} : vector<8x512xf32> to vector<8x128xf32>
    %63 = math.tanh %62 : vector<8x128xf32>
    %64 = vector.extract_strided_slice %49 {offsets = [0, 384], sizes = [8, 128], strides = [1, 1]} : vector<8x512xf32> to vector<8x128xf32>
    %65 = arith.negf %64 : vector<8x128xf32>
    %66 = math.exp %65 : vector<8x128xf32>
    %cst_24 = arith.constant 1.000000e+00 : f32
    %67 = vector.broadcast %cst_24 : f32 to vector<8x128xf32>
    %68 = arith.addf %67, %66 : vector<8x128xf32>
    %69 = arith.divf %67, %68 : vector<8x128xf32>
    %70 = arith.mulf %61, %43 : vector<8x128xf32>
    %71 = arith.mulf %55, %63 : vector<8x128xf32>
    %72 = arith.addf %70, %71 : vector<8x128xf32>
    %73 = math.tanh %72 : vector<8x128xf32>
    %74 = arith.mulf %69, %73 : vector<8x128xf32>
    %75 = vector.extract_strided_slice %14 {offsets = [16, 0], sizes = [8, 512], strides = [1, 1]} : vector<64x512xf32> to vector<8x512xf32>
    %cst_25 = arith.constant dense<0.000000e+00> : vector<8x512xf32>
    %76 = tpu.matmul %74, %0, %cst_25 {dimension_numbers = #tpu.dot_dimension_numbers<[1], [0], [0], [1], [0, 0, 1, 1], [], []>} : vector<8x128xf32>, vector<128x512xf32>, vector<8x512xf32> -> vector<8x512xf32>
    %77 = arith.addf %75, %76 : vector<8x512xf32>
    %78 = arith.addf %77, %3 : vector<8x512xf32>
    %79 = vector.extract_strided_slice %78 {offsets = [0, 0], sizes = [8, 128], strides = [1, 1]} : vector<8x512xf32> to vector<8x128xf32>
    %80 = arith.negf %79 : vector<8x128xf32>
    %81 = math.exp %80 : vector<8x128xf32>
    %cst_26 = arith.constant 1.000000e+00 : f32
    %82 = vector.broadcast %cst_26 : f32 to vector<8x128xf32>
    %83 = arith.addf %82, %81 : vector<8x128xf32>
    %84 = arith.divf %82, %83 : vector<8x128xf32>
    %85 = vector.extract_strided_slice %78 {offsets = [0, 128], sizes = [8, 128], strides = [1, 1]} : vector<8x512xf32> to vector<8x128xf32>
    %86 = arith.negf %85 : vector<8x128xf32>
    %87 = math.exp %86 : vector<8x128xf32>
    %cst_27 = arith.constant 1.000000e+00 : f32
    %88 = vector.broadcast %cst_27 : f32 to vector<8x128xf32>
    %89 = arith.addf %88, %87 : vector<8x128xf32>
    %90 = arith.divf %88, %89 : vector<8x128xf32>
    %91 = vector.extract_strided_slice %78 {offsets = [0, 256], sizes = [8, 128], strides = [1, 1]} : vector<8x512xf32> to vector<8x128xf32>
    %92 = math.tanh %91 : vector<8x128xf32>
    %93 = vector.extract_strided_slice %78 {offsets = [0, 384], sizes = [8, 128], strides = [1, 1]} : vector<8x512xf32> to vector<8x128xf32>
    %94 = arith.negf %93 : vector<8x128xf32>
    %95 = math.exp %94 : vector<8x128xf32>
    %cst_28 = arith.constant 1.000000e+00 : f32
    %96 = vector.broadcast %cst_28 : f32 to vector<8x128xf32>
    %97 = arith.addf %96, %95 : vector<8x128xf32>
    %98 = arith.divf %96, %97 : vector<8x128xf32>
    %99 = arith.mulf %90, %72 : vector<8x128xf32>
    %100 = arith.mulf %84, %92 : vector<8x128xf32>
    %101 = arith.addf %99, %100 : vector<8x128xf32>
    %102 = math.tanh %101 : vector<8x128xf32>
    %103 = arith.mulf %98, %102 : vector<8x128xf32>
    %104 = vector.extract_strided_slice %14 {offsets = [24, 0], sizes = [8, 512], strides = [1, 1]} : vector<64x512xf32> to vector<8x512xf32>
    %cst_29 = arith.constant dense<0.000000e+00> : vector<8x512xf32>
    %105 = tpu.matmul %103, %0, %cst_29 {dimension_numbers = #tpu.dot_dimension_numbers<[1], [0], [0], [1], [0, 0, 1, 1], [], []>} : vector<8x128xf32>, vector<128x512xf32>, vector<8x512xf32> -> vector<8x512xf32>
    %106 = arith.addf %104, %105 : vector<8x512xf32>
    %107 = arith.addf %106, %3 : vector<8x512xf32>
    %108 = vector.extract_strided_slice %107 {offsets = [0, 0], sizes = [8, 128], strides = [1, 1]} : vector<8x512xf32> to vector<8x128xf32>
    %109 = arith.negf %108 : vector<8x128xf32>
    %110 = math.exp %109 : vector<8x128xf32>
    %cst_30 = arith.constant 1.000000e+00 : f32
    %111 = vector.broadcast %cst_30 : f32 to vector<8x128xf32>
    %112 = arith.addf %111, %110 : vector<8x128xf32>
    %113 = arith.divf %111, %112 : vector<8x128xf32>
    %114 = vector.extract_strided_slice %107 {offsets = [0, 128], sizes = [8, 128], strides = [1, 1]} : vector<8x512xf32> to vector<8x128xf32>
    %115 = arith.negf %114 : vector<8x128xf32>
    %116 = math.exp %115 : vector<8x128xf32>
    %cst_31 = arith.constant 1.000000e+00 : f32
    %117 = vector.broadcast %cst_31 : f32 to vector<8x128xf32>
    %118 = arith.addf %117, %116 : vector<8x128xf32>
    %119 = arith.divf %117, %118 : vector<8x128xf32>
    %120 = vector.extract_strided_slice %107 {offsets = [0, 256], sizes = [8, 128], strides = [1, 1]} : vector<8x512xf32> to vector<8x128xf32>
    %121 = math.tanh %120 : vector<8x128xf32>
    %122 = vector.extract_strided_slice %107 {offsets = [0, 384], sizes = [8, 128], strides = [1, 1]} : vector<8x512xf32> to vector<8x128xf32>
    %123 = arith.negf %122 : vector<8x128xf32>
    %124 = math.exp %123 : vector<8x128xf32>
    %cst_32 = arith.constant 1.000000e+00 : f32
    %125 = vector.broadcast %cst_32 : f32 to vector<8x128xf32>
    %126 = arith.addf %125, %124 : vector<8x128xf32>
    %127 = arith.divf %125, %126 : vector<8x128xf32>
    %128 = arith.mulf %119, %101 : vector<8x128xf32>
    %129 = arith.mulf %113, %121 : vector<8x128xf32>
    %130 = arith.addf %128, %129 : vector<8x128xf32>
    %131 = math.tanh %130 : vector<8x128xf32>
    %132 = arith.mulf %127, %131 : vector<8x128xf32>
    %133 = vector.extract_strided_slice %14 {offsets = [32, 0], sizes = [8, 512], strides = [1, 1]} : vector<64x512xf32> to vector<8x512xf32>
    %cst_33 = arith.constant dense<0.000000e+00> : vector<8x512xf32>
    %134 = tpu.matmul %132, %0, %cst_33 {dimension_numbers = #tpu.dot_dimension_numbers<[1], [0], [0], [1], [0, 0, 1, 1], [], []>} : vector<8x128xf32>, vector<128x512xf32>, vector<8x512xf32> -> vector<8x512xf32>
    %135 = arith.addf %133, %134 : vector<8x512xf32>
    %136 = arith.addf %135, %3 : vector<8x512xf32>
    %137 = vector.extract_strided_slice %136 {offsets = [0, 0], sizes = [8, 128], strides = [1, 1]} : vector<8x512xf32> to vector<8x128xf32>
    %138 = arith.negf %137 : vector<8x128xf32>
    %139 = math.exp %138 : vector<8x128xf32>
    %cst_34 = arith.constant 1.000000e+00 : f32
    %140 = vector.broadcast %cst_34 : f32 to vector<8x128xf32>
    %141 = arith.addf %140, %139 : vector<8x128xf32>
    %142 = arith.divf %140, %141 : vector<8x128xf32>
    %143 = vector.extract_strided_slice %136 {offsets = [0, 128], sizes = [8, 128], strides = [1, 1]} : vector<8x512xf32> to vector<8x128xf32>
    %144 = arith.negf %143 : vector<8x128xf32>
    %145 = math.exp %144 : vector<8x128xf32>
    %cst_35 = arith.constant 1.000000e+00 : f32
    %146 = vector.broadcast %cst_35 : f32 to vector<8x128xf32>
    %147 = arith.addf %146, %145 : vector<8x128xf32>
    %148 = arith.divf %146, %147 : vector<8x128xf32>
    %149 = vector.extract_strided_slice %136 {offsets = [0, 256], sizes = [8, 128], strides = [1, 1]} : vector<8x512xf32> to vector<8x128xf32>
    %150 = math.tanh %149 : vector<8x128xf32>
    %151 = vector.extract_strided_slice %136 {offsets = [0, 384], sizes = [8, 128], strides = [1, 1]} : vector<8x512xf32> to vector<8x128xf32>
    %152 = arith.negf %151 : vector<8x128xf32>
    %153 = math.exp %152 : vector<8x128xf32>
    %cst_36 = arith.constant 1.000000e+00 : f32
    %154 = vector.broadcast %cst_36 : f32 to vector<8x128xf32>
    %155 = arith.addf %154, %153 : vector<8x128xf32>
    %156 = arith.divf %154, %155 : vector<8x128xf32>
    %157 = arith.mulf %148, %130 : vector<8x128xf32>
    %158 = arith.mulf %142, %150 : vector<8x128xf32>
    %159 = arith.addf %157, %158 : vector<8x128xf32>
    %160 = math.tanh %159 : vector<8x128xf32>
    %161 = arith.mulf %156, %160 : vector<8x128xf32>
    %162 = vector.extract_strided_slice %14 {offsets = [40, 0], sizes = [8, 512], strides = [1, 1]} : vector<64x512xf32> to vector<8x512xf32>
    %cst_37 = arith.constant dense<0.000000e+00> : vector<8x512xf32>
    %163 = tpu.matmul %161, %0, %cst_37 {dimension_numbers = #tpu.dot_dimension_numbers<[1], [0], [0], [1], [0, 0, 1, 1], [], []>} : vector<8x128xf32>, vector<128x512xf32>, vector<8x512xf32> -> vector<8x512xf32>
    %164 = arith.addf %162, %163 : vector<8x512xf32>
    %165 = arith.addf %164, %3 : vector<8x512xf32>
    %166 = vector.extract_strided_slice %165 {offsets = [0, 0], sizes = [8, 128], strides = [1, 1]} : vector<8x512xf32> to vector<8x128xf32>
    %167 = arith.negf %166 : vector<8x128xf32>
    %168 = math.exp %167 : vector<8x128xf32>
    %cst_38 = arith.constant 1.000000e+00 : f32
    %169 = vector.broadcast %cst_38 : f32 to vector<8x128xf32>
    %170 = arith.addf %169, %168 : vector<8x128xf32>
    %171 = arith.divf %169, %170 : vector<8x128xf32>
    %172 = vector.extract_strided_slice %165 {offsets = [0, 128], sizes = [8, 128], strides = [1, 1]} : vector<8x512xf32> to vector<8x128xf32>
    %173 = arith.negf %172 : vector<8x128xf32>
    %174 = math.exp %173 : vector<8x128xf32>
    %cst_39 = arith.constant 1.000000e+00 : f32
    %175 = vector.broadcast %cst_39 : f32 to vector<8x128xf32>
    %176 = arith.addf %175, %174 : vector<8x128xf32>
    %177 = arith.divf %175, %176 : vector<8x128xf32>
    %178 = vector.extract_strided_slice %165 {offsets = [0, 256], sizes = [8, 128], strides = [1, 1]} : vector<8x512xf32> to vector<8x128xf32>
    %179 = math.tanh %178 : vector<8x128xf32>
    %180 = vector.extract_strided_slice %165 {offsets = [0, 384], sizes = [8, 128], strides = [1, 1]} : vector<8x512xf32> to vector<8x128xf32>
    %181 = arith.negf %180 : vector<8x128xf32>
    %182 = math.exp %181 : vector<8x128xf32>
    %cst_40 = arith.constant 1.000000e+00 : f32
    %183 = vector.broadcast %cst_40 : f32 to vector<8x128xf32>
    %184 = arith.addf %183, %182 : vector<8x128xf32>
    %185 = arith.divf %183, %184 : vector<8x128xf32>
    %186 = arith.mulf %177, %159 : vector<8x128xf32>
    %187 = arith.mulf %171, %179 : vector<8x128xf32>
    %188 = arith.addf %186, %187 : vector<8x128xf32>
    %189 = math.tanh %188 : vector<8x128xf32>
    %190 = arith.mulf %185, %189 : vector<8x128xf32>
    %191 = vector.extract_strided_slice %14 {offsets = [48, 0], sizes = [8, 512], strides = [1, 1]} : vector<64x512xf32> to vector<8x512xf32>
    %cst_41 = arith.constant dense<0.000000e+00> : vector<8x512xf32>
    %192 = tpu.matmul %190, %0, %cst_41 {dimension_numbers = #tpu.dot_dimension_numbers<[1], [0], [0], [1], [0, 0, 1, 1], [], []>} : vector<8x128xf32>, vector<128x512xf32>, vector<8x512xf32> -> vector<8x512xf32>
    %193 = arith.addf %191, %192 : vector<8x512xf32>
    %194 = arith.addf %193, %3 : vector<8x512xf32>
    %195 = vector.extract_strided_slice %194 {offsets = [0, 0], sizes = [8, 128], strides = [1, 1]} : vector<8x512xf32> to vector<8x128xf32>
    %196 = arith.negf %195 : vector<8x128xf32>
    %197 = math.exp %196 : vector<8x128xf32>
    %cst_42 = arith.constant 1.000000e+00 : f32
    %198 = vector.broadcast %cst_42 : f32 to vector<8x128xf32>
    %199 = arith.addf %198, %197 : vector<8x128xf32>
    %200 = arith.divf %198, %199 : vector<8x128xf32>
    %201 = vector.extract_strided_slice %194 {offsets = [0, 128], sizes = [8, 128], strides = [1, 1]} : vector<8x512xf32> to vector<8x128xf32>
    %202 = arith.negf %201 : vector<8x128xf32>
    %203 = math.exp %202 : vector<8x128xf32>
    %cst_43 = arith.constant 1.000000e+00 : f32
    %204 = vector.broadcast %cst_43 : f32 to vector<8x128xf32>
    %205 = arith.addf %204, %203 : vector<8x128xf32>
    %206 = arith.divf %204, %205 : vector<8x128xf32>
    %207 = vector.extract_strided_slice %194 {offsets = [0, 256], sizes = [8, 128], strides = [1, 1]} : vector<8x512xf32> to vector<8x128xf32>
    %208 = math.tanh %207 : vector<8x128xf32>
    %209 = vector.extract_strided_slice %194 {offsets = [0, 384], sizes = [8, 128], strides = [1, 1]} : vector<8x512xf32> to vector<8x128xf32>
    %210 = arith.negf %209 : vector<8x128xf32>
    %211 = math.exp %210 : vector<8x128xf32>
    %cst_44 = arith.constant 1.000000e+00 : f32
    %212 = vector.broadcast %cst_44 : f32 to vector<8x128xf32>
    %213 = arith.addf %212, %211 : vector<8x128xf32>
    %214 = arith.divf %212, %213 : vector<8x128xf32>
    %215 = arith.mulf %206, %188 : vector<8x128xf32>
    %216 = arith.mulf %200, %208 : vector<8x128xf32>
    %217 = arith.addf %215, %216 : vector<8x128xf32>
    %218 = math.tanh %217 : vector<8x128xf32>
    %219 = arith.mulf %214, %218 : vector<8x128xf32>
    %220 = vector.extract_strided_slice %14 {offsets = [56, 0], sizes = [8, 512], strides = [1, 1]} : vector<64x512xf32> to vector<8x512xf32>
    %cst_45 = arith.constant dense<0.000000e+00> : vector<8x512xf32>
    %221 = tpu.matmul %219, %0, %cst_45 {dimension_numbers = #tpu.dot_dimension_numbers<[1], [0], [0], [1], [0, 0, 1, 1], [], []>} : vector<8x128xf32>, vector<128x512xf32>, vector<8x512xf32> -> vector<8x512xf32>
    %222 = arith.addf %220, %221 : vector<8x512xf32>
    %223 = arith.addf %222, %3 : vector<8x512xf32>
    %224 = vector.extract_strided_slice %223 {offsets = [0, 0], sizes = [8, 128], strides = [1, 1]} : vector<8x512xf32> to vector<8x128xf32>
    %225 = arith.negf %224 : vector<8x128xf32>
    %226 = math.exp %225 : vector<8x128xf32>
    %cst_46 = arith.constant 1.000000e+00 : f32
    %227 = vector.broadcast %cst_46 : f32 to vector<8x128xf32>
    %228 = arith.addf %227, %226 : vector<8x128xf32>
    %229 = arith.divf %227, %228 : vector<8x128xf32>
    %230 = vector.extract_strided_slice %223 {offsets = [0, 128], sizes = [8, 128], strides = [1, 1]} : vector<8x512xf32> to vector<8x128xf32>
    %231 = arith.negf %230 : vector<8x128xf32>
    %232 = math.exp %231 : vector<8x128xf32>
    %cst_47 = arith.constant 1.000000e+00 : f32
    %233 = vector.broadcast %cst_47 : f32 to vector<8x128xf32>
    %234 = arith.addf %233, %232 : vector<8x128xf32>
    %235 = arith.divf %233, %234 : vector<8x128xf32>
    %236 = vector.extract_strided_slice %223 {offsets = [0, 256], sizes = [8, 128], strides = [1, 1]} : vector<8x512xf32> to vector<8x128xf32>
    %237 = math.tanh %236 : vector<8x128xf32>
    %238 = vector.extract_strided_slice %223 {offsets = [0, 384], sizes = [8, 128], strides = [1, 1]} : vector<8x512xf32> to vector<8x128xf32>
    %239 = arith.negf %238 : vector<8x128xf32>
    %240 = math.exp %239 : vector<8x128xf32>
    %cst_48 = arith.constant 1.000000e+00 : f32
    %241 = vector.broadcast %cst_48 : f32 to vector<8x128xf32>
    %242 = arith.addf %241, %240 : vector<8x128xf32>
    %243 = arith.divf %241, %242 : vector<8x128xf32>
    %244 = arith.mulf %235, %217 : vector<8x128xf32>
    %245 = arith.mulf %229, %237 : vector<8x128xf32>
    %246 = arith.addf %244, %245 : vector<8x128xf32>
    %247 = math.tanh %246 : vector<8x128xf32>
    %248 = arith.mulf %243, %247 : vector<8x128xf32>
    %cst_49 = arith.constant 0.000000e+00 : f32
    %249 = vector.broadcast %cst_49 : f32 to vector<8x128xf32>
    %250 = tpu.concatenate %249, %248 in 1 : vector<8x128xf32>, vector<8x128xf32> -> vector<8x256xf32>
    %cst_50 = arith.constant dense<0.000000e+00> : vector<8x512xf32>
    %251 = tpu.matmul %250, %4, %cst_50 {dimension_numbers = #tpu.dot_dimension_numbers<[1], [0], [0], [1], [0, 0, 1, 1], [], []>} : vector<8x256xf32>, vector<256x512xf32>, vector<8x512xf32> -> vector<8x512xf32>
    %252 = arith.addf %251, %7 : vector<8x512xf32>
    %253 = vector.extract_strided_slice %252 {offsets = [0, 0], sizes = [8, 128], strides = [1, 1]} : vector<8x512xf32> to vector<8x128xf32>
    %254 = arith.negf %253 : vector<8x128xf32>
    %255 = math.exp %254 : vector<8x128xf32>
    %cst_51 = arith.constant 1.000000e+00 : f32
    %256 = vector.broadcast %cst_51 : f32 to vector<8x128xf32>
    %257 = arith.addf %256, %255 : vector<8x128xf32>
    %258 = arith.divf %256, %257 : vector<8x128xf32>
    %259 = vector.extract_strided_slice %252 {offsets = [0, 128], sizes = [8, 128], strides = [1, 1]} : vector<8x512xf32> to vector<8x128xf32>
    %260 = arith.negf %259 : vector<8x128xf32>
    %261 = math.exp %260 : vector<8x128xf32>
    %cst_52 = arith.constant 1.000000e+00 : f32
    %262 = vector.broadcast %cst_52 : f32 to vector<8x128xf32>
    %263 = arith.addf %262, %261 : vector<8x128xf32>
    %264 = arith.divf %262, %263 : vector<8x128xf32>
    %265 = vector.extract_strided_slice %252 {offsets = [0, 256], sizes = [8, 128], strides = [1, 1]} : vector<8x512xf32> to vector<8x128xf32>
    %266 = math.tanh %265 : vector<8x128xf32>
    %267 = vector.extract_strided_slice %252 {offsets = [0, 384], sizes = [8, 128], strides = [1, 1]} : vector<8x512xf32> to vector<8x128xf32>
    %268 = arith.negf %267 : vector<8x128xf32>
    %269 = math.exp %268 : vector<8x128xf32>
    %cst_53 = arith.constant 1.000000e+00 : f32
    %270 = vector.broadcast %cst_53 : f32 to vector<8x128xf32>
    %271 = arith.addf %270, %269 : vector<8x128xf32>
    %272 = arith.divf %270, %271 : vector<8x128xf32>
    %273 = arith.mulf %264, %246 : vector<8x128xf32>
    %274 = arith.mulf %258, %266 : vector<8x128xf32>
    %275 = arith.addf %273, %274 : vector<8x128xf32>
    %276 = math.tanh %275 : vector<8x128xf32>
    %277 = arith.mulf %272, %276 : vector<8x128xf32>
    %cst_54 = arith.constant dense<0.000000e+00> : vector<8x128xf32>
    %278 = tpu.matmul %277, %8, %cst_54 {dimension_numbers = #tpu.dot_dimension_numbers<[1], [0], [0], [1], [0, 0, 1, 1], [], []>} : vector<8x128xf32>, vector<128x128xf32>, vector<8x128xf32> -> vector<8x128xf32>
    %279 = arith.addf %278, %11 : vector<8x128xf32>
    %c0_55 = arith.constant 0 : index
    %c0_56 = arith.constant 0 : index
    %c0_57 = arith.constant 0 : index
    %280 = vector.load %arg8[%c0_55, %c0_56, %c0_57] : memref<10x8x128xf32, #tpu.memory_space<vmem>>, vector<1x8x128xf32>
    %281 = vector.shape_cast %280 : vector<1x8x128xf32> to vector<8x128xf32>
    %282 = vector.shape_cast %279 : vector<8x128xf32> to vector<1x8x128xf32>
    tpu.vector_store %arg8[%c0_55, %c0_56, %c0_57], %282 {strides = array<i32>} : memref<10x8x128xf32, #tpu.memory_space<vmem>>, vector<1x8x128xf32>,
    %283 = tpu.concatenate %279, %277 in 1 : vector<8x128xf32>, vector<8x128xf32> -> vector<8x256xf32>
    %cst_58 = arith.constant dense<0.000000e+00> : vector<8x512xf32>
    %284 = tpu.matmul %283, %4, %cst_58 {dimension_numbers = #tpu.dot_dimension_numbers<[1], [0], [0], [1], [0, 0, 1, 1], [], []>} : vector<8x256xf32>, vector<256x512xf32>, vector<8x512xf32> -> vector<8x512xf32>
    %285 = arith.addf %284, %7 : vector<8x512xf32>
    %286 = vector.extract_strided_slice %285 {offsets = [0, 0], sizes = [8, 128], strides = [1, 1]} : vector<8x512xf32> to vector<8x128xf32>
    %287 = arith.negf %286 : vector<8x128xf32>
    %288 = math.exp %287 : vector<8x128xf32>
    %cst_59 = arith.constant 1.000000e+00 : f32
    %289 = vector.broadcast %cst_59 : f32 to vector<8x128xf32>
    %290 = arith.addf %289, %288 : vector<8x128xf32>
    %291 = arith.divf %289, %290 : vector<8x128xf32>
    %292 = vector.extract_strided_slice %285 {offsets = [0, 128], sizes = [8, 128], strides = [1, 1]} : vector<8x512xf32> to vector<8x128xf32>
    %293 = arith.negf %292 : vector<8x128xf32>
    %294 = math.exp %293 : vector<8x128xf32>
    %cst_60 = arith.constant 1.000000e+00 : f32
    %295 = vector.broadcast %cst_60 : f32 to vector<8x128xf32>
    %296 = arith.addf %295, %294 : vector<8x128xf32>
    %297 = arith.divf %295, %296 : vector<8x128xf32>
    %298 = vector.extract_strided_slice %285 {offsets = [0, 256], sizes = [8, 128], strides = [1, 1]} : vector<8x512xf32> to vector<8x128xf32>
    %299 = math.tanh %298 : vector<8x128xf32>
    %300 = vector.extract_strided_slice %285 {offsets = [0, 384], sizes = [8, 128], strides = [1, 1]} : vector<8x512xf32> to vector<8x128xf32>
    %301 = arith.negf %300 : vector<8x128xf32>
    %302 = math.exp %301 : vector<8x128xf32>
    %cst_61 = arith.constant 1.000000e+00 : f32
    %303 = vector.broadcast %cst_61 : f32 to vector<8x128xf32>
    %304 = arith.addf %303, %302 : vector<8x128xf32>
    %305 = arith.divf %303, %304 : vector<8x128xf32>
    %306 = arith.mulf %297, %275 : vector<8x128xf32>
    %307 = arith.mulf %291, %299 : vector<8x128xf32>
    %308 = arith.addf %306, %307 : vector<8x128xf32>
    %309 = math.tanh %308 : vector<8x128xf32>
    %310 = arith.mulf %305, %309 : vector<8x128xf32>
    %cst_62 = arith.constant dense<0.000000e+00> : vector<8x128xf32>
    %311 = tpu.matmul %310, %8, %cst_62 {dimension_numbers = #tpu.dot_dimension_numbers<[1], [0], [0], [1], [0, 0, 1, 1], [], []>} : vector<8x128xf32>, vector<128x128xf32>, vector<8x128xf32> -> vector<8x128xf32>
    %312 = arith.addf %311, %11 : vector<8x128xf32>
    %c1 = arith.constant 1 : index
    %c0_63 = arith.constant 0 : index
    %c0_64 = arith.constant 0 : index
    %313 = vector.load %arg8[%c1, %c0_63, %c0_64] : memref<10x8x128xf32, #tpu.memory_space<vmem>>, vector<1x8x128xf32>
    %314 = vector.shape_cast %313 : vector<1x8x128xf32> to vector<8x128xf32>
    %315 = vector.shape_cast %312 : vector<8x128xf32> to vector<1x8x128xf32>
    tpu.vector_store %arg8[%c1, %c0_63, %c0_64], %315 {strides = array<i32>} : memref<10x8x128xf32, #tpu.memory_space<vmem>>, vector<1x8x128xf32>,
    %316 = tpu.concatenate %312, %310 in 1 : vector<8x128xf32>, vector<8x128xf32> -> vector<8x256xf32>
    %cst_65 = arith.constant dense<0.000000e+00> : vector<8x512xf32>
    %317 = tpu.matmul %316, %4, %cst_65 {dimension_numbers = #tpu.dot_dimension_numbers<[1], [0], [0], [1], [0, 0, 1, 1], [], []>} : vector<8x256xf32>, vector<256x512xf32>, vector<8x512xf32> -> vector<8x512xf32>
    %318 = arith.addf %317, %7 : vector<8x512xf32>
    %319 = vector.extract_strided_slice %318 {offsets = [0, 0], sizes = [8, 128], strides = [1, 1]} : vector<8x512xf32> to vector<8x128xf32>
    %320 = arith.negf %319 : vector<8x128xf32>
    %321 = math.exp %320 : vector<8x128xf32>
    %cst_66 = arith.constant 1.000000e+00 : f32
    %322 = vector.broadcast %cst_66 : f32 to vector<8x128xf32>
    %323 = arith.addf %322, %321 : vector<8x128xf32>
    %324 = arith.divf %322, %323 : vector<8x128xf32>
    %325 = vector.extract_strided_slice %318 {offsets = [0, 128], sizes = [8, 128], strides = [1, 1]} : vector<8x512xf32> to vector<8x128xf32>
    %326 = arith.negf %325 : vector<8x128xf32>
    %327 = math.exp %326 : vector<8x128xf32>
    %cst_67 = arith.constant 1.000000e+00 : f32
    %328 = vector.broadcast %cst_67 : f32 to vector<8x128xf32>
    %329 = arith.addf %328, %327 : vector<8x128xf32>
    %330 = arith.divf %328, %329 : vector<8x128xf32>
    %331 = vector.extract_strided_slice %318 {offsets = [0, 256], sizes = [8, 128], strides = [1, 1]} : vector<8x512xf32> to vector<8x128xf32>
    %332 = math.tanh %331 : vector<8x128xf32>
    %333 = vector.extract_strided_slice %318 {offsets = [0, 384], sizes = [8, 128], strides = [1, 1]} : vector<8x512xf32> to vector<8x128xf32>
    %334 = arith.negf %333 : vector<8x128xf32>
    %335 = math.exp %334 : vector<8x128xf32>
    %cst_68 = arith.constant 1.000000e+00 : f32
    %336 = vector.broadcast %cst_68 : f32 to vector<8x128xf32>
    %337 = arith.addf %336, %335 : vector<8x128xf32>
    %338 = arith.divf %336, %337 : vector<8x128xf32>
    %339 = arith.mulf %330, %308 : vector<8x128xf32>
    %340 = arith.mulf %324, %332 : vector<8x128xf32>
    %341 = arith.addf %339, %340 : vector<8x128xf32>
    %342 = math.tanh %341 : vector<8x128xf32>
    %343 = arith.mulf %338, %342 : vector<8x128xf32>
    %cst_69 = arith.constant dense<0.000000e+00> : vector<8x128xf32>
    %344 = tpu.matmul %343, %8, %cst_69 {dimension_numbers = #tpu.dot_dimension_numbers<[1], [0], [0], [1], [0, 0, 1, 1], [], []>} : vector<8x128xf32>, vector<128x128xf32>, vector<8x128xf32> -> vector<8x128xf32>
    %345 = arith.addf %344, %11 : vector<8x128xf32>
    %c2 = arith.constant 2 : index
    %c0_70 = arith.constant 0 : index
    %c0_71 = arith.constant 0 : index
    %346 = vector.load %arg8[%c2, %c0_70, %c0_71] : memref<10x8x128xf32, #tpu.memory_space<vmem>>, vector<1x8x128xf32>
    %347 = vector.shape_cast %346 : vector<1x8x128xf32> to vector<8x128xf32>
    %348 = vector.shape_cast %345 : vector<8x128xf32> to vector<1x8x128xf32>
    tpu.vector_store %arg8[%c2, %c0_70, %c0_71], %348 {strides = array<i32>} : memref<10x8x128xf32, #tpu.memory_space<vmem>>, vector<1x8x128xf32>,
    %349 = tpu.concatenate %345, %343 in 1 : vector<8x128xf32>, vector<8x128xf32> -> vector<8x256xf32>
    %cst_72 = arith.constant dense<0.000000e+00> : vector<8x512xf32>
    %350 = tpu.matmul %349, %4, %cst_72 {dimension_numbers = #tpu.dot_dimension_numbers<[1], [0], [0], [1], [0, 0, 1, 1], [], []>} : vector<8x256xf32>, vector<256x512xf32>, vector<8x512xf32> -> vector<8x512xf32>
    %351 = arith.addf %350, %7 : vector<8x512xf32>
    %352 = vector.extract_strided_slice %351 {offsets = [0, 0], sizes = [8, 128], strides = [1, 1]} : vector<8x512xf32> to vector<8x128xf32>
    %353 = arith.negf %352 : vector<8x128xf32>
    %354 = math.exp %353 : vector<8x128xf32>
    %cst_73 = arith.constant 1.000000e+00 : f32
    %355 = vector.broadcast %cst_73 : f32 to vector<8x128xf32>
    %356 = arith.addf %355, %354 : vector<8x128xf32>
    %357 = arith.divf %355, %356 : vector<8x128xf32>
    %358 = vector.extract_strided_slice %351 {offsets = [0, 128], sizes = [8, 128], strides = [1, 1]} : vector<8x512xf32> to vector<8x128xf32>
    %359 = arith.negf %358 : vector<8x128xf32>
    %360 = math.exp %359 : vector<8x128xf32>
    %cst_74 = arith.constant 1.000000e+00 : f32
    %361 = vector.broadcast %cst_74 : f32 to vector<8x128xf32>
    %362 = arith.addf %361, %360 : vector<8x128xf32>
    %363 = arith.divf %361, %362 : vector<8x128xf32>
    %364 = vector.extract_strided_slice %351 {offsets = [0, 256], sizes = [8, 128], strides = [1, 1]} : vector<8x512xf32> to vector<8x128xf32>
    %365 = math.tanh %364 : vector<8x128xf32>
    %366 = vector.extract_strided_slice %351 {offsets = [0, 384], sizes = [8, 128], strides = [1, 1]} : vector<8x512xf32> to vector<8x128xf32>
    %367 = arith.negf %366 : vector<8x128xf32>
    %368 = math.exp %367 : vector<8x128xf32>
    %cst_75 = arith.constant 1.000000e+00 : f32
    %369 = vector.broadcast %cst_75 : f32 to vector<8x128xf32>
    %370 = arith.addf %369, %368 : vector<8x128xf32>
    %371 = arith.divf %369, %370 : vector<8x128xf32>
    %372 = arith.mulf %363, %341 : vector<8x128xf32>
    %373 = arith.mulf %357, %365 : vector<8x128xf32>
    %374 = arith.addf %372, %373 : vector<8x128xf32>
    %375 = math.tanh %374 : vector<8x128xf32>
    %376 = arith.mulf %371, %375 : vector<8x128xf32>
    %cst_76 = arith.constant dense<0.000000e+00> : vector<8x128xf32>
    %377 = tpu.matmul %376, %8, %cst_76 {dimension_numbers = #tpu.dot_dimension_numbers<[1], [0], [0], [1], [0, 0, 1, 1], [], []>} : vector<8x128xf32>, vector<128x128xf32>, vector<8x128xf32> -> vector<8x128xf32>
    %378 = arith.addf %377, %11 : vector<8x128xf32>
    %c3 = arith.constant 3 : index
    %c0_77 = arith.constant 0 : index
    %c0_78 = arith.constant 0 : index
    %379 = vector.load %arg8[%c3, %c0_77, %c0_78] : memref<10x8x128xf32, #tpu.memory_space<vmem>>, vector<1x8x128xf32>
    %380 = vector.shape_cast %379 : vector<1x8x128xf32> to vector<8x128xf32>
    %381 = vector.shape_cast %378 : vector<8x128xf32> to vector<1x8x128xf32>
    tpu.vector_store %arg8[%c3, %c0_77, %c0_78], %381 {strides = array<i32>} : memref<10x8x128xf32, #tpu.memory_space<vmem>>, vector<1x8x128xf32>,
    %382 = tpu.concatenate %378, %376 in 1 : vector<8x128xf32>, vector<8x128xf32> -> vector<8x256xf32>
    %cst_79 = arith.constant dense<0.000000e+00> : vector<8x512xf32>
    %383 = tpu.matmul %382, %4, %cst_79 {dimension_numbers = #tpu.dot_dimension_numbers<[1], [0], [0], [1], [0, 0, 1, 1], [], []>} : vector<8x256xf32>, vector<256x512xf32>, vector<8x512xf32> -> vector<8x512xf32>
    %384 = arith.addf %383, %7 : vector<8x512xf32>
    %385 = vector.extract_strided_slice %384 {offsets = [0, 0], sizes = [8, 128], strides = [1, 1]} : vector<8x512xf32> to vector<8x128xf32>
    %386 = arith.negf %385 : vector<8x128xf32>
    %387 = math.exp %386 : vector<8x128xf32>
    %cst_80 = arith.constant 1.000000e+00 : f32
    %388 = vector.broadcast %cst_80 : f32 to vector<8x128xf32>
    %389 = arith.addf %388, %387 : vector<8x128xf32>
    %390 = arith.divf %388, %389 : vector<8x128xf32>
    %391 = vector.extract_strided_slice %384 {offsets = [0, 128], sizes = [8, 128], strides = [1, 1]} : vector<8x512xf32> to vector<8x128xf32>
    %392 = arith.negf %391 : vector<8x128xf32>
    %393 = math.exp %392 : vector<8x128xf32>
    %cst_81 = arith.constant 1.000000e+00 : f32
    %394 = vector.broadcast %cst_81 : f32 to vector<8x128xf32>
    %395 = arith.addf %394, %393 : vector<8x128xf32>
    %396 = arith.divf %394, %395 : vector<8x128xf32>
    %397 = vector.extract_strided_slice %384 {offsets = [0, 256], sizes = [8, 128], strides = [1, 1]} : vector<8x512xf32> to vector<8x128xf32>
    %398 = math.tanh %397 : vector<8x128xf32>
    %399 = vector.extract_strided_slice %384 {offsets = [0, 384], sizes = [8, 128], strides = [1, 1]} : vector<8x512xf32> to vector<8x128xf32>
    %400 = arith.negf %399 : vector<8x128xf32>
    %401 = math.exp %400 : vector<8x128xf32>
    %cst_82 = arith.constant 1.000000e+00 : f32
    %402 = vector.broadcast %cst_82 : f32 to vector<8x128xf32>
    %403 = arith.addf %402, %401 : vector<8x128xf32>
    %404 = arith.divf %402, %403 : vector<8x128xf32>
    %405 = arith.mulf %396, %374 : vector<8x128xf32>
    %406 = arith.mulf %390, %398 : vector<8x128xf32>
    %407 = arith.addf %405, %406 : vector<8x128xf32>
    %408 = math.tanh %407 : vector<8x128xf32>
    %409 = arith.mulf %404, %408 : vector<8x128xf32>
    %cst_83 = arith.constant dense<0.000000e+00> : vector<8x128xf32>
    %410 = tpu.matmul %409, %8, %cst_83 {dimension_numbers = #tpu.dot_dimension_numbers<[1], [0], [0], [1], [0, 0, 1, 1], [], []>} : vector<8x128xf32>, vector<128x128xf32>, vector<8x128xf32> -> vector<8x128xf32>
    %411 = arith.addf %410, %11 : vector<8x128xf32>
    %c4 = arith.constant 4 : index
    %c0_84 = arith.constant 0 : index
    %c0_85 = arith.constant 0 : index
    %412 = vector.load %arg8[%c4, %c0_84, %c0_85] : memref<10x8x128xf32, #tpu.memory_space<vmem>>, vector<1x8x128xf32>
    %413 = vector.shape_cast %412 : vector<1x8x128xf32> to vector<8x128xf32>
    %414 = vector.shape_cast %411 : vector<8x128xf32> to vector<1x8x128xf32>
    tpu.vector_store %arg8[%c4, %c0_84, %c0_85], %414 {strides = array<i32>} : memref<10x8x128xf32, #tpu.memory_space<vmem>>, vector<1x8x128xf32>,
    %415 = tpu.concatenate %411, %409 in 1 : vector<8x128xf32>, vector<8x128xf32> -> vector<8x256xf32>
    %cst_86 = arith.constant dense<0.000000e+00> : vector<8x512xf32>
    %416 = tpu.matmul %415, %4, %cst_86 {dimension_numbers = #tpu.dot_dimension_numbers<[1], [0], [0], [1], [0, 0, 1, 1], [], []>} : vector<8x256xf32>, vector<256x512xf32>, vector<8x512xf32> -> vector<8x512xf32>
    %417 = arith.addf %416, %7 : vector<8x512xf32>
    %418 = vector.extract_strided_slice %417 {offsets = [0, 0], sizes = [8, 128], strides = [1, 1]} : vector<8x512xf32> to vector<8x128xf32>
    %419 = arith.negf %418 : vector<8x128xf32>
    %420 = math.exp %419 : vector<8x128xf32>
    %cst_87 = arith.constant 1.000000e+00 : f32
    %421 = vector.broadcast %cst_87 : f32 to vector<8x128xf32>
    %422 = arith.addf %421, %420 : vector<8x128xf32>
    %423 = arith.divf %421, %422 : vector<8x128xf32>
    %424 = vector.extract_strided_slice %417 {offsets = [0, 128], sizes = [8, 128], strides = [1, 1]} : vector<8x512xf32> to vector<8x128xf32>
    %425 = arith.negf %424 : vector<8x128xf32>
    %426 = math.exp %425 : vector<8x128xf32>
    %cst_88 = arith.constant 1.000000e+00 : f32
    %427 = vector.broadcast %cst_88 : f32 to vector<8x128xf32>
    %428 = arith.addf %427, %426 : vector<8x128xf32>
    %429 = arith.divf %427, %428 : vector<8x128xf32>
    %430 = vector.extract_strided_slice %417 {offsets = [0, 256], sizes = [8, 128], strides = [1, 1]} : vector<8x512xf32> to vector<8x128xf32>
    %431 = math.tanh %430 : vector<8x128xf32>
    %432 = vector.extract_strided_slice %417 {offsets = [0, 384], sizes = [8, 128], strides = [1, 1]} : vector<8x512xf32> to vector<8x128xf32>
    %433 = arith.negf %432 : vector<8x128xf32>
    %434 = math.exp %433 : vector<8x128xf32>
    %cst_89 = arith.constant 1.000000e+00 : f32
    %435 = vector.broadcast %cst_89 : f32 to vector<8x128xf32>
    %436 = arith.addf %435, %434 : vector<8x128xf32>
    %437 = arith.divf %435, %436 : vector<8x128xf32>
    %438 = arith.mulf %429, %407 : vector<8x128xf32>
    %439 = arith.mulf %423, %431 : vector<8x128xf32>
    %440 = arith.addf %438, %439 : vector<8x128xf32>
    %441 = math.tanh %440 : vector<8x128xf32>
    %442 = arith.mulf %437, %441 : vector<8x128xf32>
    %cst_90 = arith.constant dense<0.000000e+00> : vector<8x128xf32>
    %443 = tpu.matmul %442, %8, %cst_90 {dimension_numbers = #tpu.dot_dimension_numbers<[1], [0], [0], [1], [0, 0, 1, 1], [], []>} : vector<8x128xf32>, vector<128x128xf32>, vector<8x128xf32> -> vector<8x128xf32>
    %444 = arith.addf %443, %11 : vector<8x128xf32>
    %c5 = arith.constant 5 : index
    %c0_91 = arith.constant 0 : index
    %c0_92 = arith.constant 0 : index
    %445 = vector.load %arg8[%c5, %c0_91, %c0_92] : memref<10x8x128xf32, #tpu.memory_space<vmem>>, vector<1x8x128xf32>
    %446 = vector.shape_cast %445 : vector<1x8x128xf32> to vector<8x128xf32>
    %447 = vector.shape_cast %444 : vector<8x128xf32> to vector<1x8x128xf32>
    tpu.vector_store %arg8[%c5, %c0_91, %c0_92], %447 {strides = array<i32>} : memref<10x8x128xf32, #tpu.memory_space<vmem>>, vector<1x8x128xf32>,
    %448 = tpu.concatenate %444, %442 in 1 : vector<8x128xf32>, vector<8x128xf32> -> vector<8x256xf32>
    %cst_93 = arith.constant dense<0.000000e+00> : vector<8x512xf32>
    %449 = tpu.matmul %448, %4, %cst_93 {dimension_numbers = #tpu.dot_dimension_numbers<[1], [0], [0], [1], [0, 0, 1, 1], [], []>} : vector<8x256xf32>, vector<256x512xf32>, vector<8x512xf32> -> vector<8x512xf32>
    %450 = arith.addf %449, %7 : vector<8x512xf32>
    %451 = vector.extract_strided_slice %450 {offsets = [0, 0], sizes = [8, 128], strides = [1, 1]} : vector<8x512xf32> to vector<8x128xf32>
    %452 = arith.negf %451 : vector<8x128xf32>
    %453 = math.exp %452 : vector<8x128xf32>
    %cst_94 = arith.constant 1.000000e+00 : f32
    %454 = vector.broadcast %cst_94 : f32 to vector<8x128xf32>
    %455 = arith.addf %454, %453 : vector<8x128xf32>
    %456 = arith.divf %454, %455 : vector<8x128xf32>
    %457 = vector.extract_strided_slice %450 {offsets = [0, 128], sizes = [8, 128], strides = [1, 1]} : vector<8x512xf32> to vector<8x128xf32>
    %458 = arith.negf %457 : vector<8x128xf32>
    %459 = math.exp %458 : vector<8x128xf32>
    %cst_95 = arith.constant 1.000000e+00 : f32
    %460 = vector.broadcast %cst_95 : f32 to vector<8x128xf32>
    %461 = arith.addf %460, %459 : vector<8x128xf32>
    %462 = arith.divf %460, %461 : vector<8x128xf32>
    %463 = vector.extract_strided_slice %450 {offsets = [0, 256], sizes = [8, 128], strides = [1, 1]} : vector<8x512xf32> to vector<8x128xf32>
    %464 = math.tanh %463 : vector<8x128xf32>
    %465 = vector.extract_strided_slice %450 {offsets = [0, 384], sizes = [8, 128], strides = [1, 1]} : vector<8x512xf32> to vector<8x128xf32>
    %466 = arith.negf %465 : vector<8x128xf32>
    %467 = math.exp %466 : vector<8x128xf32>
    %cst_96 = arith.constant 1.000000e+00 : f32
    %468 = vector.broadcast %cst_96 : f32 to vector<8x128xf32>
    %469 = arith.addf %468, %467 : vector<8x128xf32>
    %470 = arith.divf %468, %469 : vector<8x128xf32>
    %471 = arith.mulf %462, %440 : vector<8x128xf32>
    %472 = arith.mulf %456, %464 : vector<8x128xf32>
    %473 = arith.addf %471, %472 : vector<8x128xf32>
    %474 = math.tanh %473 : vector<8x128xf32>
    %475 = arith.mulf %470, %474 : vector<8x128xf32>
    %cst_97 = arith.constant dense<0.000000e+00> : vector<8x128xf32>
    %476 = tpu.matmul %475, %8, %cst_97 {dimension_numbers = #tpu.dot_dimension_numbers<[1], [0], [0], [1], [0, 0, 1, 1], [], []>} : vector<8x128xf32>, vector<128x128xf32>, vector<8x128xf32> -> vector<8x128xf32>
    %477 = arith.addf %476, %11 : vector<8x128xf32>
    %c6 = arith.constant 6 : index
    %c0_98 = arith.constant 0 : index
    %c0_99 = arith.constant 0 : index
    %478 = vector.load %arg8[%c6, %c0_98, %c0_99] : memref<10x8x128xf32, #tpu.memory_space<vmem>>, vector<1x8x128xf32>
    %479 = vector.shape_cast %478 : vector<1x8x128xf32> to vector<8x128xf32>
    %480 = vector.shape_cast %477 : vector<8x128xf32> to vector<1x8x128xf32>
    tpu.vector_store %arg8[%c6, %c0_98, %c0_99], %480 {strides = array<i32>} : memref<10x8x128xf32, #tpu.memory_space<vmem>>, vector<1x8x128xf32>,
    %481 = tpu.concatenate %477, %475 in 1 : vector<8x128xf32>, vector<8x128xf32> -> vector<8x256xf32>
    %cst_100 = arith.constant dense<0.000000e+00> : vector<8x512xf32>
    %482 = tpu.matmul %481, %4, %cst_100 {dimension_numbers = #tpu.dot_dimension_numbers<[1], [0], [0], [1], [0, 0, 1, 1], [], []>} : vector<8x256xf32>, vector<256x512xf32>, vector<8x512xf32> -> vector<8x512xf32>
    %483 = arith.addf %482, %7 : vector<8x512xf32>
    %484 = vector.extract_strided_slice %483 {offsets = [0, 0], sizes = [8, 128], strides = [1, 1]} : vector<8x512xf32> to vector<8x128xf32>
    %485 = arith.negf %484 : vector<8x128xf32>
    %486 = math.exp %485 : vector<8x128xf32>
    %cst_101 = arith.constant 1.000000e+00 : f32
    %487 = vector.broadcast %cst_101 : f32 to vector<8x128xf32>
    %488 = arith.addf %487, %486 : vector<8x128xf32>
    %489 = arith.divf %487, %488 : vector<8x128xf32>
    %490 = vector.extract_strided_slice %483 {offsets = [0, 128], sizes = [8, 128], strides = [1, 1]} : vector<8x512xf32> to vector<8x128xf32>
    %491 = arith.negf %490 : vector<8x128xf32>
    %492 = math.exp %491 : vector<8x128xf32>
    %cst_102 = arith.constant 1.000000e+00 : f32
    %493 = vector.broadcast %cst_102 : f32 to vector<8x128xf32>
    %494 = arith.addf %493, %492 : vector<8x128xf32>
    %495 = arith.divf %493, %494 : vector<8x128xf32>
    %496 = vector.extract_strided_slice %483 {offsets = [0, 256], sizes = [8, 128], strides = [1, 1]} : vector<8x512xf32> to vector<8x128xf32>
    %497 = math.tanh %496 : vector<8x128xf32>
    %498 = vector.extract_strided_slice %483 {offsets = [0, 384], sizes = [8, 128], strides = [1, 1]} : vector<8x512xf32> to vector<8x128xf32>
    %499 = arith.negf %498 : vector<8x128xf32>
    %500 = math.exp %499 : vector<8x128xf32>
    %cst_103 = arith.constant 1.000000e+00 : f32
    %501 = vector.broadcast %cst_103 : f32 to vector<8x128xf32>
    %502 = arith.addf %501, %500 : vector<8x128xf32>
    %503 = arith.divf %501, %502 : vector<8x128xf32>
    %504 = arith.mulf %495, %473 : vector<8x128xf32>
    %505 = arith.mulf %489, %497 : vector<8x128xf32>
    %506 = arith.addf %504, %505 : vector<8x128xf32>
    %507 = math.tanh %506 : vector<8x128xf32>
    %508 = arith.mulf %503, %507 : vector<8x128xf32>
    %cst_104 = arith.constant dense<0.000000e+00> : vector<8x128xf32>
    %509 = tpu.matmul %508, %8, %cst_104 {dimension_numbers = #tpu.dot_dimension_numbers<[1], [0], [0], [1], [0, 0, 1, 1], [], []>} : vector<8x128xf32>, vector<128x128xf32>, vector<8x128xf32> -> vector<8x128xf32>
    %510 = arith.addf %509, %11 : vector<8x128xf32>
    %c7 = arith.constant 7 : index
    %c0_105 = arith.constant 0 : index
    %c0_106 = arith.constant 0 : index
    %511 = vector.load %arg8[%c7, %c0_105, %c0_106] : memref<10x8x128xf32, #tpu.memory_space<vmem>>, vector<1x8x128xf32>
    %512 = vector.shape_cast %511 : vector<1x8x128xf32> to vector<8x128xf32>
    %513 = vector.shape_cast %510 : vector<8x128xf32> to vector<1x8x128xf32>
    tpu.vector_store %arg8[%c7, %c0_105, %c0_106], %513 {strides = array<i32>} : memref<10x8x128xf32, #tpu.memory_space<vmem>>, vector<1x8x128xf32>,
    %514 = tpu.concatenate %510, %508 in 1 : vector<8x128xf32>, vector<8x128xf32> -> vector<8x256xf32>
    %cst_107 = arith.constant dense<0.000000e+00> : vector<8x512xf32>
    %515 = tpu.matmul %514, %4, %cst_107 {dimension_numbers = #tpu.dot_dimension_numbers<[1], [0], [0], [1], [0, 0, 1, 1], [], []>} : vector<8x256xf32>, vector<256x512xf32>, vector<8x512xf32> -> vector<8x512xf32>
    %516 = arith.addf %515, %7 : vector<8x512xf32>
    %517 = vector.extract_strided_slice %516 {offsets = [0, 0], sizes = [8, 128], strides = [1, 1]} : vector<8x512xf32> to vector<8x128xf32>
    %518 = arith.negf %517 : vector<8x128xf32>
    %519 = math.exp %518 : vector<8x128xf32>
    %cst_108 = arith.constant 1.000000e+00 : f32
    %520 = vector.broadcast %cst_108 : f32 to vector<8x128xf32>
    %521 = arith.addf %520, %519 : vector<8x128xf32>
    %522 = arith.divf %520, %521 : vector<8x128xf32>
    %523 = vector.extract_strided_slice %516 {offsets = [0, 128], sizes = [8, 128], strides = [1, 1]} : vector<8x512xf32> to vector<8x128xf32>
    %524 = arith.negf %523 : vector<8x128xf32>
    %525 = math.exp %524 : vector<8x128xf32>
    %cst_109 = arith.constant 1.000000e+00 : f32
    %526 = vector.broadcast %cst_109 : f32 to vector<8x128xf32>
    %527 = arith.addf %526, %525 : vector<8x128xf32>
    %528 = arith.divf %526, %527 : vector<8x128xf32>
    %529 = vector.extract_strided_slice %516 {offsets = [0, 256], sizes = [8, 128], strides = [1, 1]} : vector<8x512xf32> to vector<8x128xf32>
    %530 = math.tanh %529 : vector<8x128xf32>
    %531 = vector.extract_strided_slice %516 {offsets = [0, 384], sizes = [8, 128], strides = [1, 1]} : vector<8x512xf32> to vector<8x128xf32>
    %532 = arith.negf %531 : vector<8x128xf32>
    %533 = math.exp %532 : vector<8x128xf32>
    %cst_110 = arith.constant 1.000000e+00 : f32
    %534 = vector.broadcast %cst_110 : f32 to vector<8x128xf32>
    %535 = arith.addf %534, %533 : vector<8x128xf32>
    %536 = arith.divf %534, %535 : vector<8x128xf32>
    %537 = arith.mulf %528, %506 : vector<8x128xf32>
    %538 = arith.mulf %522, %530 : vector<8x128xf32>
    %539 = arith.addf %537, %538 : vector<8x128xf32>
    %540 = math.tanh %539 : vector<8x128xf32>
    %541 = arith.mulf %536, %540 : vector<8x128xf32>
    %cst_111 = arith.constant dense<0.000000e+00> : vector<8x128xf32>
    %542 = tpu.matmul %541, %8, %cst_111 {dimension_numbers = #tpu.dot_dimension_numbers<[1], [0], [0], [1], [0, 0, 1, 1], [], []>} : vector<8x128xf32>, vector<128x128xf32>, vector<8x128xf32> -> vector<8x128xf32>
    %543 = arith.addf %542, %11 : vector<8x128xf32>
    %c8 = arith.constant 8 : index
    %c0_112 = arith.constant 0 : index
    %c0_113 = arith.constant 0 : index
    %544 = vector.load %arg8[%c8, %c0_112, %c0_113] : memref<10x8x128xf32, #tpu.memory_space<vmem>>, vector<1x8x128xf32>
    %545 = vector.shape_cast %544 : vector<1x8x128xf32> to vector<8x128xf32>
    %546 = vector.shape_cast %543 : vector<8x128xf32> to vector<1x8x128xf32>
    tpu.vector_store %arg8[%c8, %c0_112, %c0_113], %546 {strides = array<i32>} : memref<10x8x128xf32, #tpu.memory_space<vmem>>, vector<1x8x128xf32>,
    %547 = tpu.concatenate %543, %541 in 1 : vector<8x128xf32>, vector<8x128xf32> -> vector<8x256xf32>
    %cst_114 = arith.constant dense<0.000000e+00> : vector<8x512xf32>
    %548 = tpu.matmul %547, %4, %cst_114 {dimension_numbers = #tpu.dot_dimension_numbers<[1], [0], [0], [1], [0, 0, 1, 1], [], []>} : vector<8x256xf32>, vector<256x512xf32>, vector<8x512xf32> -> vector<8x512xf32>
    %549 = arith.addf %548, %7 : vector<8x512xf32>
    %550 = vector.extract_strided_slice %549 {offsets = [0, 0], sizes = [8, 128], strides = [1, 1]} : vector<8x512xf32> to vector<8x128xf32>
    %551 = arith.negf %550 : vector<8x128xf32>
    %552 = math.exp %551 : vector<8x128xf32>
    %cst_115 = arith.constant 1.000000e+00 : f32
    %553 = vector.broadcast %cst_115 : f32 to vector<8x128xf32>
    %554 = arith.addf %553, %552 : vector<8x128xf32>
    %555 = arith.divf %553, %554 : vector<8x128xf32>
    %556 = vector.extract_strided_slice %549 {offsets = [0, 128], sizes = [8, 128], strides = [1, 1]} : vector<8x512xf32> to vector<8x128xf32>
    %557 = arith.negf %556 : vector<8x128xf32>
    %558 = math.exp %557 : vector<8x128xf32>
    %cst_116 = arith.constant 1.000000e+00 : f32
    %559 = vector.broadcast %cst_116 : f32 to vector<8x128xf32>
    %560 = arith.addf %559, %558 : vector<8x128xf32>
    %561 = arith.divf %559, %560 : vector<8x128xf32>
    %562 = vector.extract_strided_slice %549 {offsets = [0, 256], sizes = [8, 128], strides = [1, 1]} : vector<8x512xf32> to vector<8x128xf32>
    %563 = math.tanh %562 : vector<8x128xf32>
    %564 = vector.extract_strided_slice %549 {offsets = [0, 384], sizes = [8, 128], strides = [1, 1]} : vector<8x512xf32> to vector<8x128xf32>
    %565 = arith.negf %564 : vector<8x128xf32>
    %566 = math.exp %565 : vector<8x128xf32>
    %cst_117 = arith.constant 1.000000e+00 : f32
    %567 = vector.broadcast %cst_117 : f32 to vector<8x128xf32>
    %568 = arith.addf %567, %566 : vector<8x128xf32>
    %569 = arith.divf %567, %568 : vector<8x128xf32>
    %570 = arith.mulf %561, %539 : vector<8x128xf32>
    %571 = arith.mulf %555, %563 : vector<8x128xf32>
    %572 = arith.addf %570, %571 : vector<8x128xf32>
    %573 = math.tanh %572 : vector<8x128xf32>
    %574 = arith.mulf %569, %573 : vector<8x128xf32>
    %cst_118 = arith.constant dense<0.000000e+00> : vector<8x128xf32>
    %575 = tpu.matmul %574, %8, %cst_118 {dimension_numbers = #tpu.dot_dimension_numbers<[1], [0], [0], [1], [0, 0, 1, 1], [], []>} : vector<8x128xf32>, vector<128x128xf32>, vector<8x128xf32> -> vector<8x128xf32>
    %576 = arith.addf %575, %11 : vector<8x128xf32>
    %c9 = arith.constant 9 : index
    %c0_119 = arith.constant 0 : index
    %c0_120 = arith.constant 0 : index
    %577 = vector.load %arg8[%c9, %c0_119, %c0_120] : memref<10x8x128xf32, #tpu.memory_space<vmem>>, vector<1x8x128xf32>
    %578 = vector.shape_cast %577 : vector<1x8x128xf32> to vector<8x128xf32>
    %579 = vector.shape_cast %576 : vector<8x128xf32> to vector<1x8x128xf32>
    tpu.vector_store %arg8[%c9, %c0_119, %c0_120], %579 {strides = array<i32>} : memref<10x8x128xf32, #tpu.memory_space<vmem>>, vector<1x8x128xf32>,
    return
  }
}

</mosaic_0001>

<llo_original>
// kernel: encoder_decoder_forward.1
$region0: #{encoder_decoder_forward.1}
  #allocation0 [shape = 'u32[]', space=smem, size = 0x4, offset = 0x4, fixed_abs, tag = 'smem constant byte address 0x4 - core index']
  #allocation1 [shape = 'u32[144,128]{1,0:T(1,128)}', space=vmem, size = 0x12000, scoped, tag = 'internal scratch']
  %s0 = inlined_call_operand.vmem [shape: f32[64,16], index: 0, kind: input, shape index: {}]
  %s1 = inlined_call_operand.vmem [shape: f32[16,512], index: 1, kind: input, shape index: {}]
  %s2 = inlined_call_operand.vmem [shape: f32[128,512], index: 2, kind: input, shape index: {}]
  %s3 = inlined_call_operand.vmem [shape: f32[1,512], index: 3, kind: input, shape index: {}]
  %s4 = inlined_call_operand.vmem [shape: f32[256,512], index: 4, kind: input, shape index: {}]
  %s5 = inlined_call_operand.vmem [shape: f32[1,512], index: 5, kind: input, shape index: {}]
  %s6 = inlined_call_operand.vmem [shape: f32[128,128], index: 6, kind: input, shape index: {}]
  %s7 = inlined_call_operand.vmem [shape: f32[1,128], index: 7, kind: input, shape index: {}]
  %s8 = inlined_call_operand.vmem [shape: f32[10,8,128], index: 8, kind: output, shape index: {}]
  %s9 = sld [smem:[#allocation0]]
  $region42: #{encoder_decoder_forward.1} parent=0
    _
  %s11 = ssub.s32 1, %s9
  %s12 = scalar_select 0, %s11, %s9
  // Predicated region
  $region2: #{encoder_decoder_forward.1} parent=0 // pred_check
    _
  $region3: #{encoder_decoder_forward.1} parent=0 // pred_check_branch
    %14 = sbr.rel (0) target = $region5
  $region4: #{encoder_decoder_forward.1} parent=0 // pred_region
    _
  $region5: #{encoder_decoder_forward.1} parent=0 // pred_fallthru
    _
  // Predicated region
  $region6: #{encoder_decoder_forward.1} parent=0 // pred_check
    _
  $region7: #{encoder_decoder_forward.1} parent=0 // pred_check_branch
    %16 = sbr.rel (0) target = $region9
  $region8: #{encoder_decoder_forward.1} parent=0 // pred_region
    _
  $region9: #{encoder_decoder_forward.1} parent=0 // pred_fallthru
    _
  // Predicated region
  $region10: #{encoder_decoder_forward.1} parent=0 // pred_check
    _
  $region11: #{encoder_decoder_forward.1} parent=0 // pred_check_branch
    %18 = sbr.rel (0) target = $region13
  $region12: #{encoder_decoder_forward.1} parent=0 // pred_region
    _
  $region13: #{encoder_decoder_forward.1} parent=0 // pred_fallthru
    _
  // Predicated region
  $region14: #{encoder_decoder_forward.1} parent=0 // pred_check
    _
  $region15: #{encoder_decoder_forward.1} parent=0 // pred_check_branch
    %20 = sbr.rel (0) target = $region17
  $region16: #{encoder_decoder_forward.1} parent=0 // pred_region
    _
  $region17: #{encoder_decoder_forward.1} parent=0 // pred_fallthru
    _
  // Predicated region
  $region18: #{encoder_decoder_forward.1} parent=0 // pred_check
    _
  $region19: #{encoder_decoder_forward.1} parent=0 // pred_check_branch
    %22 = sbr.rel (0) target = $region21
  $region20: #{encoder_decoder_forward.1} parent=0 // pred_region
    _
  $region21: #{encoder_decoder_forward.1} parent=0 // pred_fallthru
    _
  // Predicated region
  $region22: #{encoder_decoder_forward.1} parent=0 // pred_check
    _
  $region23: #{encoder_decoder_forward.1} parent=0 // pred_check_branch
    %24 = sbr.rel (0) target = $region25
  $region24: #{encoder_decoder_forward.1} parent=0 // pred_region
    _
  $region25: #{encoder_decoder_forward.1} parent=0 // pred_fallthru
    _
  // Predicated region
  $region26: #{encoder_decoder_forward.1} parent=0 // pred_check
    _
  $region27: #{encoder_decoder_forward.1} parent=0 // pred_check_branch
    %26 = sbr.rel (0) target = $region29
  $region28: #{encoder_decoder_forward.1} parent=0 // pred_region
    _
  $region29: #{encoder_decoder_forward.1} parent=0 // pred_fallthru
    _
  // Predicated region
  $region30: #{encoder_decoder_forward.1} parent=0 // pred_check
    _
  $region31: #{encoder_decoder_forward.1} parent=0 // pred_check_branch
    %28 = sbr.rel (0) target = $region33
  $region32: #{encoder_decoder_forward.1} parent=0 // pred_region
    _
  $region33: #{encoder_decoder_forward.1} parent=0 // pred_fallthru
    _
  %v29 = vld [vmem:[%s2] sm:$0xff]
  %v30 = vld [vmem:[%s2 + $0x8] sm:$0xff]
  %v31 = vld [vmem:[%s2 + $0x10] sm:$0xff]
  %v32 = vld [vmem:[%s2 + $0x18] sm:$0xff]
  %v33 = vld [vmem:[%s2 + $0x20] sm:$0xff]
  %v34 = vld [vmem:[%s2 + $0x28] sm:$0xff]
  %v35 = vld [vmem:[%s2 + $0x30] sm:$0xff]
  %v36 = vld [vmem:[%s2 + $0x38] sm:$0xff]
  %v37 = vld [vmem:[%s2 + $0x40] sm:$0xff]
  %v38 = vld [vmem:[%s2 + $0x48] sm:$0xff]
  %v39 = vld [vmem:[%s2 + $0x50] sm:$0xff]
  %v40 = vld [vmem:[%s2 + $0x58] sm:$0xff]
  %v41 = vld [vmem:[%s2 + $0x60] sm:$0xff]
  %v42 = vld [vmem:[%s2 + $0x68] sm:$0xff]
  %v43 = vld [vmem:[%s2 + $0x70] sm:$0xff]
  %v44 = vld [vmem:[%s2 + $0x78] sm:$0xff]
  %v45 = vld [vmem:[%s2 + $0x80] sm:$0xff]
  %v46 = vld [vmem:[%s2 + $0x88] sm:$0xff]
  %v47 = vld [vmem:[%s2 + $0x90] sm:$0xff]
  %v48 = vld [vmem:[%s2 + $0x98] sm:$0xff]
  %v49 = vld [vmem:[%s2 + $0xa0] sm:$0xff]
  %v50 = vld [vmem:[%s2 + $0xa8] sm:$0xff]
  %v51 = vld [vmem:[%s2 + $0xb0] sm:$0xff]
  %v52 = vld [vmem:[%s2 + $0xb8] sm:$0xff]
  %v53 = vld [vmem:[%s2 + $0xc0] sm:$0xff]
  %v54 = vld [vmem:[%s2 + $0xc8] sm:$0xff]
  %v55 = vld [vmem:[%s2 + $0xd0] sm:$0xff]
  %v56 = vld [vmem:[%s2 + $0xd8] sm:$0xff]
  %v57 = vld [vmem:[%s2 + $0xe0] sm:$0xff]
  %v58 = vld [vmem:[%s2 + $0xe8] sm:$0xff]
  %v59 = vld [vmem:[%s2 + $0xf0] sm:$0xff]
  %v60 = vld [vmem:[%s2 + $0xf8] sm:$0xff]
  %v61 = vld [vmem:[%s2 + $0x100] sm:$0xff]
  %v62 = vld [vmem:[%s2 + $0x108] sm:$0xff]
  %v63 = vld [vmem:[%s2 + $0x110] sm:$0xff]
  %v64 = vld [vmem:[%s2 + $0x118] sm:$0xff]
  %v65 = vld [vmem:[%s2 + $0x120] sm:$0xff]
  %v66 = vld [vmem:[%s2 + $0x128] sm:$0xff]
  %v67 = vld [vmem:[%s2 + $0x130] sm:$0xff]
  %v68 = vld [vmem:[%s2 + $0x138] sm:$0xff]
  %v69 = vld [vmem:[%s2 + $0x140] sm:$0xff]
  %v70 = vld [vmem:[%s2 + $0x148] sm:$0xff]
  %v71 = vld [vmem:[%s2 + $0x150] sm:$0xff]
  %v72 = vld [vmem:[%s2 + $0x158] sm:$0xff]
  %v73 = vld [vmem:[%s2 + $0x160] sm:$0xff]
  %v74 = vld [vmem:[%s2 + $0x168] sm:$0xff]
  %v75 = vld [vmem:[%s2 + $0x170] sm:$0xff]
  %v76 = vld [vmem:[%s2 + $0x178] sm:$0xff]
  %v77 = vld [vmem:[%s2 + $0x180] sm:$0xff]
  %v78 = vld [vmem:[%s2 + $0x188] sm:$0xff]
  %v79 = vld [vmem:[%s2 + $0x190] sm:$0xff]
  %v80 = vld [vmem:[%s2 + $0x198] sm:$0xff]
  %v81 = vld [vmem:[%s2 + $0x1a0] sm:$0xff]
  %v82 = vld [vmem:[%s2 + $0x1a8] sm:$0xff]
  %v83 = vld [vmem:[%s2 + $0x1b0] sm:$0xff]
  %v84 = vld [vmem:[%s2 + $0x1b8] sm:$0xff]
  %v85 = vld [vmem:[%s2 + $0x1c0] sm:$0xff]
  %v86 = vld [vmem:[%s2 + $0x1c8] sm:$0xff]
  %v87 = vld [vmem:[%s2 + $0x1d0] sm:$0xff]
  %v88 = vld [vmem:[%s2 + $0x1d8] sm:$0xff]
  %v89 = vld [vmem:[%s2 + $0x1e0] sm:$0xff]
  %v90 = vld [vmem:[%s2 + $0x1e8] sm:$0xff]
  %v91 = vld [vmem:[%s2 + $0x1f0] sm:$0xff]
  %v92 = vld [vmem:[%s2 + $0x1f8] sm:$0xff]
  %v93 = vld [vmem:[%s3] sm:$0xf]
  %v95 = vlaneseq
  %v96 = vshrl.u32 %v95, 7
  %v97 = vsub.s32 0, %v96
  %v98 = vrot.slane %v93, %v97
  %v99 = vlaneseq
  %v100 = vshrl.u32 %v99, 7
  %v101 = vsub.s32 1, %v100
  %v102 = vrot.slane %v93, %v101
  %v103 = vlaneseq
  %v104 = vshrl.u32 %v103, 7
  %v105 = vsub.s32 2, %v104
  %v106 = vrot.slane %v93, %v105
  %v107 = vlaneseq
  %v108 = vshrl.u32 %v107, 7
  %v109 = vsub.s32 3, %v108
  %v110 = vrot.slane %v93, %v109
  %v115 = vld [vmem:[%s4] sm:$0xff]
  %v116 = vld [vmem:[%s4 + $0x8] sm:$0xff]
  %v117 = vld [vmem:[%s4 + $0x10] sm:$0xff]
  %v118 = vld [vmem:[%s4 + $0x18] sm:$0xff]
  %v119 = vld [vmem:[%s4 + $0x20] sm:$0xff]
  %v120 = vld [vmem:[%s4 + $0x28] sm:$0xff]
  %v121 = vld [vmem:[%s4 + $0x30] sm:$0xff]
  %v122 = vld [vmem:[%s4 + $0x38] sm:$0xff]
  %v123 = vld [vmem:[%s4 + $0x40] sm:$0xff]
  %v124 = vld [vmem:[%s4 + $0x48] sm:$0xff]
  %v125 = vld [vmem:[%s4 + $0x50] sm:$0xff]
  %v126 = vld [vmem:[%s4 + $0x58] sm:$0xff]
  %v127 = vld [vmem:[%s4 + $0x60] sm:$0xff]
  %v128 = vld [vmem:[%s4 + $0x68] sm:$0xff]
  %v129 = vld [vmem:[%s4 + $0x70] sm:$0xff]
  %v130 = vld [vmem:[%s4 + $0x78] sm:$0xff]
  %v131 = vld [vmem:[%s4 + $0x80] sm:$0xff]
  %v132 = vld [vmem:[%s4 + $0x88] sm:$0xff]
  %v133 = vld [vmem:[%s4 + $0x90] sm:$0xff]
  %v134 = vld [vmem:[%s4 + $0x98] sm:$0xff]
  %v135 = vld [vmem:[%s4 + $0xa0] sm:$0xff]
  %v136 = vld [vmem:[%s4 + $0xa8] sm:$0xff]
  %v137 = vld [vmem:[%s4 + $0xb0] sm:$0xff]
  %v138 = vld [vmem:[%s4 + $0xb8] sm:$0xff]
  %v139 = vld [vmem:[%s4 + $0xc0] sm:$0xff]
  %v140 = vld [vmem:[%s4 + $0xc8] sm:$0xff]
  %v141 = vld [vmem:[%s4 + $0xd0] sm:$0xff]
  %v142 = vld [vmem:[%s4 + $0xd8] sm:$0xff]
  %v143 = vld [vmem:[%s4 + $0xe0] sm:$0xff]
  %v144 = vld [vmem:[%s4 + $0xe8] sm:$0xff]
  %v145 = vld [vmem:[%s4 + $0xf0] sm:$0xff]
  %v146 = vld [vmem:[%s4 + $0xf8] sm:$0xff]
  %v147 = vld [vmem:[%s4 + $0x100] sm:$0xff]
  %v148 = vld [vmem:[%s4 + $0x108] sm:$0xff]
  %v149 = vld [vmem:[%s4 + $0x110] sm:$0xff]
  %v150 = vld [vmem:[%s4 + $0x118] sm:$0xff]
  %v151 = vld [vmem:[%s4 + $0x120] sm:$0xff]
  %v152 = vld [vmem:[%s4 + $0x128] sm:$0xff]
  %v153 = vld [vmem:[%s4 + $0x130] sm:$0xff]
  %v154 = vld [vmem:[%s4 + $0x138] sm:$0xff]
  %v155 = vld [vmem:[%s4 + $0x140] sm:$0xff]
  %v156 = vld [vmem:[%s4 + $0x148] sm:$0xff]
  %v157 = vld [vmem:[%s4 + $0x150] sm:$0xff]
  %v158 = vld [vmem:[%s4 + $0x158] sm:$0xff]
  %v159 = vld [vmem:[%s4 + $0x160] sm:$0xff]
  %v160 = vld [vmem:[%s4 + $0x168] sm:$0xff]
  %v161 = vld [vmem:[%s4 + $0x170] sm:$0xff]
  %v162 = vld [vmem:[%s4 + $0x178] sm:$0xff]
  %v163 = vld [vmem:[%s4 + $0x180] sm:$0xff]
  %v164 = vld [vmem:[%s4 + $0x188] sm:$0xff]
  %v165 = vld [vmem:[%s4 + $0x190] sm:$0xff]
  %v166 = vld [vmem:[%s4 + $0x198] sm:$0xff]
  %v167 = vld [vmem:[%s4 + $0x1a0] sm:$0xff]
  %v168 = vld [vmem:[%s4 + $0x1a8] sm:$0xff]
  %v169 = vld [vmem:[%s4 + $0x1b0] sm:$0xff]
  %v170 = vld [vmem:[%s4 + $0x1b8] sm:$0xff]
  %v171 = vld [vmem:[%s4 + $0x1c0] sm:$0xff]
  %v172 = vld [vmem:[%s4 + $0x1c8] sm:$0xff]
  %v173 = vld [vmem:[%s4 + $0x1d0] sm:$0xff]
  %v174 = vld [vmem:[%s4 + $0x1d8] sm:$0xff]
  %v175 = vld [vmem:[%s4 + $0x1e0] sm:$0xff]
  %v176 = vld [vmem:[%s4 + $0x1e8] sm:$0xff]
  %v177 = vld [vmem:[%s4 + $0x1f0] sm:$0xff]
  %v178 = vld [vmem:[%s4 + $0x1f8] sm:$0xff]
  %v179 = vld [vmem:[%s4 + $0x200] sm:$0xff]
  %v180 = vld [vmem:[%s4 + $0x208] sm:$0xff]
  %v181 = vld [vmem:[%s4 + $0x210] sm:$0xff]
  %v182 = vld [vmem:[%s4 + $0x218] sm:$0xff]
  %v183 = vld [vmem:[%s4 + $0x220] sm:$0xff]
  %v184 = vld [vmem:[%s4 + $0x228] sm:$0xff]
  %v185 = vld [vmem:[%s4 + $0x230] sm:$0xff]
  %v186 = vld [vmem:[%s4 + $0x238] sm:$0xff]
  %v187 = vld [vmem:[%s4 + $0x240] sm:$0xff]
  %v188 = vld [vmem:[%s4 + $0x248] sm:$0xff]
  %v189 = vld [vmem:[%s4 + $0x250] sm:$0xff]
  %v190 = vld [vmem:[%s4 + $0x258] sm:$0xff]
  %v191 = vld [vmem:[%s4 + $0x260] sm:$0xff]
  %v192 = vld [vmem:[%s4 + $0x268] sm:$0xff]
  %v193 = vld [vmem:[%s4 + $0x270] sm:$0xff]
  %v194 = vld [vmem:[%s4 + $0x278] sm:$0xff]
  %v195 = vld [vmem:[%s4 + $0x280] sm:$0xff]
  %v196 = vld [vmem:[%s4 + $0x288] sm:$0xff]
  %v197 = vld [vmem:[%s4 + $0x290] sm:$0xff]
  %v198 = vld [vmem:[%s4 + $0x298] sm:$0xff]
  %v199 = vld [vmem:[%s4 + $0x2a0] sm:$0xff]
  %v200 = vld [vmem:[%s4 + $0x2a8] sm:$0xff]
  %v201 = vld [vmem:[%s4 + $0x2b0] sm:$0xff]
  %v202 = vld [vmem:[%s4 + $0x2b8] sm:$0xff]
  %v203 = vld [vmem:[%s4 + $0x2c0] sm:$0xff]
  %v204 = vld [vmem:[%s4 + $0x2c8] sm:$0xff]
  %v205 = vld [vmem:[%s4 + $0x2d0] sm:$0xff]
  %v206 = vld [vmem:[%s4 + $0x2d8] sm:$0xff]
  %v207 = vld [vmem:[%s4 + $0x2e0] sm:$0xff]
  %v208 = vld [vmem:[%s4 + $0x2e8] sm:$0xff]
  %v209 = vld [vmem:[%s4 + $0x2f0] sm:$0xff]
  %v210 = vld [vmem:[%s4 + $0x2f8] sm:$0xff]
  %v211 = vld [vmem:[%s4 + $0x300] sm:$0xff]
  %v212 = vld [vmem:[%s4 + $0x308] sm:$0xff]
  %v213 = vld [vmem:[%s4 + $0x310] sm:$0xff]
  %v214 = vld [vmem:[%s4 + $0x318] sm:$0xff]
  %v215 = vld [vmem:[%s4 + $0x320] sm:$0xff]
  %v216 = vld [vmem:[%s4 + $0x328] sm:$0xff]
  %v217 = vld [vmem:[%s4 + $0x330] sm:$0xff]
  %v218 = vld [vmem:[%s4 + $0x338] sm:$0xff]
  %v219 = vld [vmem:[%s4 + $0x340] sm:$0xff]
  %v220 = vld [vmem:[%s4 + $0x348] sm:$0xff]
  %v221 = vld [vmem:[%s4 + $0x350] sm:$0xff]
  %v222 = vld [vmem:[%s4 + $0x358] sm:$0xff]
  %v223 = vld [vmem:[%s4 + $0x360] sm:$0xff]
  %v224 = vld [vmem:[%s4 + $0x368] sm:$0xff]
  %v225 = vld [vmem:[%s4 + $0x370] sm:$0xff]
  %v226 = vld [vmem:[%s4 + $0x378] sm:$0xff]
  %v227 = vld [vmem:[%s4 + $0x380] sm:$0xff]
  %v228 = vld [vmem:[%s4 + $0x388] sm:$0xff]
  %v229 = vld [vmem:[%s4 + $0x390] sm:$0xff]
  %v230 = vld [vmem:[%s4 + $0x398] sm:$0xff]
  %v231 = vld [vmem:[%s4 + $0x3a0] sm:$0xff]
  %v232 = vld [vmem:[%s4 + $0x3a8] sm:$0xff]
  %v233 = vld [vmem:[%s4 + $0x3b0] sm:$0xff]
  %v234 = vld [vmem:[%s4 + $0x3b8] sm:$0xff]
  %v235 = vld [vmem:[%s4 + $0x3c0] sm:$0xff]
  %v236 = vld [vmem:[%s4 + $0x3c8] sm:$0xff]
  %v237 = vld [vmem:[%s4 + $0x3d0] sm:$0xff]
  %v238 = vld [vmem:[%s4 + $0x3d8] sm:$0xff]
  %v239 = vld [vmem:[%s4 + $0x3e0] sm:$0xff]
  %v240 = vld [vmem:[%s4 + $0x3e8] sm:$0xff]
  %v241 = vld [vmem:[%s4 + $0x3f0] sm:$0xff]
  %v242 = vld [vmem:[%s4 + $0x3f8] sm:$0xff]
  %v243 = vld [vmem:[%s5] sm:$0xf]
  %v245 = vlaneseq
  %v246 = vshrl.u32 %v245, 7
  %v247 = vsub.s32 0, %v246
  %v248 = vrot.slane %v243, %v247
  %v249 = vlaneseq
  %v250 = vshrl.u32 %v249, 7
  %v251 = vsub.s32 1, %v250
  %v252 = vrot.slane %v243, %v251
  %v253 = vlaneseq
  %v254 = vshrl.u32 %v253, 7
  %v255 = vsub.s32 2, %v254
  %v256 = vrot.slane %v243, %v255
  %v257 = vlaneseq
  %v258 = vshrl.u32 %v257, 7
  %v259 = vsub.s32 3, %v258
  %v260 = vrot.slane %v243, %v259
  %v265 = vld [vmem:[%s6] sm:$0xff]
  %v266 = vld [vmem:[%s6 + $0x8] sm:$0xff]
  %v267 = vld [vmem:[%s6 + $0x10] sm:$0xff]
  %v268 = vld [vmem:[%s6 + $0x18] sm:$0xff]
  %v269 = vld [vmem:[%s6 + $0x20] sm:$0xff]
  %v270 = vld [vmem:[%s6 + $0x28] sm:$0xff]
  %v271 = vld [vmem:[%s6 + $0x30] sm:$0xff]
  %v272 = vld [vmem:[%s6 + $0x38] sm:$0xff]
  %v273 = vld [vmem:[%s6 + $0x40] sm:$0xff]
  %v274 = vld [vmem:[%s6 + $0x48] sm:$0xff]
  %v275 = vld [vmem:[%s6 + $0x50] sm:$0xff]
  %v276 = vld [vmem:[%s6 + $0x58] sm:$0xff]
  %v277 = vld [vmem:[%s6 + $0x60] sm:$0xff]
  %v278 = vld [vmem:[%s6 + $0x68] sm:$0xff]
  %v279 = vld [vmem:[%s6 + $0x70] sm:$0xff]
  %v280 = vld [vmem:[%s6 + $0x78] sm:$0xff]
  %v281 = vld [vmem:[%s7] sm:$0x1]
  %v283 = vlaneseq
  %v284 = vshrl.u32 %v283, 7
  %v285 = vsub.s32 0, %v284
  %v286 = vrot.slane %v281, %v285
  %v288 = vld [vmem:[%s0] sm:$0xff]
  %v289 = vld [vmem:[%s0 + $0x8] sm:$0xff]
  %v290 = vld [vmem:[%s0 + $0x10] sm:$0xff]
  %v291 = vld [vmem:[%s0 + $0x18] sm:$0xff]
  %v292 = vld [vmem:[%s0 + $0x20] sm:$0xff]
  %v293 = vld [vmem:[%s0 + $0x28] sm:$0xff]
  %v294 = vld [vmem:[%s0 + $0x30] sm:$0xff]
  %v295 = vld [vmem:[%s0 + $0x38] sm:$0xff]
  %v296 = vld [vmem:[%s1] sm:$0xff]
  %v297 = vld [vmem:[%s1 + $0x8] sm:$0xff]
  %v298 = vld [vmem:[%s1 + $0x10] sm:$0xff]
  %v299 = vld [vmem:[%s1 + $0x18] sm:$0xff]
  %v300 = vld [vmem:[%s1 + $0x20] sm:$0xff]
  %v301 = vld [vmem:[%s1 + $0x28] sm:$0xff]
  %v302 = vld [vmem:[%s1 + $0x30] sm:$0xff]
  %v303 = vld [vmem:[%s1 + $0x38] sm:$0xff]
  %vm304 = vcmask 130048
  %v306 = vsel %vm304, %v288, 0
  %v309 = vsel %vm304, %v289, 0
  %v312 = vsel %vm304, %v290, 0
  %v315 = vsel %vm304, %v291, 0
  %v318 = vsel %vm304, %v292, 0
  %v321 = vsel %vm304, %v293, 0
  %v324 = vsel %vm304, %v294, 0
  %v327 = vsel %vm304, %v295, 0
  %329 = vmatprep.subr.mxu0 %v297
  %330 = vmatpush1.msra.mxu0 %v296
  %331 = vmatprep.subr.mxu0 %v301
  %332 = vmatpush1.msra.mxu0 %v300
  %333 = vmatprep.subr.mxu0 0.0
  %334 = vmatpush1.msra.mxu0 0.0
  %335 = vmatprep.subr.mxu0 0.0
  %336 = vmatpush1.msra.mxu0 0.0
  %337 = vmatprep.subr.mxu0 0.0
  %338 = vmatpush1.msra.mxu0 0.0
  %339 = vmatprep.subr.mxu0 0.0
  %340 = vmatpush1.msra.mxu0 0.0
  %341 = vmatprep.subr.mxu0 0.0
  %342 = vmatpush1.msra.mxu0 0.0
  %343 = vmatprep.subr.mxu0 0.0
  %344 = vmatpush1.msra.mxu0 0.0
  %345 = vmatprep.subr.mxu0 0.0
  %346 = vmatpush1.msra.mxu0 0.0
  %347 = vmatprep.subr.mxu0 0.0
  %348 = vmatpush1.msra.mxu0 0.0
  %349 = vmatprep.subr.mxu0 0.0
  %350 = vmatpush1.msra.mxu0 0.0
  %351 = vmatprep.subr.mxu0 0.0
  %352 = vmatpush1.msra.mxu0 0.0
  %353 = vmatprep.subr.mxu0 0.0
  %354 = vmatpush1.msra.mxu0 0.0
  %355 = vmatprep.subr.mxu0 0.0
  %356 = vmatpush1.msra.mxu0 0.0
  %357 = vmatprep.subr.mxu0 0.0
  %358 = vmatpush1.msra.mxu0 0.0
  %359 = vmatprep.subr.mxu0 0.0
  %360 = vmatpush1.msra.mxu0 0.0
  %361 = vmatprep.subr.mxu0 0.0
  %362 = vmatpush1.msra.mxu0 0.0
  %363 = vmatprep.subr.mxu0 0.0
  %364 = vmatpush1.msra.mxu0 0.0
  %365 = vmatprep.subr.mxu0 0.0
  %366 = vmatpush1.msra.mxu0 0.0
  %367 = vmatprep.subr.mxu0 0.0
  %368 = vmatpush1.msra.mxu0 0.0
  %369 = vmatprep.subr.mxu0 0.0
  %370 = vmatpush1.msra.mxu0 0.0
  %371 = vmatprep.subr.mxu0 0.0
  %372 = vmatpush1.msra.mxu0 0.0
  %373 = vmatprep.subr.mxu0 0.0
  %374 = vmatpush1.msra.mxu0 0.0
  %375 = vmatprep.subr.mxu0 0.0
  %376 = vmatpush1.msra.mxu0 0.0
  %377 = vmatprep.subr.mxu0 0.0
  %378 = vmatpush1.msra.mxu0 0.0
  %379 = vmatprep.subr.mxu0 0.0
  %380 = vmatpush1.msra.mxu0 0.0
  %381 = vmatprep.subr.mxu0 0.0
  %382 = vmatpush1.msra.mxu0 0.0
  %383 = vmatprep.subr.mxu0 0.0
  %384 = vmatpush1.msra.mxu0 0.0
  %385 = vmatprep.subr.mxu0 0.0
  %386 = vmatpush1.msra.mxu0 0.0
  %387 = vmatprep.subr.mxu0 0.0
  %388 = vmatpush1.msra.mxu0 0.0
  %389 = vmatprep.subr.mxu0 0.0
  %390 = vmatpush1.msra.mxu0 0.0
  %391 = vmatprep.subr.mxu0 0.0
  %392 = vmatpush1.msra.mxu0 0.0
  %393 = vmatprep.mubr.f32.mxu0 0.0
  %394 = vmatmul.mubr.f32.gmra.mrb[0].mxu0 %v306
  %v395 = vpop.f32.mrb[0].mxu0
  %v396 = vadd.f32 0.0, %v395
  %v397 = vpop.f32.mrb[0].mxu0
  %v398 = vadd.f32 0.0, %v397
  %399 = vmatprep.mubr.f32.mxu0 0.0
  %400 = vmatmul.mubr.f32.gmra.mrb[0].mxu0 %v309
  %v401 = vpop.f32.mrb[0].mxu0
  %v402 = vadd.f32 0.0, %v401
  %v403 = vpop.f32.mrb[0].mxu0
  %v404 = vadd.f32 0.0, %v403
  %405 = vmatprep.mubr.f32.mxu0 0.0
  %406 = vmatmul.mubr.f32.gmra.mrb[0].mxu0 %v312
  %v407 = vpop.f32.mrb[0].mxu0
  %v408 = vadd.f32 0.0, %v407
  %v409 = vpop.f32.mrb[0].mxu0
  %v410 = vadd.f32 0.0, %v409
  %411 = vmatprep.mubr.f32.mxu0 0.0
  %412 = vmatmul.mubr.f32.gmra.mrb[0].mxu0 %v315
  %v413 = vpop.f32.mrb[0].mxu0
  %v414 = vadd.f32 0.0, %v413
  %v415 = vpop.f32.mrb[0].mxu0
  %v416 = vadd.f32 0.0, %v415
  %417 = vmatprep.mubr.f32.mxu0 0.0
  %418 = vmatmul.mubr.f32.gmra.mrb[0].mxu0 %v318
  %v419 = vpop.f32.mrb[0].mxu0
  %v420 = vadd.f32 0.0, %v419
  %v421 = vpop.f32.mrb[0].mxu0
  %v422 = vadd.f32 0.0, %v421
  %423 = vmatprep.mubr.f32.mxu0 0.0
  %424 = vmatmul.mubr.f32.gmra.mrb[0].mxu0 %v321
  %v425 = vpop.f32.mrb[0].mxu0
  %v426 = vadd.f32 0.0, %v425
  %v427 = vpop.f32.mrb[0].mxu0
  %v428 = vadd.f32 0.0, %v427
  %429 = vmatprep.mubr.f32.mxu0 0.0
  %430 = vmatmul.mubr.f32.gmra.mrb[0].mxu0 %v324
  %v431 = vpop.f32.mrb[0].mxu0
  %v432 = vadd.f32 0.0, %v431
  %v433 = vpop.f32.mrb[0].mxu0
  %v434 = vadd.f32 0.0, %v433
  %435 = vmatprep.mubr.f32.mxu0 0.0
  %436 = vmatmul.mubr.f32.gmra.mrb[0].mxu0 %v327
  %v437 = vpop.f32.mrb[0].mxu0
  %v438 = vadd.f32 0.0, %v437
  %v439 = vpop.f32.mrb[0].mxu0
  %v440 = vadd.f32 0.0, %v439
  %441 = vdwg.mxu0
  %442 = vmatprep.subr.mxu0 %v299
  %443 = vmatpush1.msra.mxu0 %v298
  %444 = vmatprep.subr.mxu0 %v303
  %445 = vmatpush1.msra.mxu0 %v302
  %446 = vmatprep.subr.mxu0 0.0
  %447 = vmatpush1.msra.mxu0 0.0
  %448 = vmatprep.subr.mxu0 0.0
  %449 = vmatpush1.msra.mxu0 0.0
  %450 = vmatprep.subr.mxu0 0.0
  %451 = vmatpush1.msra.mxu0 0.0
  %452 = vmatprep.subr.mxu0 0.0
  %453 = vmatpush1.msra.mxu0 0.0
  %454 = vmatprep.subr.mxu0 0.0
  %455 = vmatpush1.msra.mxu0 0.0
  %456 = vmatprep.subr.mxu0 0.0
  %457 = vmatpush1.msra.mxu0 0.0
  %458 = vmatprep.subr.mxu0 0.0
  %459 = vmatpush1.msra.mxu0 0.0
  %460 = vmatprep.subr.mxu0 0.0
  %461 = vmatpush1.msra.mxu0 0.0
  %462 = vmatprep.subr.mxu0 0.0
  %463 = vmatpush1.msra.mxu0 0.0
  %464 = vmatprep.subr.mxu0 0.0
  %465 = vmatpush1.msra.mxu0 0.0
  %466 = vmatprep.subr.mxu0 0.0
  %467 = vmatpush1.msra.mxu0 0.0
  %468 = vmatprep.subr.mxu0 0.0
  %469 = vmatpush1.msra.mxu0 0.0
  %470 = vmatprep.subr.mxu0 0.0
  %471 = vmatpush1.msra.mxu0 0.0
  %472 = vmatprep.subr.mxu0 0.0
  %473 = vmatpush1.msra.mxu0 0.0
  %474 = vmatprep.subr.mxu0 0.0
  %475 = vmatpush1.msra.mxu0 0.0
  %476 = vmatprep.subr.mxu0 0.0
  %477 = vmatpush1.msra.mxu0 0.0
  %478 = vmatprep.subr.mxu0 0.0
  %479 = vmatpush1.msra.mxu0 0.0
  %480 = vmatprep.subr.mxu0 0.0
  %481 = vmatpush1.msra.mxu0 0.0
  %482 = vmatprep.subr.mxu0 0.0
  %483 = vmatpush1.msra.mxu0 0.0
  %484 = vmatprep.subr.mxu0 0.0
  %485 = vmatpush1.msra.mxu0 0.0
  %486 = vmatprep.subr.mxu0 0.0
  %487 = vmatpush1.msra.mxu0 0.0
  %488 = vmatprep.subr.mxu0 0.0
  %489 = vmatpush1.msra.mxu0 0.0
  %490 = vmatprep.subr.mxu0 0.0
  %491 = vmatpush1.msra.mxu0 0.0
  %492 = vmatprep.subr.mxu0 0.0
  %493 = vmatpush1.msra.mxu0 0.0
  %494 = vmatprep.subr.mxu0 0.0
  %495 = vmatpush1.msra.mxu0 0.0
  %496 = vmatprep.subr.mxu0 0.0
  %497 = vmatpush1.msra.mxu0 0.0
  %498 = vmatprep.subr.mxu0 0.0
  %499 = vmatpush1.msra.mxu0 0.0
  %500 = vmatprep.subr.mxu0 0.0
  %501 = vmatpush1.msra.mxu0 0.0
  %502 = vmatprep.subr.mxu0 0.0
  %503 = vmatpush1.msra.mxu0 0.0
  %504 = vmatprep.subr.mxu0 0.0
  %505 = vmatpush1.msra.mxu0 0.0
  %506 = vmatprep.mubr.f32.mxu0 0.0
  %507 = vmatmul.mubr.f32.gmra.mrb[0].mxu0 %v306
  %v508 = vpop.f32.mrb[0].mxu0
  %v509 = vadd.f32 0.0, %v508
  %v510 = vpop.f32.mrb[0].mxu0
  %v511 = vadd.f32 0.0, %v510
  %512 = vmatprep.mubr.f32.mxu0 0.0
  %513 = vmatmul.mubr.f32.gmra.mrb[0].mxu0 %v309
  %v514 = vpop.f32.mrb[0].mxu0
  %v515 = vadd.f32 0.0, %v514
  %v516 = vpop.f32.mrb[0].mxu0
  %v517 = vadd.f32 0.0, %v516
  %518 = vmatprep.mubr.f32.mxu0 0.0
  %519 = vmatmul.mubr.f32.gmra.mrb[0].mxu0 %v312
  %v520 = vpop.f32.mrb[0].mxu0
  %v521 = vadd.f32 0.0, %v520
  %v522 = vpop.f32.mrb[0].mxu0
  %v523 = vadd.f32 0.0, %v522
  %524 = vmatprep.mubr.f32.mxu0 0.0
  %525 = vmatmul.mubr.f32.gmra.mrb[0].mxu0 %v315
  %v526 = vpop.f32.mrb[0].mxu0
  %v527 = vadd.f32 0.0, %v526
  %v528 = vpop.f32.mrb[0].mxu0
  %v529 = vadd.f32 0.0, %v528
  %530 = vmatprep.mubr.f32.mxu0 0.0
  %531 = vmatmul.mubr.f32.gmra.mrb[0].mxu0 %v318
  %v532 = vpop.f32.mrb[0].mxu0
  %v533 = vadd.f32 0.0, %v532
  %v534 = vpop.f32.mrb[0].mxu0
  %v535 = vadd.f32 0.0, %v534
  %536 = vmatprep.mubr.f32.mxu0 0.0
  %537 = vmatmul.mubr.f32.gmra.mrb[0].mxu0 %v321
  %v538 = vpop.f32.mrb[0].mxu0
  %v539 = vadd.f32 0.0, %v538
  %v540 = vpop.f32.mrb[0].mxu0
  %v541 = vadd.f32 0.0, %v540
  %542 = vmatprep.mubr.f32.mxu0 0.0
  %543 = vmatmul.mubr.f32.gmra.mrb[0].mxu0 %v324
  %v544 = vpop.f32.mrb[0].mxu0
  %v545 = vadd.f32 0.0, %v544
  %v546 = vpop.f32.mrb[0].mxu0
  %v547 = vadd.f32 0.0, %v546
  %548 = vmatprep.mubr.f32.mxu0 0.0
  %549 = vmatmul.mubr.f32.gmra.mrb[0].mxu0 %v327
  %v550 = vpop.f32.mrb[0].mxu0
  %v551 = vadd.f32 0.0, %v550
  %v552 = vpop.f32.mrb[0].mxu0
  %v553 = vadd.f32 0.0, %v552
  %554 = vdwg.mxu0
  %555 = vmatprep.subr.mxu0 %v30
  %556 = vmatpush1.msra.mxu0 %v29
  %557 = vmatprep.subr.mxu0 %v34
  %558 = vmatpush1.msra.mxu0 %v33
  %559 = vmatprep.subr.mxu0 %v38
  %560 = vmatpush1.msra.mxu0 %v37
  %561 = vmatprep.subr.mxu0 %v42
  %562 = vmatpush1.msra.mxu0 %v41
  %563 = vmatprep.subr.mxu0 %v46
  %564 = vmatpush1.msra.mxu0 %v45
  %565 = vmatprep.subr.mxu0 %v50
  %566 = vmatpush1.msra.mxu0 %v49
  %567 = vmatprep.subr.mxu0 %v54
  %568 = vmatpush1.msra.mxu0 %v53
  %569 = vmatprep.subr.mxu0 %v58
  %570 = vmatpush1.msra.mxu0 %v57
  %571 = vmatprep.subr.mxu0 %v62
  %572 = vmatpush1.msra.mxu0 %v61
  %573 = vmatprep.subr.mxu0 %v66
  %574 = vmatpush1.msra.mxu0 %v65
  %575 = vmatprep.subr.mxu0 %v70
  %576 = vmatpush1.msra.mxu0 %v69
  %577 = vmatprep.subr.mxu0 %v74
  %578 = vmatpush1.msra.mxu0 %v73
  %579 = vmatprep.subr.mxu0 %v78
  %580 = vmatpush1.msra.mxu0 %v77
  %581 = vmatprep.subr.mxu0 %v82
  %582 = vmatpush1.msra.mxu0 %v81
  %583 = vmatprep.subr.mxu0 %v86
  %584 = vmatpush1.msra.mxu0 %v85
  %585 = vmatprep.subr.mxu0 %v90
  %586 = vmatpush1.msra.mxu0 %v89
  %587 = vmatprep.subr.mxu0 0.0
  %588 = vmatpush1.msra.mxu0 0.0
  %589 = vmatprep.subr.mxu0 0.0
  %590 = vmatpush1.msra.mxu0 0.0
  %591 = vmatprep.subr.mxu0 0.0
  %592 = vmatpush1.msra.mxu0 0.0
  %593 = vmatprep.subr.mxu0 0.0
  %594 = vmatpush1.msra.mxu0 0.0
  %595 = vmatprep.subr.mxu0 0.0
  %596 = vmatpush1.msra.mxu0 0.0
  %597 = vmatprep.subr.mxu0 0.0
  %598 = vmatpush1.msra.mxu0 0.0
  %599 = vmatprep.subr.mxu0 0.0
  %600 = vmatpush1.msra.mxu0 0.0
  %601 = vmatprep.subr.mxu0 0.0
  %602 = vmatpush1.msra.mxu0 0.0
  %603 = vmatprep.subr.mxu0 0.0
  %604 = vmatpush1.msra.mxu0 0.0
  %605 = vmatprep.subr.mxu0 0.0
  %606 = vmatpush1.msra.mxu0 0.0
  %607 = vmatprep.subr.mxu0 0.0
  %608 = vmatpush1.msra.mxu0 0.0
  %609 = vmatprep.subr.mxu0 0.0
  %610 = vmatpush1.msra.mxu0 0.0
  %611 = vmatprep.subr.mxu0 0.0
  %612 = vmatpush1.msra.mxu0 0.0
  %613 = vmatprep.subr.mxu0 0.0
  %614 = vmatpush1.msra.mxu0 0.0
  %615 = vmatprep.subr.mxu0 0.0
  %616 = vmatpush1.msra.mxu0 0.0
  %617 = vmatprep.subr.mxu0 0.0
  %618 = vmatpush1.msra.mxu0 0.0
  %619 = vmatprep.mubr.f32.mxu0 0.0
  %620 = vmatmul.mubr.f32.gmra.mrb[0].mxu0 0.0
  %v621 = vpop.f32.mrb[0].mxu0
  %v622 = vadd.f32 0.0, %v621
  %v623 = vpop.f32.mrb[0].mxu0
  %v624 = vadd.f32 0.0, %v623
  %625 = vdwg.mxu0
  %626 = vmatprep.subr.mxu0 %v32
  %627 = vmatpush1.msra.mxu0 %v31
  %628 = vmatprep.subr.mxu0 %v36
  %629 = vmatpush1.msra.mxu0 %v35
  %630 = vmatprep.subr.mxu0 %v40
  %631 = vmatpush1.msra.mxu0 %v39
  %632 = vmatprep.subr.mxu0 %v44
  %633 = vmatpush1.msra.mxu0 %v43
  %634 = vmatprep.subr.mxu0 %v48
  %635 = vmatpush1.msra.mxu0 %v47
  %636 = vmatprep.subr.mxu0 %v52
  %637 = vmatpush1.msra.mxu0 %v51
  %638 = vmatprep.subr.mxu0 %v56
  %639 = vmatpush1.msra.mxu0 %v55
  %640 = vmatprep.subr.mxu0 %v60
  %641 = vmatpush1.msra.mxu0 %v59
  %642 = vmatprep.subr.mxu0 %v64
  %643 = vmatpush1.msra.mxu0 %v63
  %644 = vmatprep.subr.mxu0 %v68
  %645 = vmatpush1.msra.mxu0 %v67
  %646 = vmatprep.subr.mxu0 %v72
  %647 = vmatpush1.msra.mxu0 %v71
  %648 = vmatprep.subr.mxu0 %v76
  %649 = vmatpush1.msra.mxu0 %v75
  %650 = vmatprep.subr.mxu0 %v80
  %651 = vmatpush1.msra.mxu0 %v79
  %652 = vmatprep.subr.mxu0 %v84
  %653 = vmatpush1.msra.mxu0 %v83
  %654 = vmatprep.subr.mxu0 %v88
  %655 = vmatpush1.msra.mxu0 %v87
  %656 = vmatprep.subr.mxu0 %v92
  %657 = vmatpush1.msra.mxu0 %v91
  %658 = vmatprep.subr.mxu0 0.0
  %659 = vmatpush1.msra.mxu0 0.0
  %660 = vmatprep.subr.mxu0 0.0
  %661 = vmatpush1.msra.mxu0 0.0
  %662 = vmatprep.subr.mxu0 0.0
  %663 = vmatpush1.msra.mxu0 0.0
  %664 = vmatprep.subr.mxu0 0.0
  %665 = vmatpush1.msra.mxu0 0.0
  %666 = vmatprep.subr.mxu0 0.0
  %667 = vmatpush1.msra.mxu0 0.0
  %668 = vmatprep.subr.mxu0 0.0
  %669 = vmatpush1.msra.mxu0 0.0
  %670 = vmatprep.subr.mxu0 0.0
  %671 = vmatpush1.msra.mxu0 0.0
  %672 = vmatprep.subr.mxu0 0.0
  %673 = vmatpush1.msra.mxu0 0.0
  %674 = vmatprep.subr.mxu0 0.0
  %675 = vmatpush1.msra.mxu0 0.0
  %676 = vmatprep.subr.mxu0 0.0
  %677 = vmatpush1.msra.mxu0 0.0
  %678 = vmatprep.subr.mxu0 0.0
  %679 = vmatpush1.msra.mxu0 0.0
  %680 = vmatprep.subr.mxu0 0.0
  %681 = vmatpush1.msra.mxu0 0.0
  %682 = vmatprep.subr.mxu0 0.0
  %683 = vmatpush1.msra.mxu0 0.0
  %684 = vmatprep.subr.mxu0 0.0
  %685 = vmatpush1.msra.mxu0 0.0
  %686 = vmatprep.subr.mxu0 0.0
  %687 = vmatpush1.msra.mxu0 0.0
  %688 = vmatprep.subr.mxu0 0.0
  %689 = vmatpush1.msra.mxu0 0.0
  %690 = vmatprep.mubr.f32.mxu0 0.0
  %691 = vmatmul.mubr.f32.gmra.mrb[0].mxu0 0.0
  %v692 = vpop.f32.mrb[0].mxu0
  %v693 = vadd.f32 0.0, %v692
  %v694 = vpop.f32.mrb[0].mxu0
  %v695 = vadd.f32 0.0, %v694
  %696 = vdwg.mxu0
  %v697 = vadd.f32 %v396, %v622
  %v698 = vadd.f32 %v398, %v624
  %v699 = vadd.f32 %v509, %v693
  %v700 = vadd.f32 %v511, %v695
  %v701 = vadd.f32 %v697, %v98
  %v702 = vadd.f32 %v698, %v102
  %v703 = vadd.f32 %v699, %v106
  %v704 = vadd.f32 %v700, %v110
  %v705 = vxor.u32 %v701, 2147483648
  %v706 = vmul.f32 %v705, 1.442695
  %v707 = vpow.pop %v706
  %v708 = vadd.f32 %v707, 1.0
  %v709 = vrcp.pop %v708
  %v710 = vmul.f32 1.0, %v709
  %v711 = vxor.u32 %v702, 2147483648
  %v712 = vmul.f32 %v711, 1.442695
  %v713 = vpow.pop %v712
  %v714 = vadd.f32 %v713, 1.0
  %v715 = vrcp.pop %v714
  %v716 = vmul.f32 1.0, %v715
  %v717 = vtanh.pop %v703
  %v718 = vxor.u32 %v704, 2147483648
  %v719 = vmul.f32 %v718, 1.442695
  %v720 = vpow.pop %v719
  %v721 = vadd.f32 %v720, 1.0
  %v722 = vrcp.pop %v721
  %v723 = vmul.f32 1.0, %v722
  %v724 = vmul.f32 %v716, 0.0
  %v725 = vmul.f32 %v710, %v717
  %v726 = vadd.f32 %v724, %v725
  %v727 = vtanh.pop %v726
  %v728 = vmul.f32 %v723, %v727
  %729 = vmatprep.subr.mxu0 %v30
  %730 = vmatpush1.msra.mxu0 %v29
  %731 = vmatprep.subr.mxu0 %v34
  %732 = vmatpush1.msra.mxu0 %v33
  %733 = vmatprep.subr.mxu0 %v38
  %734 = vmatpush1.msra.mxu0 %v37
  %735 = vmatprep.subr.mxu0 %v42
  %736 = vmatpush1.msra.mxu0 %v41
  %737 = vmatprep.subr.mxu0 %v46
  %738 = vmatpush1.msra.mxu0 %v45
  %739 = vmatprep.subr.mxu0 %v50
  %740 = vmatpush1.msra.mxu0 %v49
  %741 = vmatprep.subr.mxu0 %v54
  %742 = vmatpush1.msra.mxu0 %v53
  %743 = vmatprep.subr.mxu0 %v58
  %744 = vmatpush1.msra.mxu0 %v57
  %745 = vmatprep.subr.mxu0 %v62
  %746 = vmatpush1.msra.mxu0 %v61
  %747 = vmatprep.subr.mxu0 %v66
  %748 = vmatpush1.msra.mxu0 %v65
  %749 = vmatprep.subr.mxu0 %v70
  %750 = vmatpush1.msra.mxu0 %v69
  %751 = vmatprep.subr.mxu0 %v74
  %752 = vmatpush1.msra.mxu0 %v73
  %753 = vmatprep.subr.mxu0 %v78
  %754 = vmatpush1.msra.mxu0 %v77
  %755 = vmatprep.subr.mxu0 %v82
  %756 = vmatpush1.msra.mxu0 %v81
  %757 = vmatprep.subr.mxu0 %v86
  %758 = vmatpush1.msra.mxu0 %v85
  %759 = vmatprep.subr.mxu0 %v90
  %760 = vmatpush1.msra.mxu0 %v89
  %761 = vmatprep.subr.mxu0 0.0
  %762 = vmatpush1.msra.mxu0 0.0
  %763 = vmatprep.subr.mxu0 0.0
  %764 = vmatpush1.msra.mxu0 0.0
  %765 = vmatprep.subr.mxu0 0.0
  %766 = vmatpush1.msra.mxu0 0.0
  %767 = vmatprep.subr.mxu0 0.0
  %768 = vmatpush1.msra.mxu0 0.0
  %769 = vmatprep.subr.mxu0 0.0
  %770 = vmatpush1.msra.mxu0 0.0
  %771 = vmatprep.subr.mxu0 0.0
  %772 = vmatpush1.msra.mxu0 0.0
  %773 = vmatprep.subr.mxu0 0.0
  %774 = vmatpush1.msra.mxu0 0.0
  %775 = vmatprep.subr.mxu0 0.0
  %776 = vmatpush1.msra.mxu0 0.0
  %777 = vmatprep.subr.mxu0 0.0
  %778 = vmatpush1.msra.mxu0 0.0
  %779 = vmatprep.subr.mxu0 0.0
  %780 = vmatpush1.msra.mxu0 0.0
  %781 = vmatprep.subr.mxu0 0.0
  %782 = vmatpush1.msra.mxu0 0.0
  %783 = vmatprep.subr.mxu0 0.0
  %784 = vmatpush1.msra.mxu0 0.0
  %785 = vmatprep.subr.mxu0 0.0
  %786 = vmatpush1.msra.mxu0 0.0
  %787 = vmatprep.subr.mxu0 0.0
  %788 = vmatpush1.msra.mxu0 0.0
  %789 = vmatprep.subr.mxu0 0.0
  %790 = vmatpush1.msra.mxu0 0.0
  %791 = vmatprep.subr.mxu0 0.0
  %792 = vmatpush1.msra.mxu0 0.0
  %793 = vmatprep.mubr.f32.mxu0 0.0
  %794 = vmatmul.mubr.f32.gmra.mrb[0].mxu0 %v728
  %v795 = vpop.f32.mrb[0].mxu0
  %v796 = vadd.f32 0.0, %v795
  %v797 = vpop.f32.mrb[0].mxu0
  %v798 = vadd.f32 0.0, %v797
  %799 = vdwg.mxu0
  %800 = vmatprep.subr.mxu0 %v32
  %801 = vmatpush1.msra.mxu0 %v31
  %802 = vmatprep.subr.mxu0 %v36
  %803 = vmatpush1.msra.mxu0 %v35
  %804 = vmatprep.subr.mxu0 %v40
  %805 = vmatpush1.msra.mxu0 %v39
  %806 = vmatprep.subr.mxu0 %v44
  %807 = vmatpush1.msra.mxu0 %v43
  %808 = vmatprep.subr.mxu0 %v48
  %809 = vmatpush1.msra.mxu0 %v47
  %810 = vmatprep.subr.mxu0 %v52
  %811 = vmatpush1.msra.mxu0 %v51
  %812 = vmatprep.subr.mxu0 %v56
  %813 = vmatpush1.msra.mxu0 %v55
  %814 = vmatprep.subr.mxu0 %v60
  %815 = vmatpush1.msra.mxu0 %v59
  %816 = vmatprep.subr.mxu0 %v64
  %817 = vmatpush1.msra.mxu0 %v63
  %818 = vmatprep.subr.mxu0 %v68
  %819 = vmatpush1.msra.mxu0 %v67
  %820 = vmatprep.subr.mxu0 %v72
  %821 = vmatpush1.msra.mxu0 %v71
  %822 = vmatprep.subr.mxu0 %v76
  %823 = vmatpush1.msra.mxu0 %v75
  %824 = vmatprep.subr.mxu0 %v80
  %825 = vmatpush1.msra.mxu0 %v79
  %826 = vmatprep.subr.mxu0 %v84
  %827 = vmatpush1.msra.mxu0 %v83
  %828 = vmatprep.subr.mxu0 %v88
  %829 = vmatpush1.msra.mxu0 %v87
  %830 = vmatprep.subr.mxu0 %v92
  %831 = vmatpush1.msra.mxu0 %v91
  %832 = vmatprep.subr.mxu0 0.0
  %833 = vmatpush1.msra.mxu0 0.0
  %834 = vmatprep.subr.mxu0 0.0
  %835 = vmatpush1.msra.mxu0 0.0
  %836 = vmatprep.subr.mxu0 0.0
  %837 = vmatpush1.msra.mxu0 0.0
  %838 = vmatprep.subr.mxu0 0.0
  %839 = vmatpush1.msra.mxu0 0.0
  %840 = vmatprep.subr.mxu0 0.0
  %841 = vmatpush1.msra.mxu0 0.0
  %842 = vmatprep.subr.mxu0 0.0
  %843 = vmatpush1.msra.mxu0 0.0
  %844 = vmatprep.subr.mxu0 0.0
  %845 = vmatpush1.msra.mxu0 0.0
  %846 = vmatprep.subr.mxu0 0.0
  %847 = vmatpush1.msra.mxu0 0.0
  %848 = vmatprep.subr.mxu0 0.0
  %849 = vmatpush1.msra.mxu0 0.0
  %850 = vmatprep.subr.mxu0 0.0
  %851 = vmatpush1.msra.mxu0 0.0
  %852 = vmatprep.subr.mxu0 0.0
  %853 = vmatpush1.msra.mxu0 0.0
  %854 = vmatprep.subr.mxu0 0.0
  %855 = vmatpush1.msra.mxu0 0.0
  %856 = vmatprep.subr.mxu0 0.0
  %857 = vmatpush1.msra.mxu0 0.0
  %858 = vmatprep.subr.mxu0 0.0
  %859 = vmatpush1.msra.mxu0 0.0
  %860 = vmatprep.subr.mxu0 0.0
  %861 = vmatpush1.msra.mxu0 0.0
  %862 = vmatprep.subr.mxu0 0.0
  %863 = vmatpush1.msra.mxu0 0.0
  %864 = vmatprep.mubr.f32.mxu0 0.0
  %865 = vmatmul.mubr.f32.gmra.mrb[0].mxu0 %v728
  %v866 = vpop.f32.mrb[0].mxu0
  %v867 = vadd.f32 0.0, %v866
  %v868 = vpop.f32.mrb[0].mxu0
  %v869 = vadd.f32 0.0, %v868
  %870 = vdwg.mxu0
  %v871 = vadd.f32 %v402, %v796
  %v872 = vadd.f32 %v404, %v798
  %v873 = vadd.f32 %v515, %v867
  %v874 = vadd.f32 %v517, %v869
  %v875 = vadd.f32 %v871, %v98
  %v876 = vadd.f32 %v872, %v102
  %v877 = vadd.f32 %v873, %v106
  %v878 = vadd.f32 %v874, %v110
  %v879 = vxor.u32 %v875, 2147483648
  %v880 = vmul.f32 %v879, 1.442695
  %v881 = vpow.pop %v880
  %v882 = vadd.f32 %v881, 1.0
  %v883 = vrcp.pop %v882
  %v884 = vmul.f32 1.0, %v883
  %v885 = vxor.u32 %v876, 2147483648
  %v886 = vmul.f32 %v885, 1.442695
  %v887 = vpow.pop %v886
  %v888 = vadd.f32 %v887, 1.0
  %v889 = vrcp.pop %v888
  %v890 = vmul.f32 1.0, %v889
  %v891 = vtanh.pop %v877
  %v892 = vxor.u32 %v878, 2147483648
  %v893 = vmul.f32 %v892, 1.442695
  %v894 = vpow.pop %v893
  %v895 = vadd.f32 %v894, 1.0
  %v896 = vrcp.pop %v895
  %v897 = vmul.f32 1.0, %v896
  %v898 = vmul.f32 %v890, %v726
  %v899 = vmul.f32 %v884, %v891
  %v900 = vadd.f32 %v898, %v899
  %v901 = vtanh.pop %v900
  %v902 = vmul.f32 %v897, %v901
  %903 = vmatprep.subr.mxu0 %v30
  %904 = vmatpush1.msra.mxu0 %v29
  %905 = vmatprep.subr.mxu0 %v34
  %906 = vmatpush1.msra.mxu0 %v33
  %907 = vmatprep.subr.mxu0 %v38
  %908 = vmatpush1.msra.mxu0 %v37
  %909 = vmatprep.subr.mxu0 %v42
  %910 = vmatpush1.msra.mxu0 %v41
  %911 = vmatprep.subr.mxu0 %v46
  %912 = vmatpush1.msra.mxu0 %v45
  %913 = vmatprep.subr.mxu0 %v50
  %914 = vmatpush1.msra.mxu0 %v49
  %915 = vmatprep.subr.mxu0 %v54
  %916 = vmatpush1.msra.mxu0 %v53
  %917 = vmatprep.subr.mxu0 %v58
  %918 = vmatpush1.msra.mxu0 %v57
  %919 = vmatprep.subr.mxu0 %v62
  %920 = vmatpush1.msra.mxu0 %v61
  %921 = vmatprep.subr.mxu0 %v66
  %922 = vmatpush1.msra.mxu0 %v65
  %923 = vmatprep.subr.mxu0 %v70
  %924 = vmatpush1.msra.mxu0 %v69
  %925 = vmatprep.subr.mxu0 %v74
  %926 = vmatpush1.msra.mxu0 %v73
  %927 = vmatprep.subr.mxu0 %v78
  %928 = vmatpush1.msra.mxu0 %v77
  %929 = vmatprep.subr.mxu0 %v82
  %930 = vmatpush1.msra.mxu0 %v81
  %931 = vmatprep.subr.mxu0 %v86
  %932 = vmatpush1.msra.mxu0 %v85
  %933 = vmatprep.subr.mxu0 %v90
  %934 = vmatpush1.msra.mxu0 %v89
  %935 = vmatprep.subr.mxu0 0.0
  %936 = vmatpush1.msra.mxu0 0.0
  %937 = vmatprep.subr.mxu0 0.0
  %938 = vmatpush1.msra.mxu0 0.0
  %939 = vmatprep.subr.mxu0 0.0
  %940 = vmatpush1.msra.mxu0 0.0
  %941 = vmatprep.subr.mxu0 0.0
  %942 = vmatpush1.msra.mxu0 0.0
  %943 = vmatprep.subr.mxu0 0.0
  %944 = vmatpush1.msra.mxu0 0.0
  %945 = vmatprep.subr.mxu0 0.0
  %946 = vmatpush1.msra.mxu0 0.0
  %947 = vmatprep.subr.mxu0 0.0
  %948 = vmatpush1.msra.mxu0 0.0
  %949 = vmatprep.subr.mxu0 0.0
  %950 = vmatpush1.msra.mxu0 0.0
  %951 = vmatprep.subr.mxu0 0.0
  %952 = vmatpush1.msra.mxu0 0.0
  %953 = vmatprep.subr.mxu0 0.0
  %954 = vmatpush1.msra.mxu0 0.0
  %955 = vmatprep.subr.mxu0 0.0
  %956 = vmatpush1.msra.mxu0 0.0
  %957 = vmatprep.subr.mxu0 0.0
  %958 = vmatpush1.msra.mxu0 0.0
  %959 = vmatprep.subr.mxu0 0.0
  %960 = vmatpush1.msra.mxu0 0.0
  %961 = vmatprep.subr.mxu0 0.0
  %962 = vmatpush1.msra.mxu0 0.0
  %963 = vmatprep.subr.mxu0 0.0
  %964 = vmatpush1.msra.mxu0 0.0
  %965 = vmatprep.subr.mxu0 0.0
  %966 = vmatpush1.msra.mxu0 0.0
  %967 = vmatprep.mubr.f32.mxu0 0.0
  %968 = vmatmul.mubr.f32.gmra.mrb[0].mxu0 %v902
  %v969 = vpop.f32.mrb[0].mxu0
  %v970 = vadd.f32 0.0, %v969
  %v971 = vpop.f32.mrb[0].mxu0
  %v972 = vadd.f32 0.0, %v971
  %973 = vdwg.mxu0
  %974 = vmatprep.subr.mxu0 %v32
  %975 = vmatpush1.msra.mxu0 %v31
  %976 = vmatprep.subr.mxu0 %v36
  %977 = vmatpush1.msra.mxu0 %v35
  %978 = vmatprep.subr.mxu0 %v40
  %979 = vmatpush1.msra.mxu0 %v39
  %980 = vmatprep.subr.mxu0 %v44
  %981 = vmatpush1.msra.mxu0 %v43
  %982 = vmatprep.subr.mxu0 %v48
  %983 = vmatpush1.msra.mxu0 %v47
  %984 = vmatprep.subr.mxu0 %v52
  %985 = vmatpush1.msra.mxu0 %v51
  %986 = vmatprep.subr.mxu0 %v56
  %987 = vmatpush1.msra.mxu0 %v55
  %988 = vmatprep.subr.mxu0 %v60
  %989 = vmatpush1.msra.mxu0 %v59
  %990 = vmatprep.subr.mxu0 %v64
  %991 = vmatpush1.msra.mxu0 %v63
  %992 = vmatprep.subr.mxu0 %v68
  %993 = vmatpush1.msra.mxu0 %v67
  %994 = vmatprep.subr.mxu0 %v72
  %995 = vmatpush1.msra.mxu0 %v71
  %996 = vmatprep.subr.mxu0 %v76
  %997 = vmatpush1.msra.mxu0 %v75
  %998 = vmatprep.subr.mxu0 %v80
  %999 = vmatpush1.msra.mxu0 %v79
  %1000 = vmatprep.subr.mxu0 %v84
  %1001 = vmatpush1.msra.mxu0 %v83
  %1002 = vmatprep.subr.mxu0 %v88
  %1003 = vmatpush1.msra.mxu0 %v87
  %1004 = vmatprep.subr.mxu0 %v92
  %1005 = vmatpush1.msra.mxu0 %v91
  %1006 = vmatprep.subr.mxu0 0.0
  %1007 = vmatpush1.msra.mxu0 0.0
  %1008 = vmatprep.subr.mxu0 0.0
  %1009 = vmatpush1.msra.mxu0 0.0
  %1010 = vmatprep.subr.mxu0 0.0
  %1011 = vmatpush1.msra.mxu0 0.0
  %1012 = vmatprep.subr.mxu0 0.0
  %1013 = vmatpush1.msra.mxu0 0.0
  %1014 = vmatprep.subr.mxu0 0.0
  %1015 = vmatpush1.msra.mxu0 0.0
  %1016 = vmatprep.subr.mxu0 0.0
  %1017 = vmatpush1.msra.mxu0 0.0
  %1018 = vmatprep.subr.mxu0 0.0
  %1019 = vmatpush1.msra.mxu0 0.0
  %1020 = vmatprep.subr.mxu0 0.0
  %1021 = vmatpush1.msra.mxu0 0.0
  %1022 = vmatprep.subr.mxu0 0.0
  %1023 = vmatpush1.msra.mxu0 0.0
  %1024 = vmatprep.subr.mxu0 0.0
  %1025 = vmatpush1.msra.mxu0 0.0
  %1026 = vmatprep.subr.mxu0 0.0
  %1027 = vmatpush1.msra.mxu0 0.0
  %1028 = vmatprep.subr.mxu0 0.0
  %1029 = vmatpush1.msra.mxu0 0.0
  %1030 = vmatprep.subr.mxu0 0.0
  %1031 = vmatpush1.msra.mxu0 0.0
  %1032 = vmatprep.subr.mxu0 0.0
  %1033 = vmatpush1.msra.mxu0 0.0
  %1034 = vmatprep.subr.mxu0 0.0
  %1035 = vmatpush1.msra.mxu0 0.0
  %1036 = vmatprep.subr.mxu0 0.0
  %1037 = vmatpush1.msra.mxu0 0.0
  %1038 = vmatprep.mubr.f32.mxu0 0.0
  %1039 = vmatmul.mubr.f32.gmra.mrb[0].mxu0 %v902
  %v1040 = vpop.f32.mrb[0].mxu0
  %v1041 = vadd.f32 0.0, %v1040
  %v1042 = vpop.f32.mrb[0].mxu0
  %v1043 = vadd.f32 0.0, %v1042
  %1044 = vdwg.mxu0
  %v1045 = vadd.f32 %v408, %v970
  %v1046 = vadd.f32 %v410, %v972
  %v1047 = vadd.f32 %v521, %v1041
  %v1048 = vadd.f32 %v523, %v1043
  %v1049 = vadd.f32 %v1045, %v98
  %v1050 = vadd.f32 %v1046, %v102
  %v1051 = vadd.f32 %v1047, %v106
  %v1052 = vadd.f32 %v1048, %v110
  %v1053 = vxor.u32 %v1049, 2147483648
  %v1054 = vmul.f32 %v1053, 1.442695
  %v1055 = vpow.pop %v1054
  %v1056 = vadd.f32 %v1055, 1.0
  %v1057 = vrcp.pop %v1056
  %v1058 = vmul.f32 1.0, %v1057
  %v1059 = vxor.u32 %v1050, 2147483648
  %v1060 = vmul.f32 %v1059, 1.442695
  %v1061 = vpow.pop %v1060
  %v1062 = vadd.f32 %v1061, 1.0
  %v1063 = vrcp.pop %v1062
  %v1064 = vmul.f32 1.0, %v1063
  %v1065 = vtanh.pop %v1051
  %v1066 = vxor.u32 %v1052, 2147483648
  %v1067 = vmul.f32 %v1066, 1.442695
  %v1068 = vpow.pop %v1067
  %v1069 = vadd.f32 %v1068, 1.0
  %v1070 = vrcp.pop %v1069
  %v1071 = vmul.f32 1.0, %v1070
  %v1072 = vmul.f32 %v1064, %v900
  %v1073 = vmul.f32 %v1058, %v1065
  %v1074 = vadd.f32 %v1072, %v1073
  %v1075 = vtanh.pop %v1074
  %v1076 = vmul.f32 %v1071, %v1075
  %1077 = vmatprep.subr.mxu0 %v30
  %1078 = vmatpush1.msra.mxu0 %v29
  %1079 = vmatprep.subr.mxu0 %v34
  %1080 = vmatpush1.msra.mxu0 %v33
  %1081 = vmatprep.subr.mxu0 %v38
  %1082 = vmatpush1.msra.mxu0 %v37
  %1083 = vmatprep.subr.mxu0 %v42
  %1084 = vmatpush1.msra.mxu0 %v41
  %1085 = vmatprep.subr.mxu0 %v46
  %1086 = vmatpush1.msra.mxu0 %v45
  %1087 = vmatprep.subr.mxu0 %v50
  %1088 = vmatpush1.msra.mxu0 %v49
  %1089 = vmatprep.subr.mxu0 %v54
  %1090 = vmatpush1.msra.mxu0 %v53
  %1091 = vmatprep.subr.mxu0 %v58
  %1092 = vmatpush1.msra.mxu0 %v57
  %1093 = vmatprep.subr.mxu0 %v62
  %1094 = vmatpush1.msra.mxu0 %v61
  %1095 = vmatprep.subr.mxu0 %v66
  %1096 = vmatpush1.msra.mxu0 %v65
  %1097 = vmatprep.subr.mxu0 %v70
  %1098 = vmatpush1.msra.mxu0 %v69
  %1099 = vmatprep.subr.mxu0 %v74
  %1100 = vmatpush1.msra.mxu0 %v73
  %1101 = vmatprep.subr.mxu0 %v78
  %1102 = vmatpush1.msra.mxu0 %v77
  %1103 = vmatprep.subr.mxu0 %v82
  %1104 = vmatpush1.msra.mxu0 %v81
  %1105 = vmatprep.subr.mxu0 %v86
  %1106 = vmatpush1.msra.mxu0 %v85
  %1107 = vmatprep.subr.mxu0 %v90
  %1108 = vmatpush1.msra.mxu0 %v89
  %1109 = vmatprep.subr.mxu0 0.0
  %1110 = vmatpush1.msra.mxu0 0.0
  %1111 = vmatprep.subr.mxu0 0.0
  %1112 = vmatpush1.msra.mxu0 0.0
  %1113 = vmatprep.subr.mxu0 0.0
  %1114 = vmatpush1.msra.mxu0 0.0
  %1115 = vmatprep.subr.mxu0 0.0
  %1116 = vmatpush1.msra.mxu0 0.0
  %1117 = vmatprep.subr.mxu0 0.0
  %1118 = vmatpush1.msra.mxu0 0.0
  %1119 = vmatprep.subr.mxu0 0.0
  %1120 = vmatpush1.msra.mxu0 0.0
  %1121 = vmatprep.subr.mxu0 0.0
  %1122 = vmatpush1.msra.mxu0 0.0
  %1123 = vmatprep.subr.mxu0 0.0
  %1124 = vmatpush1.msra.mxu0 0.0
  %1125 = vmatprep.subr.mxu0 0.0
  %1126 = vmatpush1.msra.mxu0 0.0
  %1127 = vmatprep.subr.mxu0 0.0
  %1128 = vmatpush1.msra.mxu0 0.0
  %1129 = vmatprep.subr.mxu0 0.0
  %1130 = vmatpush1.msra.mxu0 0.0
  %1131 = vmatprep.subr.mxu0 0.0
  %1132 = vmatpush1.msra.mxu0 0.0
  %1133 = vmatprep.subr.mxu0 0.0
  %1134 = vmatpush1.msra.mxu0 0.0
  %1135 = vmatprep.subr.mxu0 0.0
  %1136 = vmatpush1.msra.mxu0 0.0
  %1137 = vmatprep.subr.mxu0 0.0
  %1138 = vmatpush1.msra.mxu0 0.0
  %1139 = vmatprep.subr.mxu0 0.0
  %1140 = vmatpush1.msra.mxu0 0.0
  %1141 = vmatprep.mubr.f32.mxu0 0.0
  %1142 = vmatmul.mubr.f32.gmra.mrb[0].mxu0 %v1076
  %v1143 = vpop.f32.mrb[0].mxu0
  %v1144 = vadd.f32 0.0, %v1143
  %v1145 = vpop.f32.mrb[0].mxu0
  %v1146 = vadd.f32 0.0, %v1145
  %1147 = vdwg.mxu0
  %1148 = vmatprep.subr.mxu0 %v32
  %1149 = vmatpush1.msra.mxu0 %v31
  %1150 = vmatprep.subr.mxu0 %v36
  %1151 = vmatpush1.msra.mxu0 %v35
  %1152 = vmatprep.subr.mxu0 %v40
  %1153 = vmatpush1.msra.mxu0 %v39
  %1154 = vmatprep.subr.mxu0 %v44
  %1155 = vmatpush1.msra.mxu0 %v43
  %1156 = vmatprep.subr.mxu0 %v48
  %1157 = vmatpush1.msra.mxu0 %v47
  %1158 = vmatprep.subr.mxu0 %v52
  %1159 = vmatpush1.msra.mxu0 %v51
  %1160 = vmatprep.subr.mxu0 %v56
  %1161 = vmatpush1.msra.mxu0 %v55
  %1162 = vmatprep.subr.mxu0 %v60
  %1163 = vmatpush1.msra.mxu0 %v59
  %1164 = vmatprep.subr.mxu0 %v64
  %1165 = vmatpush1.msra.mxu0 %v63
  %1166 = vmatprep.subr.mxu0 %v68
  %1167 = vmatpush1.msra.mxu0 %v67
  %1168 = vmatprep.subr.mxu0 %v72
  %1169 = vmatpush1.msra.mxu0 %v71
  %1170 = vmatprep.subr.mxu0 %v76
  %1171 = vmatpush1.msra.mxu0 %v75
  %1172 = vmatprep.subr.mxu0 %v80
  %1173 = vmatpush1.msra.mxu0 %v79
  %1174 = vmatprep.subr.mxu0 %v84
  %1175 = vmatpush1.msra.mxu0 %v83
  %1176 = vmatprep.subr.mxu0 %v88
  %1177 = vmatpush1.msra.mxu0 %v87
  %1178 = vmatprep.subr.mxu0 %v92
  %1179 = vmatpush1.msra.mxu0 %v91
  %1180 = vmatprep.subr.mxu0 0.0
  %1181 = vmatpush1.msra.mxu0 0.0
  %1182 = vmatprep.subr.mxu0 0.0
  %1183 = vmatpush1.msra.mxu0 0.0
  %1184 = vmatprep.subr.mxu0 0.0
  %1185 = vmatpush1.msra.mxu0 0.0
  %1186 = vmatprep.subr.mxu0 0.0
  %1187 = vmatpush1.msra.mxu0 0.0
  %1188 = vmatprep.subr.mxu0 0.0
  %1189 = vmatpush1.msra.mxu0 0.0
  %1190 = vmatprep.subr.mxu0 0.0
  %1191 = vmatpush1.msra.mxu0 0.0
  %1192 = vmatprep.subr.mxu0 0.0
  %1193 = vmatpush1.msra.mxu0 0.0
  %1194 = vmatprep.subr.mxu0 0.0
  %1195 = vmatpush1.msra.mxu0 0.0
  %1196 = vmatprep.subr.mxu0 0.0
  %1197 = vmatpush1.msra.mxu0 0.0
  %1198 = vmatprep.subr.mxu0 0.0
  %1199 = vmatpush1.msra.mxu0 0.0
  %1200 = vmatprep.subr.mxu0 0.0
  %1201 = vmatpush1.msra.mxu0 0.0
  %1202 = vmatprep.subr.mxu0 0.0
  %1203 = vmatpush1.msra.mxu0 0.0
  %1204 = vmatprep.subr.mxu0 0.0
  %1205 = vmatpush1.msra.mxu0 0.0
  %1206 = vmatprep.subr.mxu0 0.0
  %1207 = vmatpush1.msra.mxu0 0.0
  %1208 = vmatprep.subr.mxu0 0.0
  %1209 = vmatpush1.msra.mxu0 0.0
  %1210 = vmatprep.subr.mxu0 0.0
  %1211 = vmatpush1.msra.mxu0 0.0
  %1212 = vmatprep.mubr.f32.mxu0 0.0
  %1213 = vmatmul.mubr.f32.gmra.mrb[0].mxu0 %v1076
  %v1214 = vpop.f32.mrb[0].mxu0
  %v1215 = vadd.f32 0.0, %v1214
  %v1216 = vpop.f32.mrb[0].mxu0
  %v1217 = vadd.f32 0.0, %v1216
  %1218 = vdwg.mxu0
  %v1219 = vadd.f32 %v414, %v1144
  %v1220 = vadd.f32 %v416, %v1146
  %v1221 = vadd.f32 %v527, %v1215
  %v1222 = vadd.f32 %v529, %v1217
  %v1223 = vadd.f32 %v1219, %v98
  %v1224 = vadd.f32 %v1220, %v102
  %v1225 = vadd.f32 %v1221, %v106
  %v1226 = vadd.f32 %v1222, %v110
  %v1227 = vxor.u32 %v1223, 2147483648
  %v1228 = vmul.f32 %v1227, 1.442695
  %v1229 = vpow.pop %v1228
  %v1230 = vadd.f32 %v1229, 1.0
  %v1231 = vrcp.pop %v1230
  %v1232 = vmul.f32 1.0, %v1231
  %v1233 = vxor.u32 %v1224, 2147483648
  %v1234 = vmul.f32 %v1233, 1.442695
  %v1235 = vpow.pop %v1234
  %v1236 = vadd.f32 %v1235, 1.0
  %v1237 = vrcp.pop %v1236
  %v1238 = vmul.f32 1.0, %v1237
  %v1239 = vtanh.pop %v1225
  %v1240 = vxor.u32 %v1226, 2147483648
  %v1241 = vmul.f32 %v1240, 1.442695
  %v1242 = vpow.pop %v1241
  %v1243 = vadd.f32 %v1242, 1.0
  %v1244 = vrcp.pop %v1243
  %v1245 = vmul.f32 1.0, %v1244
  %v1246 = vmul.f32 %v1238, %v1074
  %v1247 = vmul.f32 %v1232, %v1239
  %v1248 = vadd.f32 %v1246, %v1247
  %v1249 = vtanh.pop %v1248
  %v1250 = vmul.f32 %v1245, %v1249
  %1251 = vmatprep.subr.mxu0 %v30
  %1252 = vmatpush1.msra.mxu0 %v29
  %1253 = vmatprep.subr.mxu0 %v34
  %1254 = vmatpush1.msra.mxu0 %v33
  %1255 = vmatprep.subr.mxu0 %v38
  %1256 = vmatpush1.msra.mxu0 %v37
  %1257 = vmatprep.subr.mxu0 %v42
  %1258 = vmatpush1.msra.mxu0 %v41
  %1259 = vmatprep.subr.mxu0 %v46
  %1260 = vmatpush1.msra.mxu0 %v45
  %1261 = vmatprep.subr.mxu0 %v50
  %1262 = vmatpush1.msra.mxu0 %v49
  %1263 = vmatprep.subr.mxu0 %v54
  %1264 = vmatpush1.msra.mxu0 %v53
  %1265 = vmatprep.subr.mxu0 %v58
  %1266 = vmatpush1.msra.mxu0 %v57
  %1267 = vmatprep.subr.mxu0 %v62
  %1268 = vmatpush1.msra.mxu0 %v61
  %1269 = vmatprep.subr.mxu0 %v66
  %1270 = vmatpush1.msra.mxu0 %v65
  %1271 = vmatprep.subr.mxu0 %v70
  %1272 = vmatpush1.msra.mxu0 %v69
  %1273 = vmatprep.subr.mxu0 %v74
  %1274 = vmatpush1.msra.mxu0 %v73
  %1275 = vmatprep.subr.mxu0 %v78
  %1276 = vmatpush1.msra.mxu0 %v77
  %1277 = vmatprep.subr.mxu0 %v82
  %1278 = vmatpush1.msra.mxu0 %v81
  %1279 = vmatprep.subr.mxu0 %v86
  %1280 = vmatpush1.msra.mxu0 %v85
  %1281 = vmatprep.subr.mxu0 %v90
  %1282 = vmatpush1.msra.mxu0 %v89
  %1283 = vmatprep.subr.mxu0 0.0
  %1284 = vmatpush1.msra.mxu0 0.0
  %1285 = vmatprep.subr.mxu0 0.0
  %1286 = vmatpush1.msra.mxu0 0.0
  %1287 = vmatprep.subr.mxu0 0.0
  %1288 = vmatpush1.msra.mxu0 0.0
  %1289 = vmatprep.subr.mxu0 0.0
  %1290 = vmatpush1.msra.mxu0 0.0
  %1291 = vmatprep.subr.mxu0 0.0
  %1292 = vmatpush1.msra.mxu0 0.0
  %1293 = vmatprep.subr.mxu0 0.0
  %1294 = vmatpush1.msra.mxu0 0.0
  %1295 = vmatprep.subr.mxu0 0.0
  %1296 = vmatpush1.msra.mxu0 0.0
  %1297 = vmatprep.subr.mxu0 0.0
  %1298 = vmatpush1.msra.mxu0 0.0
  %1299 = vmatprep.subr.mxu0 0.0
  %1300 = vmatpush1.msra.mxu0 0.0
  %1301 = vmatprep.subr.mxu0 0.0
  %1302 = vmatpush1.msra.mxu0 0.0
  %1303 = vmatprep.subr.mxu0 0.0
  %1304 = vmatpush1.msra.mxu0 0.0
  %1305 = vmatprep.subr.mxu0 0.0
  %1306 = vmatpush1.msra.mxu0 0.0
  %1307 = vmatprep.subr.mxu0 0.0
  %1308 = vmatpush1.msra.mxu0 0.0
  %1309 = vmatprep.subr.mxu0 0.0
  %1310 = vmatpush1.msra.mxu0 0.0
  %1311 = vmatprep.subr.mxu0 0.0
  %1312 = vmatpush1.msra.mxu0 0.0
  %1313 = vmatprep.subr.mxu0 0.0
  %1314 = vmatpush1.msra.mxu0 0.0
  %1315 = vmatprep.mubr.f32.mxu0 0.0
  %1316 = vmatmul.mubr.f32.gmra.mrb[0].mxu0 %v1250
  %v1317 = vpop.f32.mrb[0].mxu0
  %v1318 = vadd.f32 0.0, %v1317
  %v1319 = vpop.f32.mrb[0].mxu0
  %v1320 = vadd.f32 0.0, %v1319
  %1321 = vdwg.mxu0
  %1322 = vmatprep.subr.mxu0 %v32
  %1323 = vmatpush1.msra.mxu0 %v31
  %1324 = vmatprep.subr.mxu0 %v36
  %1325 = vmatpush1.msra.mxu0 %v35
  %1326 = vmatprep.subr.mxu0 %v40
  %1327 = vmatpush1.msra.mxu0 %v39
  %1328 = vmatprep.subr.mxu0 %v44
  %1329 = vmatpush1.msra.mxu0 %v43
  %1330 = vmatprep.subr.mxu0 %v48
  %1331 = vmatpush1.msra.mxu0 %v47
  %1332 = vmatprep.subr.mxu0 %v52
  %1333 = vmatpush1.msra.mxu0 %v51
  %1334 = vmatprep.subr.mxu0 %v56
  %1335 = vmatpush1.msra.mxu0 %v55
  %1336 = vmatprep.subr.mxu0 %v60
  %1337 = vmatpush1.msra.mxu0 %v59
  %1338 = vmatprep.subr.mxu0 %v64
  %1339 = vmatpush1.msra.mxu0 %v63
  %1340 = vmatprep.subr.mxu0 %v68
  %1341 = vmatpush1.msra.mxu0 %v67
  %1342 = vmatprep.subr.mxu0 %v72
  %1343 = vmatpush1.msra.mxu0 %v71
  %1344 = vmatprep.subr.mxu0 %v76
  %1345 = vmatpush1.msra.mxu0 %v75
  %1346 = vmatprep.subr.mxu0 %v80
  %1347 = vmatpush1.msra.mxu0 %v79
  %1348 = vmatprep.subr.mxu0 %v84
  %1349 = vmatpush1.msra.mxu0 %v83
  %1350 = vmatprep.subr.mxu0 %v88
  %1351 = vmatpush1.msra.mxu0 %v87
  %1352 = vmatprep.subr.mxu0 %v92
  %1353 = vmatpush1.msra.mxu0 %v91
  %1354 = vmatprep.subr.mxu0 0.0
  %1355 = vmatpush1.msra.mxu0 0.0
  %1356 = vmatprep.subr.mxu0 0.0
  %1357 = vmatpush1.msra.mxu0 0.0
  %1358 = vmatprep.subr.mxu0 0.0
  %1359 = vmatpush1.msra.mxu0 0.0
  %1360 = vmatprep.subr.mxu0 0.0
  %1361 = vmatpush1.msra.mxu0 0.0
  %1362 = vmatprep.subr.mxu0 0.0
  %1363 = vmatpush1.msra.mxu0 0.0
  %1364 = vmatprep.subr.mxu0 0.0
  %1365 = vmatpush1.msra.mxu0 0.0
  %1366 = vmatprep.subr.mxu0 0.0
  %1367 = vmatpush1.msra.mxu0 0.0
  %1368 = vmatprep.subr.mxu0 0.0
  %1369 = vmatpush1.msra.mxu0 0.0
  %1370 = vmatprep.subr.mxu0 0.0
  %1371 = vmatpush1.msra.mxu0 0.0
  %1372 = vmatprep.subr.mxu0 0.0
  %1373 = vmatpush1.msra.mxu0 0.0
  %1374 = vmatprep.subr.mxu0 0.0
  %1375 = vmatpush1.msra.mxu0 0.0
  %1376 = vmatprep.subr.mxu0 0.0
  %1377 = vmatpush1.msra.mxu0 0.0
  %1378 = vmatprep.subr.mxu0 0.0
  %1379 = vmatpush1.msra.mxu0 0.0
  %1380 = vmatprep.subr.mxu0 0.0
  %1381 = vmatpush1.msra.mxu0 0.0
  %1382 = vmatprep.subr.mxu0 0.0
  %1383 = vmatpush1.msra.mxu0 0.0
  %1384 = vmatprep.subr.mxu0 0.0
  %1385 = vmatpush1.msra.mxu0 0.0
  %1386 = vmatprep.mubr.f32.mxu0 0.0
  %1387 = vmatmul.mubr.f32.gmra.mrb[0].mxu0 %v1250
  %v1388 = vpop.f32.mrb[0].mxu0
  %v1389 = vadd.f32 0.0, %v1388
  %v1390 = vpop.f32.mrb[0].mxu0
  %v1391 = vadd.f32 0.0, %v1390
  %1392 = vdwg.mxu0
  %v1393 = vadd.f32 %v420, %v1318
  %v1394 = vadd.f32 %v422, %v1320
  %v1395 = vadd.f32 %v533, %v1389
  %v1396 = vadd.f32 %v535, %v1391
  %v1397 = vadd.f32 %v1393, %v98
  %v1398 = vadd.f32 %v1394, %v102
  %v1399 = vadd.f32 %v1395, %v106
  %v1400 = vadd.f32 %v1396, %v110
  %v1401 = vxor.u32 %v1397, 2147483648
  %v1402 = vmul.f32 %v1401, 1.442695
  %v1403 = vpow.pop %v1402
  %v1404 = vadd.f32 %v1403, 1.0
  %v1405 = vrcp.pop %v1404
  %v1406 = vmul.f32 1.0, %v1405
  %v1407 = vxor.u32 %v1398, 2147483648
  %v1408 = vmul.f32 %v1407, 1.442695
  %v1409 = vpow.pop %v1408
  %v1410 = vadd.f32 %v1409, 1.0
  %v1411 = vrcp.pop %v1410
  %v1412 = vmul.f32 1.0, %v1411
  %v1413 = vtanh.pop %v1399
  %v1414 = vxor.u32 %v1400, 2147483648
  %v1415 = vmul.f32 %v1414, 1.442695
  %v1416 = vpow.pop %v1415
  %v1417 = vadd.f32 %v1416, 1.0
  %v1418 = vrcp.pop %v1417
  %v1419 = vmul.f32 1.0, %v1418
  %v1420 = vmul.f32 %v1412, %v1248
  %v1421 = vmul.f32 %v1406, %v1413
  %v1422 = vadd.f32 %v1420, %v1421
  %v1423 = vtanh.pop %v1422
  %v1424 = vmul.f32 %v1419, %v1423
  %1425 = vmatprep.subr.mxu0 %v30
  %1426 = vmatpush1.msra.mxu0 %v29
  %1427 = vmatprep.subr.mxu0 %v34
  %1428 = vmatpush1.msra.mxu0 %v33
  %1429 = vmatprep.subr.mxu0 %v38
  %1430 = vmatpush1.msra.mxu0 %v37
  %1431 = vmatprep.subr.mxu0 %v42
  %1432 = vmatpush1.msra.mxu0 %v41
  %1433 = vmatprep.subr.mxu0 %v46
  %1434 = vmatpush1.msra.mxu0 %v45
  %1435 = vmatprep.subr.mxu0 %v50
  %1436 = vmatpush1.msra.mxu0 %v49
  %1437 = vmatprep.subr.mxu0 %v54
  %1438 = vmatpush1.msra.mxu0 %v53
  %1439 = vmatprep.subr.mxu0 %v58
  %1440 = vmatpush1.msra.mxu0 %v57
  %1441 = vmatprep.subr.mxu0 %v62
  %1442 = vmatpush1.msra.mxu0 %v61
  %1443 = vmatprep.subr.mxu0 %v66
  %1444 = vmatpush1.msra.mxu0 %v65
  %1445 = vmatprep.subr.mxu0 %v70
  %1446 = vmatpush1.msra.mxu0 %v69
  %1447 = vmatprep.subr.mxu0 %v74
  %1448 = vmatpush1.msra.mxu0 %v73
  %1449 = vmatprep.subr.mxu0 %v78
  %1450 = vmatpush1.msra.mxu0 %v77
  %1451 = vmatprep.subr.mxu0 %v82
  %1452 = vmatpush1.msra.mxu0 %v81
  %1453 = vmatprep.subr.mxu0 %v86
  %1454 = vmatpush1.msra.mxu0 %v85
  %1455 = vmatprep.subr.mxu0 %v90
  %1456 = vmatpush1.msra.mxu0 %v89
  %1457 = vmatprep.subr.mxu0 0.0
  %1458 = vmatpush1.msra.mxu0 0.0
  %1459 = vmatprep.subr.mxu0 0.0
  %1460 = vmatpush1.msra.mxu0 0.0
  %1461 = vmatprep.subr.mxu0 0.0
  %1462 = vmatpush1.msra.mxu0 0.0
  %1463 = vmatprep.subr.mxu0 0.0
  %1464 = vmatpush1.msra.mxu0 0.0
  %1465 = vmatprep.subr.mxu0 0.0
  %1466 = vmatpush1.msra.mxu0 0.0
  %1467 = vmatprep.subr.mxu0 0.0
  %1468 = vmatpush1.msra.mxu0 0.0
  %1469 = vmatprep.subr.mxu0 0.0
  %1470 = vmatpush1.msra.mxu0 0.0
  %1471 = vmatprep.subr.mxu0 0.0
  %1472 = vmatpush1.msra.mxu0 0.0
  %1473 = vmatprep.subr.mxu0 0.0
  %1474 = vmatpush1.msra.mxu0 0.0
  %1475 = vmatprep.subr.mxu0 0.0
  %1476 = vmatpush1.msra.mxu0 0.0
  %1477 = vmatprep.subr.mxu0 0.0
  %1478 = vmatpush1.msra.mxu0 0.0
  %1479 = vmatprep.subr.mxu0 0.0
  %1480 = vmatpush1.msra.mxu0 0.0
  %1481 = vmatprep.subr.mxu0 0.0
  %1482 = vmatpush1.msra.mxu0 0.0
  %1483 = vmatprep.subr.mxu0 0.0
  %1484 = vmatpush1.msra.mxu0 0.0
  %1485 = vmatprep.subr.mxu0 0.0
  %1486 = vmatpush1.msra.mxu0 0.0
  %1487 = vmatprep.subr.mxu0 0.0
  %1488 = vmatpush1.msra.mxu0 0.0
  %1489 = vmatprep.mubr.f32.mxu0 0.0
  %1490 = vmatmul.mubr.f32.gmra.mrb[0].mxu0 %v1424
  %v1491 = vpop.f32.mrb[0].mxu0
  %v1492 = vadd.f32 0.0, %v1491
  %v1493 = vpop.f32.mrb[0].mxu0
  %v1494 = vadd.f32 0.0, %v1493
  %1495 = vdwg.mxu0
  %1496 = vmatprep.subr.mxu0 %v32
  %1497 = vmatpush1.msra.mxu0 %v31
  %1498 = vmatprep.subr.mxu0 %v36
  %1499 = vmatpush1.msra.mxu0 %v35
  %1500 = vmatprep.subr.mxu0 %v40
  %1501 = vmatpush1.msra.mxu0 %v39
  %1502 = vmatprep.subr.mxu0 %v44
  %1503 = vmatpush1.msra.mxu0 %v43
  %1504 = vmatprep.subr.mxu0 %v48
  %1505 = vmatpush1.msra.mxu0 %v47
  %1506 = vmatprep.subr.mxu0 %v52
  %1507 = vmatpush1.msra.mxu0 %v51
  %1508 = vmatprep.subr.mxu0 %v56
  %1509 = vmatpush1.msra.mxu0 %v55
  %1510 = vmatprep.subr.mxu0 %v60
  %1511 = vmatpush1.msra.mxu0 %v59
  %1512 = vmatprep.subr.mxu0 %v64
  %1513 = vmatpush1.msra.mxu0 %v63
  %1514 = vmatprep.subr.mxu0 %v68
  %1515 = vmatpush1.msra.mxu0 %v67
  %1516 = vmatprep.subr.mxu0 %v72
  %1517 = vmatpush1.msra.mxu0 %v71
  %1518 = vmatprep.subr.mxu0 %v76
  %1519 = vmatpush1.msra.mxu0 %v75
  %1520 = vmatprep.subr.mxu0 %v80
  %1521 = vmatpush1.msra.mxu0 %v79
  %1522 = vmatprep.subr.mxu0 %v84
  %1523 = vmatpush1.msra.mxu0 %v83
  %1524 = vmatprep.subr.mxu0 %v88
  %1525 = vmatpush1.msra.mxu0 %v87
  %1526 = vmatprep.subr.mxu0 %v92
  %1527 = vmatpush1.msra.mxu0 %v91
  %1528 = vmatprep.subr.mxu0 0.0
  %1529 = vmatpush1.msra.mxu0 0.0
  %1530 = vmatprep.subr.mxu0 0.0
  %1531 = vmatpush1.msra.mxu0 0.0
  %1532 = vmatprep.subr.mxu0 0.0
  %1533 = vmatpush1.msra.mxu0 0.0
  %1534 = vmatprep.subr.mxu0 0.0
  %1535 = vmatpush1.msra.mxu0 0.0
  %1536 = vmatprep.subr.mxu0 0.0
  %1537 = vmatpush1.msra.mxu0 0.0
  %1538 = vmatprep.subr.mxu0 0.0
  %1539 = vmatpush1.msra.mxu0 0.0
  %1540 = vmatprep.subr.mxu0 0.0
  %1541 = vmatpush1.msra.mxu0 0.0
  %1542 = vmatprep.subr.mxu0 0.0
  %1543 = vmatpush1.msra.mxu0 0.0
  %1544 = vmatprep.subr.mxu0 0.0
  %1545 = vmatpush1.msra.mxu0 0.0
  %1546 = vmatprep.subr.mxu0 0.0
  %1547 = vmatpush1.msra.mxu0 0.0
  %1548 = vmatprep.subr.mxu0 0.0
  %1549 = vmatpush1.msra.mxu0 0.0
  %1550 = vmatprep.subr.mxu0 0.0
  %1551 = vmatpush1.msra.mxu0 0.0
  %1552 = vmatprep.subr.mxu0 0.0
  %1553 = vmatpush1.msra.mxu0 0.0
  %1554 = vmatprep.subr.mxu0 0.0
  %1555 = vmatpush1.msra.mxu0 0.0
  %1556 = vmatprep.subr.mxu0 0.0
  %1557 = vmatpush1.msra.mxu0 0.0
  %1558 = vmatprep.subr.mxu0 0.0
  %1559 = vmatpush1.msra.mxu0 0.0
  %1560 = vmatprep.mubr.f32.mxu0 0.0
  %1561 = vmatmul.mubr.f32.gmra.mrb[0].mxu0 %v1424
  %v1562 = vpop.f32.mrb[0].mxu0
  %v1563 = vadd.f32 0.0, %v1562
  %v1564 = vpop.f32.mrb[0].mxu0
  %v1565 = vadd.f32 0.0, %v1564
  %1566 = vdwg.mxu0
  %v1567 = vadd.f32 %v426, %v1492
  %v1568 = vadd.f32 %v428, %v1494
  %v1569 = vadd.f32 %v539, %v1563
  %v1570 = vadd.f32 %v541, %v1565
  %v1571 = vadd.f32 %v1567, %v98
  %v1572 = vadd.f32 %v1568, %v102
  %v1573 = vadd.f32 %v1569, %v106
  %v1574 = vadd.f32 %v1570, %v110
  %v1575 = vxor.u32 %v1571, 2147483648
  %v1576 = vmul.f32 %v1575, 1.442695
  %v1577 = vpow.pop %v1576
  %v1578 = vadd.f32 %v1577, 1.0
  %v1579 = vrcp.pop %v1578
  %v1580 = vmul.f32 1.0, %v1579
  %v1581 = vxor.u32 %v1572, 2147483648
  %v1582 = vmul.f32 %v1581, 1.442695
  %v1583 = vpow.pop %v1582
  %v1584 = vadd.f32 %v1583, 1.0
  %v1585 = vrcp.pop %v1584
  %v1586 = vmul.f32 1.0, %v1585
  %v1587 = vtanh.pop %v1573
  %v1588 = vxor.u32 %v1574, 2147483648
  %v1589 = vmul.f32 %v1588, 1.442695
  %v1590 = vpow.pop %v1589
  %v1591 = vadd.f32 %v1590, 1.0
  %v1592 = vrcp.pop %v1591
  %v1593 = vmul.f32 1.0, %v1592
  %v1594 = vmul.f32 %v1586, %v1422
  %v1595 = vmul.f32 %v1580, %v1587
  %v1596 = vadd.f32 %v1594, %v1595
  %v1597 = vtanh.pop %v1596
  %v1598 = vmul.f32 %v1593, %v1597
  %1599 = vmatprep.subr.mxu0 %v30
  %1600 = vmatpush1.msra.mxu0 %v29
  %1601 = vmatprep.subr.mxu0 %v34
  %1602 = vmatpush1.msra.mxu0 %v33
  %1603 = vmatprep.subr.mxu0 %v38
  %1604 = vmatpush1.msra.mxu0 %v37
  %1605 = vmatprep.subr.mxu0 %v42
  %1606 = vmatpush1.msra.mxu0 %v41
  %1607 = vmatprep.subr.mxu0 %v46
  %1608 = vmatpush1.msra.mxu0 %v45
  %1609 = vmatprep.subr.mxu0 %v50
  %1610 = vmatpush1.msra.mxu0 %v49
  %1611 = vmatprep.subr.mxu0 %v54
  %1612 = vmatpush1.msra.mxu0 %v53
  %1613 = vmatprep.subr.mxu0 %v58
  %1614 = vmatpush1.msra.mxu0 %v57
  %1615 = vmatprep.subr.mxu0 %v62
  %1616 = vmatpush1.msra.mxu0 %v61
  %1617 = vmatprep.subr.mxu0 %v66
  %1618 = vmatpush1.msra.mxu0 %v65
  %1619 = vmatprep.subr.mxu0 %v70
  %1620 = vmatpush1.msra.mxu0 %v69
  %1621 = vmatprep.subr.mxu0 %v74
  %1622 = vmatpush1.msra.mxu0 %v73
  %1623 = vmatprep.subr.mxu0 %v78
  %1624 = vmatpush1.msra.mxu0 %v77
  %1625 = vmatprep.subr.mxu0 %v82
  %1626 = vmatpush1.msra.mxu0 %v81
  %1627 = vmatprep.subr.mxu0 %v86
  %1628 = vmatpush1.msra.mxu0 %v85
  %1629 = vmatprep.subr.mxu0 %v90
  %1630 = vmatpush1.msra.mxu0 %v89
  %1631 = vmatprep.subr.mxu0 0.0
  %1632 = vmatpush1.msra.mxu0 0.0
  %1633 = vmatprep.subr.mxu0 0.0
  %1634 = vmatpush1.msra.mxu0 0.0
  %1635 = vmatprep.subr.mxu0 0.0
  %1636 = vmatpush1.msra.mxu0 0.0
  %1637 = vmatprep.subr.mxu0 0.0
  %1638 = vmatpush1.msra.mxu0 0.0
  %1639 = vmatprep.subr.mxu0 0.0
  %1640 = vmatpush1.msra.mxu0 0.0
  %1641 = vmatprep.subr.mxu0 0.0
  %1642 = vmatpush1.msra.mxu0 0.0
  %1643 = vmatprep.subr.mxu0 0.0
  %1644 = vmatpush1.msra.mxu0 0.0
  %1645 = vmatprep.subr.mxu0 0.0
  %1646 = vmatpush1.msra.mxu0 0.0
  %1647 = vmatprep.subr.mxu0 0.0
  %1648 = vmatpush1.msra.mxu0 0.0
  %1649 = vmatprep.subr.mxu0 0.0
  %1650 = vmatpush1.msra.mxu0 0.0
  %1651 = vmatprep.subr.mxu0 0.0
  %1652 = vmatpush1.msra.mxu0 0.0
  %1653 = vmatprep.subr.mxu0 0.0
  %1654 = vmatpush1.msra.mxu0 0.0
  %1655 = vmatprep.subr.mxu0 0.0
  %1656 = vmatpush1.msra.mxu0 0.0
  %1657 = vmatprep.subr.mxu0 0.0
  %1658 = vmatpush1.msra.mxu0 0.0
  %1659 = vmatprep.subr.mxu0 0.0
  %1660 = vmatpush1.msra.mxu0 0.0
  %1661 = vmatprep.subr.mxu0 0.0
  %1662 = vmatpush1.msra.mxu0 0.0
  %1663 = vmatprep.mubr.f32.mxu0 0.0
  %1664 = vmatmul.mubr.f32.gmra.mrb[0].mxu0 %v1598
  %v1665 = vpop.f32.mrb[0].mxu0
  %v1666 = vadd.f32 0.0, %v1665
  %v1667 = vpop.f32.mrb[0].mxu0
  %v1668 = vadd.f32 0.0, %v1667
  %1669 = vdwg.mxu0
  %1670 = vmatprep.subr.mxu0 %v32
  %1671 = vmatpush1.msra.mxu0 %v31
  %1672 = vmatprep.subr.mxu0 %v36
  %1673 = vmatpush1.msra.mxu0 %v35
  %1674 = vmatprep.subr.mxu0 %v40
  %1675 = vmatpush1.msra.mxu0 %v39
  %1676 = vmatprep.subr.mxu0 %v44
  %1677 = vmatpush1.msra.mxu0 %v43
  %1678 = vmatprep.subr.mxu0 %v48
  %1679 = vmatpush1.msra.mxu0 %v47
  %1680 = vmatprep.subr.mxu0 %v52
  %1681 = vmatpush1.msra.mxu0 %v51
  %1682 = vmatprep.subr.mxu0 %v56
  %1683 = vmatpush1.msra.mxu0 %v55
  %1684 = vmatprep.subr.mxu0 %v60
  %1685 = vmatpush1.msra.mxu0 %v59
  %1686 = vmatprep.subr.mxu0 %v64
  %1687 = vmatpush1.msra.mxu0 %v63
  %1688 = vmatprep.subr.mxu0 %v68
  %1689 = vmatpush1.msra.mxu0 %v67
  %1690 = vmatprep.subr.mxu0 %v72
  %1691 = vmatpush1.msra.mxu0 %v71
  %1692 = vmatprep.subr.mxu0 %v76
  %1693 = vmatpush1.msra.mxu0 %v75
  %1694 = vmatprep.subr.mxu0 %v80
  %1695 = vmatpush1.msra.mxu0 %v79
  %1696 = vmatprep.subr.mxu0 %v84
  %1697 = vmatpush1.msra.mxu0 %v83
  %1698 = vmatprep.subr.mxu0 %v88
  %1699 = vmatpush1.msra.mxu0 %v87
  %1700 = vmatprep.subr.mxu0 %v92
  %1701 = vmatpush1.msra.mxu0 %v91
  %1702 = vmatprep.subr.mxu0 0.0
  %1703 = vmatpush1.msra.mxu0 0.0
  %1704 = vmatprep.subr.mxu0 0.0
  %1705 = vmatpush1.msra.mxu0 0.0
  %1706 = vmatprep.subr.mxu0 0.0
  %1707 = vmatpush1.msra.mxu0 0.0
  %1708 = vmatprep.subr.mxu0 0.0
  %1709 = vmatpush1.msra.mxu0 0.0
  %1710 = vmatprep.subr.mxu0 0.0
  %1711 = vmatpush1.msra.mxu0 0.0
  %1712 = vmatprep.subr.mxu0 0.0
  %1713 = vmatpush1.msra.mxu0 0.0
  %1714 = vmatprep.subr.mxu0 0.0
  %1715 = vmatpush1.msra.mxu0 0.0
  %1716 = vmatprep.subr.mxu0 0.0
  %1717 = vmatpush1.msra.mxu0 0.0
  %1718 = vmatprep.subr.mxu0 0.0
  %1719 = vmatpush1.msra.mxu0 0.0
  %1720 = vmatprep.subr.mxu0 0.0
  %1721 = vmatpush1.msra.mxu0 0.0
  %1722 = vmatprep.subr.mxu0 0.0
  %1723 = vmatpush1.msra.mxu0 0.0
  %1724 = vmatprep.subr.mxu0 0.0
  %1725 = vmatpush1.msra.mxu0 0.0
  %1726 = vmatprep.subr.mxu0 0.0
  %1727 = vmatpush1.msra.mxu0 0.0
  %1728 = vmatprep.subr.mxu0 0.0
  %1729 = vmatpush1.msra.mxu0 0.0
  %1730 = vmatprep.subr.mxu0 0.0
  %1731 = vmatpush1.msra.mxu0 0.0
  %1732 = vmatprep.subr.mxu0 0.0
  %1733 = vmatpush1.msra.mxu0 0.0
  %1734 = vmatprep.mubr.f32.mxu0 0.0
  %1735 = vmatmul.mubr.f32.gmra.mrb[0].mxu0 %v1598
  %v1736 = vpop.f32.mrb[0].mxu0
  %v1737 = vadd.f32 0.0, %v1736
  %v1738 = vpop.f32.mrb[0].mxu0
  %v1739 = vadd.f32 0.0, %v1738
  %1740 = vdwg.mxu0
  %v1741 = vadd.f32 %v432, %v1666
  %v1742 = vadd.f32 %v434, %v1668
  %v1743 = vadd.f32 %v545, %v1737
  %v1744 = vadd.f32 %v547, %v1739
  %v1745 = vadd.f32 %v1741, %v98
  %v1746 = vadd.f32 %v1742, %v102
  %v1747 = vadd.f32 %v1743, %v106
  %v1748 = vadd.f32 %v1744, %v110
  %v1749 = vxor.u32 %v1745, 2147483648
  %v1750 = vmul.f32 %v1749, 1.442695
  %v1751 = vpow.pop %v1750
  %v1752 = vadd.f32 %v1751, 1.0
  %v1753 = vrcp.pop %v1752
  %v1754 = vmul.f32 1.0, %v1753
  %v1755 = vxor.u32 %v1746, 2147483648
  %v1756 = vmul.f32 %v1755, 1.442695
  %v1757 = vpow.pop %v1756
  %v1758 = vadd.f32 %v1757, 1.0
  %v1759 = vrcp.pop %v1758
  %v1760 = vmul.f32 1.0, %v1759
  %v1761 = vtanh.pop %v1747
  %v1762 = vxor.u32 %v1748, 2147483648
  %v1763 = vmul.f32 %v1762, 1.442695
  %v1764 = vpow.pop %v1763
  %v1765 = vadd.f32 %v1764, 1.0
  %v1766 = vrcp.pop %v1765
  %v1767 = vmul.f32 1.0, %v1766
  %v1768 = vmul.f32 %v1760, %v1596
  %v1769 = vmul.f32 %v1754, %v1761
  %v1770 = vadd.f32 %v1768, %v1769
  %v1771 = vtanh.pop %v1770
  %v1772 = vmul.f32 %v1767, %v1771
  %1773 = vmatprep.subr.mxu0 %v30
  %1774 = vmatpush1.msra.mxu0 %v29
  %1775 = vmatprep.subr.mxu0 %v34
  %1776 = vmatpush1.msra.mxu0 %v33
  %1777 = vmatprep.subr.mxu0 %v38
  %1778 = vmatpush1.msra.mxu0 %v37
  %1779 = vmatprep.subr.mxu0 %v42
  %1780 = vmatpush1.msra.mxu0 %v41
  %1781 = vmatprep.subr.mxu0 %v46
  %1782 = vmatpush1.msra.mxu0 %v45
  %1783 = vmatprep.subr.mxu0 %v50
  %1784 = vmatpush1.msra.mxu0 %v49
  %1785 = vmatprep.subr.mxu0 %v54
  %1786 = vmatpush1.msra.mxu0 %v53
  %1787 = vmatprep.subr.mxu0 %v58
  %1788 = vmatpush1.msra.mxu0 %v57
  %1789 = vmatprep.subr.mxu0 %v62
  %1790 = vmatpush1.msra.mxu0 %v61
  %1791 = vmatprep.subr.mxu0 %v66
  %1792 = vmatpush1.msra.mxu0 %v65
  %1793 = vmatprep.subr.mxu0 %v70
  %1794 = vmatpush1.msra.mxu0 %v69
  %1795 = vmatprep.subr.mxu0 %v74
  %1796 = vmatpush1.msra.mxu0 %v73
  %1797 = vmatprep.subr.mxu0 %v78
  %1798 = vmatpush1.msra.mxu0 %v77
  %1799 = vmatprep.subr.mxu0 %v82
  %1800 = vmatpush1.msra.mxu0 %v81
  %1801 = vmatprep.subr.mxu0 %v86
  %1802 = vmatpush1.msra.mxu0 %v85
  %1803 = vmatprep.subr.mxu0 %v90
  %1804 = vmatpush1.msra.mxu0 %v89
  %1805 = vmatprep.subr.mxu0 0.0
  %1806 = vmatpush1.msra.mxu0 0.0
  %1807 = vmatprep.subr.mxu0 0.0
  %1808 = vmatpush1.msra.mxu0 0.0
  %1809 = vmatprep.subr.mxu0 0.0
  %1810 = vmatpush1.msra.mxu0 0.0
  %1811 = vmatprep.subr.mxu0 0.0
  %1812 = vmatpush1.msra.mxu0 0.0
  %1813 = vmatprep.subr.mxu0 0.0
  %1814 = vmatpush1.msra.mxu0 0.0
  %1815 = vmatprep.subr.mxu0 0.0
  %1816 = vmatpush1.msra.mxu0 0.0
  %1817 = vmatprep.subr.mxu0 0.0
  %1818 = vmatpush1.msra.mxu0 0.0
  %1819 = vmatprep.subr.mxu0 0.0
  %1820 = vmatpush1.msra.mxu0 0.0
  %1821 = vmatprep.subr.mxu0 0.0
  %1822 = vmatpush1.msra.mxu0 0.0
  %1823 = vmatprep.subr.mxu0 0.0
  %1824 = vmatpush1.msra.mxu0 0.0
  %1825 = vmatprep.subr.mxu0 0.0
  %1826 = vmatpush1.msra.mxu0 0.0
  %1827 = vmatprep.subr.mxu0 0.0
  %1828 = vmatpush1.msra.mxu0 0.0
  %1829 = vmatprep.subr.mxu0 0.0
  %1830 = vmatpush1.msra.mxu0 0.0
  %1831 = vmatprep.subr.mxu0 0.0
  %1832 = vmatpush1.msra.mxu0 0.0
  %1833 = vmatprep.subr.mxu0 0.0
  %1834 = vmatpush1.msra.mxu0 0.0
  %1835 = vmatprep.subr.mxu0 0.0
  %1836 = vmatpush1.msra.mxu0 0.0
  %1837 = vmatprep.mubr.f32.mxu0 0.0
  %1838 = vmatmul.mubr.f32.gmra.mrb[0].mxu0 %v1772
  %v1839 = vpop.f32.mrb[0].mxu0
  %v1840 = vadd.f32 0.0, %v1839
  %v1841 = vpop.f32.mrb[0].mxu0
  %v1842 = vadd.f32 0.0, %v1841
  %1843 = vdwg.mxu0
  %1844 = vmatprep.subr.mxu0 %v32
  %1845 = vmatpush1.msra.mxu0 %v31
  %1846 = vmatprep.subr.mxu0 %v36
  %1847 = vmatpush1.msra.mxu0 %v35
  %1848 = vmatprep.subr.mxu0 %v40
  %1849 = vmatpush1.msra.mxu0 %v39
  %1850 = vmatprep.subr.mxu0 %v44
  %1851 = vmatpush1.msra.mxu0 %v43
  %1852 = vmatprep.subr.mxu0 %v48
  %1853 = vmatpush1.msra.mxu0 %v47
  %1854 = vmatprep.subr.mxu0 %v52
  %1855 = vmatpush1.msra.mxu0 %v51
  %1856 = vmatprep.subr.mxu0 %v56
  %1857 = vmatpush1.msra.mxu0 %v55
  %1858 = vmatprep.subr.mxu0 %v60
  %1859 = vmatpush1.msra.mxu0 %v59
  %1860 = vmatprep.subr.mxu0 %v64
  %1861 = vmatpush1.msra.mxu0 %v63
  %1862 = vmatprep.subr.mxu0 %v68
  %1863 = vmatpush1.msra.mxu0 %v67
  %1864 = vmatprep.subr.mxu0 %v72
  %1865 = vmatpush1.msra.mxu0 %v71
  %1866 = vmatprep.subr.mxu0 %v76
  %1867 = vmatpush1.msra.mxu0 %v75
  %1868 = vmatprep.subr.mxu0 %v80
  %1869 = vmatpush1.msra.mxu0 %v79
  %1870 = vmatprep.subr.mxu0 %v84
  %1871 = vmatpush1.msra.mxu0 %v83
  %1872 = vmatprep.subr.mxu0 %v88
  %1873 = vmatpush1.msra.mxu0 %v87
  %1874 = vmatprep.subr.mxu0 %v92
  %1875 = vmatpush1.msra.mxu0 %v91
  %1876 = vmatprep.subr.mxu0 0.0
  %1877 = vmatpush1.msra.mxu0 0.0
  %1878 = vmatprep.subr.mxu0 0.0
  %1879 = vmatpush1.msra.mxu0 0.0
  %1880 = vmatprep.subr.mxu0 0.0
  %1881 = vmatpush1.msra.mxu0 0.0
  %1882 = vmatprep.subr.mxu0 0.0
  %1883 = vmatpush1.msra.mxu0 0.0
  %1884 = vmatprep.subr.mxu0 0.0
  %1885 = vmatpush1.msra.mxu0 0.0
  %1886 = vmatprep.subr.mxu0 0.0
  %1887 = vmatpush1.msra.mxu0 0.0
  %1888 = vmatprep.subr.mxu0 0.0
  %1889 = vmatpush1.msra.mxu0 0.0
  %1890 = vmatprep.subr.mxu0 0.0
  %1891 = vmatpush1.msra.mxu0 0.0
  %1892 = vmatprep.subr.mxu0 0.0
  %1893 = vmatpush1.msra.mxu0 0.0
  %1894 = vmatprep.subr.mxu0 0.0
  %1895 = vmatpush1.msra.mxu0 0.0
  %1896 = vmatprep.subr.mxu0 0.0
  %1897 = vmatpush1.msra.mxu0 0.0
  %1898 = vmatprep.subr.mxu0 0.0
  %1899 = vmatpush1.msra.mxu0 0.0
  %1900 = vmatprep.subr.mxu0 0.0
  %1901 = vmatpush1.msra.mxu0 0.0
  %1902 = vmatprep.subr.mxu0 0.0
  %1903 = vmatpush1.msra.mxu0 0.0
  %1904 = vmatprep.subr.mxu0 0.0
  %1905 = vmatpush1.msra.mxu0 0.0
  %1906 = vmatprep.subr.mxu0 0.0
  %1907 = vmatpush1.msra.mxu0 0.0
  %1908 = vmatprep.mubr.f32.mxu0 0.0
  %1909 = vmatmul.mubr.f32.gmra.mrb[0].mxu0 %v1772
  %v1910 = vpop.f32.mrb[0].mxu0
  %v1911 = vadd.f32 0.0, %v1910
  %v1912 = vpop.f32.mrb[0].mxu0
  %v1913 = vadd.f32 0.0, %v1912
  %1914 = vdwg.mxu0
  %v1915 = vadd.f32 %v438, %v1840
  %v1916 = vadd.f32 %v440, %v1842
  %v1917 = vadd.f32 %v551, %v1911
  %v1918 = vadd.f32 %v553, %v1913
  %v1919 = vadd.f32 %v1915, %v98
  %v1920 = vadd.f32 %v1916, %v102
  %v1921 = vadd.f32 %v1917, %v106
  %v1922 = vadd.f32 %v1918, %v110
  %v1923 = vxor.u32 %v1919, 2147483648
  %v1924 = vmul.f32 %v1923, 1.442695
  %v1925 = vpow.pop %v1924
  %v1926 = vadd.f32 %v1925, 1.0
  %v1927 = vrcp.pop %v1926
  %v1928 = vmul.f32 1.0, %v1927
  %v1929 = vxor.u32 %v1920, 2147483648
  %v1930 = vmul.f32 %v1929, 1.442695
  %v1931 = vpow.pop %v1930
  %v1932 = vadd.f32 %v1931, 1.0
  %v1933 = vrcp.pop %v1932
  %v1934 = vmul.f32 1.0, %v1933
  %v1935 = vtanh.pop %v1921
  %v1936 = vxor.u32 %v1922, 2147483648
  %v1937 = vmul.f32 %v1936, 1.442695
  %v1938 = vpow.pop %v1937
  %v1939 = vadd.f32 %v1938, 1.0
  %v1940 = vrcp.pop %v1939
  %v1941 = vmul.f32 1.0, %v1940
  %v1942 = vmul.f32 %v1934, %v1770
  %v1943 = vmul.f32 %v1928, %v1935
  %v1944 = vadd.f32 %v1942, %v1943
  %v1945 = vtanh.pop %v1944
  %v1946 = vmul.f32 %v1941, %v1945
  %1947 = vmatprep.subr.mxu0 %v116
  %1948 = vmatpush1.msra.mxu0 %v115
  %1949 = vmatprep.subr.mxu0 %v120
  %1950 = vmatpush1.msra.mxu0 %v119
  %1951 = vmatprep.subr.mxu0 %v124
  %1952 = vmatpush1.msra.mxu0 %v123
  %1953 = vmatprep.subr.mxu0 %v128
  %1954 = vmatpush1.msra.mxu0 %v127
  %1955 = vmatprep.subr.mxu0 %v132
  %1956 = vmatpush1.msra.mxu0 %v131
  %1957 = vmatprep.subr.mxu0 %v136
  %1958 = vmatpush1.msra.mxu0 %v135
  %1959 = vmatprep.subr.mxu0 %v140
  %1960 = vmatpush1.msra.mxu0 %v139
  %1961 = vmatprep.subr.mxu0 %v144
  %1962 = vmatpush1.msra.mxu0 %v143
  %1963 = vmatprep.subr.mxu0 %v148
  %1964 = vmatpush1.msra.mxu0 %v147
  %1965 = vmatprep.subr.mxu0 %v152
  %1966 = vmatpush1.msra.mxu0 %v151
  %1967 = vmatprep.subr.mxu0 %v156
  %1968 = vmatpush1.msra.mxu0 %v155
  %1969 = vmatprep.subr.mxu0 %v160
  %1970 = vmatpush1.msra.mxu0 %v159
  %1971 = vmatprep.subr.mxu0 %v164
  %1972 = vmatpush1.msra.mxu0 %v163
  %1973 = vmatprep.subr.mxu0 %v168
  %1974 = vmatpush1.msra.mxu0 %v167
  %1975 = vmatprep.subr.mxu0 %v172
  %1976 = vmatpush1.msra.mxu0 %v171
  %1977 = vmatprep.subr.mxu0 %v176
  %1978 = vmatpush1.msra.mxu0 %v175
  %1979 = vmatprep.subr.mxu0 %v180
  %1980 = vmatpush1.msra.mxu0 %v179
  %1981 = vmatprep.subr.mxu0 %v184
  %1982 = vmatpush1.msra.mxu0 %v183
  %1983 = vmatprep.subr.mxu0 %v188
  %1984 = vmatpush1.msra.mxu0 %v187
  %1985 = vmatprep.subr.mxu0 %v192
  %1986 = vmatpush1.msra.mxu0 %v191
  %1987 = vmatprep.subr.mxu0 %v196
  %1988 = vmatpush1.msra.mxu0 %v195
  %1989 = vmatprep.subr.mxu0 %v200
  %1990 = vmatpush1.msra.mxu0 %v199
  %1991 = vmatprep.subr.mxu0 %v204
  %1992 = vmatpush1.msra.mxu0 %v203
  %1993 = vmatprep.subr.mxu0 %v208
  %1994 = vmatpush1.msra.mxu0 %v207
  %1995 = vmatprep.subr.mxu0 %v212
  %1996 = vmatpush1.msra.mxu0 %v211
  %1997 = vmatprep.subr.mxu0 %v216
  %1998 = vmatpush1.msra.mxu0 %v215
  %1999 = vmatprep.subr.mxu0 %v220
  %2000 = vmatpush1.msra.mxu0 %v219
  %2001 = vmatprep.subr.mxu0 %v224
  %2002 = vmatpush1.msra.mxu0 %v223
  %2003 = vmatprep.subr.mxu0 %v228
  %2004 = vmatpush1.msra.mxu0 %v227
  %2005 = vmatprep.subr.mxu0 %v232
  %2006 = vmatpush1.msra.mxu0 %v231
  %2007 = vmatprep.subr.mxu0 %v236
  %2008 = vmatpush1.msra.mxu0 %v235
  %2009 = vmatprep.subr.mxu0 %v240
  %2010 = vmatpush1.msra.mxu0 %v239
  %2011 = vmatprep.mubr.f32.mxu0 %v1946
  %2012 = vmatmul.mubr.f32.gmra.mrb[0].mxu0 0.0
  %v2013 = vpop.f32.mrb[0].mxu0
  %v2014 = vadd.f32 %v248, %v2013
  %v2015 = vpop.f32.mrb[0].mxu0
  %v2016 = vadd.f32 %v252, %v2015
  %2017 = vdwg.mxu0
  %2018 = vmatprep.subr.mxu0 %v118
  %2019 = vmatpush1.msra.mxu0 %v117
  %2020 = vmatprep.subr.mxu0 %v122
  %2021 = vmatpush1.msra.mxu0 %v121
  %2022 = vmatprep.subr.mxu0 %v126
  %2023 = vmatpush1.msra.mxu0 %v125
  %2024 = vmatprep.subr.mxu0 %v130
  %2025 = vmatpush1.msra.mxu0 %v129
  %2026 = vmatprep.subr.mxu0 %v134
  %2027 = vmatpush1.msra.mxu0 %v133
  %2028 = vmatprep.subr.mxu0 %v138
  %2029 = vmatpush1.msra.mxu0 %v137
  %2030 = vmatprep.subr.mxu0 %v142
  %2031 = vmatpush1.msra.mxu0 %v141
  %2032 = vmatprep.subr.mxu0 %v146
  %2033 = vmatpush1.msra.mxu0 %v145
  %2034 = vmatprep.subr.mxu0 %v150
  %2035 = vmatpush1.msra.mxu0 %v149
  %2036 = vmatprep.subr.mxu0 %v154
  %2037 = vmatpush1.msra.mxu0 %v153
  %2038 = vmatprep.subr.mxu0 %v158
  %2039 = vmatpush1.msra.mxu0 %v157
  %2040 = vmatprep.subr.mxu0 %v162
  %2041 = vmatpush1.msra.mxu0 %v161
  %2042 = vmatprep.subr.mxu0 %v166
  %2043 = vmatpush1.msra.mxu0 %v165
  %2044 = vmatprep.subr.mxu0 %v170
  %2045 = vmatpush1.msra.mxu0 %v169
  %2046 = vmatprep.subr.mxu0 %v174
  %2047 = vmatpush1.msra.mxu0 %v173
  %2048 = vmatprep.subr.mxu0 %v178
  %2049 = vmatpush1.msra.mxu0 %v177
  %2050 = vmatprep.subr.mxu0 %v182
  %2051 = vmatpush1.msra.mxu0 %v181
  %2052 = vmatprep.subr.mxu0 %v186
  %2053 = vmatpush1.msra.mxu0 %v185
  %2054 = vmatprep.subr.mxu0 %v190
  %2055 = vmatpush1.msra.mxu0 %v189
  %2056 = vmatprep.subr.mxu0 %v194
  %2057 = vmatpush1.msra.mxu0 %v193
  %2058 = vmatprep.subr.mxu0 %v198
  %2059 = vmatpush1.msra.mxu0 %v197
  %2060 = vmatprep.subr.mxu0 %v202
  %2061 = vmatpush1.msra.mxu0 %v201
  %2062 = vmatprep.subr.mxu0 %v206
  %2063 = vmatpush1.msra.mxu0 %v205
  %2064 = vmatprep.subr.mxu0 %v210
  %2065 = vmatpush1.msra.mxu0 %v209
  %2066 = vmatprep.subr.mxu0 %v214
  %2067 = vmatpush1.msra.mxu0 %v213
  %2068 = vmatprep.subr.mxu0 %v218
  %2069 = vmatpush1.msra.mxu0 %v217
  %2070 = vmatprep.subr.mxu0 %v222
  %2071 = vmatpush1.msra.mxu0 %v221
  %2072 = vmatprep.subr.mxu0 %v226
  %2073 = vmatpush1.msra.mxu0 %v225
  %2074 = vmatprep.subr.mxu0 %v230
  %2075 = vmatpush1.msra.mxu0 %v229
  %2076 = vmatprep.subr.mxu0 %v234
  %2077 = vmatpush1.msra.mxu0 %v233
  %2078 = vmatprep.subr.mxu0 %v238
  %2079 = vmatpush1.msra.mxu0 %v237
  %2080 = vmatprep.subr.mxu0 %v242
  %2081 = vmatpush1.msra.mxu0 %v241
  %2082 = vmatprep.mubr.f32.mxu0 %v1946
  %2083 = vmatmul.mubr.f32.gmra.mrb[0].mxu0 0.0
  %v2084 = vpop.f32.mrb[0].mxu0
  %v2085 = vadd.f32 %v256, %v2084
  %v2086 = vpop.f32.mrb[0].mxu0
  %v2087 = vadd.f32 %v260, %v2086
  %2088 = vdwg.mxu0
  %v2089 = vxor.u32 %v2014, 2147483648
  %v2090 = vmul.f32 %v2089, 1.442695
  %v2091 = vpow.pop %v2090
  %v2092 = vadd.f32 %v2091, 1.0
  %v2093 = vrcp.pop %v2092
  %v2094 = vmul.f32 1.0, %v2093
  %v2095 = vxor.u32 %v2016, 2147483648
  %v2096 = vmul.f32 %v2095, 1.442695
  %v2097 = vpow.pop %v2096
  %v2098 = vadd.f32 %v2097, 1.0
  %v2099 = vrcp.pop %v2098
  %v2100 = vmul.f32 1.0, %v2099
  %v2101 = vtanh.pop %v2085
  %v2102 = vxor.u32 %v2087, 2147483648
  %v2103 = vmul.f32 %v2102, 1.442695
  %v2104 = vpow.pop %v2103
  %v2105 = vadd.f32 %v2104, 1.0
  %v2106 = vrcp.pop %v2105
  %v2107 = vmul.f32 1.0, %v2106
  %v2108 = vmul.f32 %v2100, %v1944
  %v2109 = vmul.f32 %v2094, %v2101
  %v2110 = vadd.f32 %v2108, %v2109
  %v2111 = vtanh.pop %v2110
  %v2112 = vmul.f32 %v2107, %v2111
  %2113 = vmatprep.subr.mxu0 0.0
  %2114 = vmatpush1.msra.mxu0 %v265
  %2115 = vmatprep.subr.mxu0 0.0
  %2116 = vmatpush1.msra.mxu0 %v266
  %2117 = vmatprep.subr.mxu0 0.0
  %2118 = vmatpush1.msra.mxu0 %v267
  %2119 = vmatprep.subr.mxu0 0.0
  %2120 = vmatpush1.msra.mxu0 %v268
  %2121 = vmatprep.subr.mxu0 0.0
  %2122 = vmatpush1.msra.mxu0 %v269
  %2123 = vmatprep.subr.mxu0 0.0
  %2124 = vmatpush1.msra.mxu0 %v270
  %2125 = vmatprep.subr.mxu0 0.0
  %2126 = vmatpush1.msra.mxu0 %v271
  %2127 = vmatprep.subr.mxu0 0.0
  %2128 = vmatpush1.msra.mxu0 %v272
  %2129 = vmatprep.subr.mxu0 0.0
  %2130 = vmatpush1.msra.mxu0 %v273
  %2131 = vmatprep.subr.mxu0 0.0
  %2132 = vmatpush1.msra.mxu0 %v274
  %2133 = vmatprep.subr.mxu0 0.0
  %2134 = vmatpush1.msra.mxu0 %v275
  %2135 = vmatprep.subr.mxu0 0.0
  %2136 = vmatpush1.msra.mxu0 %v276
  %2137 = vmatprep.subr.mxu0 0.0
  %2138 = vmatpush1.msra.mxu0 %v277
  %2139 = vmatprep.subr.mxu0 0.0
  %2140 = vmatpush1.msra.mxu0 %v278
  %2141 = vmatprep.subr.mxu0 0.0
  %2142 = vmatpush1.msra.mxu0 %v279
  %2143 = vmatprep.subr.mxu0 0.0
  %2144 = vmatpush1.msra.mxu0 %v280
  %2145 = vmatprep.subr.mxu0 0.0
  %2146 = vmatpush1.msra.mxu0 0.0
  %2147 = vmatprep.subr.mxu0 0.0
  %2148 = vmatpush1.msra.mxu0 0.0
  %2149 = vmatprep.subr.mxu0 0.0
  %2150 = vmatpush1.msra.mxu0 0.0
  %2151 = vmatprep.subr.mxu0 0.0
  %2152 = vmatpush1.msra.mxu0 0.0
  %2153 = vmatprep.subr.mxu0 0.0
  %2154 = vmatpush1.msra.mxu0 0.0
  %2155 = vmatprep.subr.mxu0 0.0
  %2156 = vmatpush1.msra.mxu0 0.0
  %2157 = vmatprep.subr.mxu0 0.0
  %2158 = vmatpush1.msra.mxu0 0.0
  %2159 = vmatprep.subr.mxu0 0.0
  %2160 = vmatpush1.msra.mxu0 0.0
  %2161 = vmatprep.subr.mxu0 0.0
  %2162 = vmatpush1.msra.mxu0 0.0
  %2163 = vmatprep.subr.mxu0 0.0
  %2164 = vmatpush1.msra.mxu0 0.0
  %2165 = vmatprep.subr.mxu0 0.0
  %2166 = vmatpush1.msra.mxu0 0.0
  %2167 = vmatprep.subr.mxu0 0.0
  %2168 = vmatpush1.msra.mxu0 0.0
  %2169 = vmatprep.subr.mxu0 0.0
  %2170 = vmatpush1.msra.mxu0 0.0
  %2171 = vmatprep.subr.mxu0 0.0
  %2172 = vmatpush1.msra.mxu0 0.0
  %2173 = vmatprep.subr.mxu0 0.0
  %2174 = vmatpush1.msra.mxu0 0.0
  %2175 = vmatprep.subr.mxu0 0.0
  %2176 = vmatpush1.msra.mxu0 0.0
  %2177 = vmatprep.mubr.f32.mxu0 0.0
  %2178 = vmatmul.mubr.f32.gmra.mrb[0].mxu0 %v2112
  %v2179 = vpop.f32.mrb[0].mxu0
  %v2180 = vadd.f32 %v286, %v2179
  %v2181 = vpop.f32.mrb[0].mxu0
  %2182 = vdwg.mxu0
  %2183 = vst [vmem:[%s8] sm:$0xff] %v2180
  %2184 = vmatprep.subr.mxu0 %v116
  %2185 = vmatpush1.msra.mxu0 %v115
  %2186 = vmatprep.subr.mxu0 %v120
  %2187 = vmatpush1.msra.mxu0 %v119
  %2188 = vmatprep.subr.mxu0 %v124
  %2189 = vmatpush1.msra.mxu0 %v123
  %2190 = vmatprep.subr.mxu0 %v128
  %2191 = vmatpush1.msra.mxu0 %v127
  %2192 = vmatprep.subr.mxu0 %v132
  %2193 = vmatpush1.msra.mxu0 %v131
  %2194 = vmatprep.subr.mxu0 %v136
  %2195 = vmatpush1.msra.mxu0 %v135
  %2196 = vmatprep.subr.mxu0 %v140
  %2197 = vmatpush1.msra.mxu0 %v139
  %2198 = vmatprep.subr.mxu0 %v144
  %2199 = vmatpush1.msra.mxu0 %v143
  %2200 = vmatprep.subr.mxu0 %v148
  %2201 = vmatpush1.msra.mxu0 %v147
  %2202 = vmatprep.subr.mxu0 %v152
  %2203 = vmatpush1.msra.mxu0 %v151
  %2204 = vmatprep.subr.mxu0 %v156
  %2205 = vmatpush1.msra.mxu0 %v155
  %2206 = vmatprep.subr.mxu0 %v160
  %2207 = vmatpush1.msra.mxu0 %v159
  %2208 = vmatprep.subr.mxu0 %v164
  %2209 = vmatpush1.msra.mxu0 %v163
  %2210 = vmatprep.subr.mxu0 %v168
  %2211 = vmatpush1.msra.mxu0 %v167
  %2212 = vmatprep.subr.mxu0 %v172
  %2213 = vmatpush1.msra.mxu0 %v171
  %2214 = vmatprep.subr.mxu0 %v176
  %2215 = vmatpush1.msra.mxu0 %v175
  %2216 = vmatprep.subr.mxu0 %v180
  %2217 = vmatpush1.msra.mxu0 %v179
  %2218 = vmatprep.subr.mxu0 %v184
  %2219 = vmatpush1.msra.mxu0 %v183
  %2220 = vmatprep.subr.mxu0 %v188
  %2221 = vmatpush1.msra.mxu0 %v187
  %2222 = vmatprep.subr.mxu0 %v192
  %2223 = vmatpush1.msra.mxu0 %v191
  %2224 = vmatprep.subr.mxu0 %v196
  %2225 = vmatpush1.msra.mxu0 %v195
  %2226 = vmatprep.subr.mxu0 %v200
  %2227 = vmatpush1.msra.mxu0 %v199
  %2228 = vmatprep.subr.mxu0 %v204
  %2229 = vmatpush1.msra.mxu0 %v203
  %2230 = vmatprep.subr.mxu0 %v208
  %2231 = vmatpush1.msra.mxu0 %v207
  %2232 = vmatprep.subr.mxu0 %v212
  %2233 = vmatpush1.msra.mxu0 %v211
  %2234 = vmatprep.subr.mxu0 %v216
  %2235 = vmatpush1.msra.mxu0 %v215
  %2236 = vmatprep.subr.mxu0 %v220
  %2237 = vmatpush1.msra.mxu0 %v219
  %2238 = vmatprep.subr.mxu0 %v224
  %2239 = vmatpush1.msra.mxu0 %v223
  %2240 = vmatprep.subr.mxu0 %v228
  %2241 = vmatpush1.msra.mxu0 %v227
  %2242 = vmatprep.subr.mxu0 %v232
  %2243 = vmatpush1.msra.mxu0 %v231
  %2244 = vmatprep.subr.mxu0 %v236
  %2245 = vmatpush1.msra.mxu0 %v235
  %2246 = vmatprep.subr.mxu0 %v240
  %2247 = vmatpush1.msra.mxu0 %v239
  %2248 = vmatprep.mubr.f32.mxu0 %v2112
  %2249 = vmatmul.mubr.f32.gmra.mrb[0].mxu0 %v2180
  %v2250 = vpop.f32.mrb[0].mxu0
  %v2251 = vadd.f32 %v248, %v2250
  %v2252 = vpop.f32.mrb[0].mxu0
  %v2253 = vadd.f32 %v252, %v2252
  %2254 = vdwg.mxu0
  %2255 = vmatprep.subr.mxu0 %v118
  %2256 = vmatpush1.msra.mxu0 %v117
  %2257 = vmatprep.subr.mxu0 %v122
  %2258 = vmatpush1.msra.mxu0 %v121
  %2259 = vmatprep.subr.mxu0 %v126
  %2260 = vmatpush1.msra.mxu0 %v125
  %2261 = vmatprep.subr.mxu0 %v130
  %2262 = vmatpush1.msra.mxu0 %v129
  %2263 = vmatprep.subr.mxu0 %v134
  %2264 = vmatpush1.msra.mxu0 %v133
  %2265 = vmatprep.subr.mxu0 %v138
  %2266 = vmatpush1.msra.mxu0 %v137
  %2267 = vmatprep.subr.mxu0 %v142
  %2268 = vmatpush1.msra.mxu0 %v141
  %2269 = vmatprep.subr.mxu0 %v146
  %2270 = vmatpush1.msra.mxu0 %v145
  %2271 = vmatprep.subr.mxu0 %v150
  %2272 = vmatpush1.msra.mxu0 %v149
  %2273 = vmatprep.subr.mxu0 %v154
  %2274 = vmatpush1.msra.mxu0 %v153
  %2275 = vmatprep.subr.mxu0 %v158
  %2276 = vmatpush1.msra.mxu0 %v157
  %2277 = vmatprep.subr.mxu0 %v162
  %2278 = vmatpush1.msra.mxu0 %v161
  %2279 = vmatprep.subr.mxu0 %v166
  %2280 = vmatpush1.msra.mxu0 %v165
  %2281 = vmatprep.subr.mxu0 %v170
  %2282 = vmatpush1.msra.mxu0 %v169
  %2283 = vmatprep.subr.mxu0 %v174
  %2284 = vmatpush1.msra.mxu0 %v173
  %2285 = vmatprep.subr.mxu0 %v178
  %2286 = vmatpush1.msra.mxu0 %v177
  %2287 = vmatprep.subr.mxu0 %v182
  %2288 = vmatpush1.msra.mxu0 %v181
  %2289 = vmatprep.subr.mxu0 %v186
  %2290 = vmatpush1.msra.mxu0 %v185
  %2291 = vmatprep.subr.mxu0 %v190
  %2292 = vmatpush1.msra.mxu0 %v189
  %2293 = vmatprep.subr.mxu0 %v194
  %2294 = vmatpush1.msra.mxu0 %v193
  %2295 = vmatprep.subr.mxu0 %v198
  %2296 = vmatpush1.msra.mxu0 %v197
  %2297 = vmatprep.subr.mxu0 %v202
  %2298 = vmatpush1.msra.mxu0 %v201
  %2299 = vmatprep.subr.mxu0 %v206
  %2300 = vmatpush1.msra.mxu0 %v205
  %2301 = vmatprep.subr.mxu0 %v210
  %2302 = vmatpush1.msra.mxu0 %v209
  %2303 = vmatprep.subr.mxu0 %v214
  %2304 = vmatpush1.msra.mxu0 %v213
  %2305 = vmatprep.subr.mxu0 %v218
  %2306 = vmatpush1.msra.mxu0 %v217
  %2307 = vmatprep.subr.mxu0 %v222
  %2308 = vmatpush1.msra.mxu0 %v221
  %2309 = vmatprep.subr.mxu0 %v226
  %2310 = vmatpush1.msra.mxu0 %v225
  %2311 = vmatprep.subr.mxu0 %v230
  %2312 = vmatpush1.msra.mxu0 %v229
  %2313 = vmatprep.subr.mxu0 %v234
  %2314 = vmatpush1.msra.mxu0 %v233
  %2315 = vmatprep.subr.mxu0 %v238
  %2316 = vmatpush1.msra.mxu0 %v237
  %2317 = vmatprep.subr.mxu0 %v242
  %2318 = vmatpush1.msra.mxu0 %v241
  %2319 = vmatprep.mubr.f32.mxu0 %v2112
  %2320 = vmatmul.mubr.f32.gmra.mrb[0].mxu0 %v2180
  %v2321 = vpop.f32.mrb[0].mxu0
  %v2322 = vadd.f32 %v256, %v2321
  %v2323 = vpop.f32.mrb[0].mxu0
  %v2324 = vadd.f32 %v260, %v2323
  %2325 = vdwg.mxu0
  %v2326 = vxor.u32 %v2251, 2147483648
  %v2327 = vmul.f32 %v2326, 1.442695
  %v2328 = vpow.pop %v2327
  %v2329 = vadd.f32 %v2328, 1.0
  %v2330 = vrcp.pop %v2329
  %v2331 = vmul.f32 1.0, %v2330
  %v2332 = vxor.u32 %v2253, 2147483648
  %v2333 = vmul.f32 %v2332, 1.442695
  %v2334 = vpow.pop %v2333
  %v2335 = vadd.f32 %v2334, 1.0
  %v2336 = vrcp.pop %v2335
  %v2337 = vmul.f32 1.0, %v2336
  %v2338 = vtanh.pop %v2322
  %v2339 = vxor.u32 %v2324, 2147483648
  %v2340 = vmul.f32 %v2339, 1.442695
  %v2341 = vpow.pop %v2340
  %v2342 = vadd.f32 %v2341, 1.0
  %v2343 = vrcp.pop %v2342
  %v2344 = vmul.f32 1.0, %v2343
  %v2345 = vmul.f32 %v2337, %v2110
  %v2346 = vmul.f32 %v2331, %v2338
  %v2347 = vadd.f32 %v2345, %v2346
  %v2348 = vtanh.pop %v2347
  %v2349 = vmul.f32 %v2344, %v2348
  %2350 = vmatprep.subr.mxu0 0.0
  %2351 = vmatpush1.msra.mxu0 %v265
  %2352 = vmatprep.subr.mxu0 0.0
  %2353 = vmatpush1.msra.mxu0 %v266
  %2354 = vmatprep.subr.mxu0 0.0
  %2355 = vmatpush1.msra.mxu0 %v267
  %2356 = vmatprep.subr.mxu0 0.0
  %2357 = vmatpush1.msra.mxu0 %v268
  %2358 = vmatprep.subr.mxu0 0.0
  %2359 = vmatpush1.msra.mxu0 %v269
  %2360 = vmatprep.subr.mxu0 0.0
  %2361 = vmatpush1.msra.mxu0 %v270
  %2362 = vmatprep.subr.mxu0 0.0
  %2363 = vmatpush1.msra.mxu0 %v271
  %2364 = vmatprep.subr.mxu0 0.0
  %2365 = vmatpush1.msra.mxu0 %v272
  %2366 = vmatprep.subr.mxu0 0.0
  %2367 = vmatpush1.msra.mxu0 %v273
  %2368 = vmatprep.subr.mxu0 0.0
  %2369 = vmatpush1.msra.mxu0 %v274
  %2370 = vmatprep.subr.mxu0 0.0
  %2371 = vmatpush1.msra.mxu0 %v275
  %2372 = vmatprep.subr.mxu0 0.0
  %2373 = vmatpush1.msra.mxu0 %v276
  %2374 = vmatprep.subr.mxu0 0.0
  %2375 = vmatpush1.msra.mxu0 %v277
  %2376 = vmatprep.subr.mxu0 0.0
  %2377 = vmatpush1.msra.mxu0 %v278
  %2378 = vmatprep.subr.mxu0 0.0
  %2379 = vmatpush1.msra.mxu0 %v279
  %2380 = vmatprep.subr.mxu0 0.0
  %2381 = vmatpush1.msra.mxu0 %v280
  %2382 = vmatprep.subr.mxu0 0.0
  %2383 = vmatpush1.msra.mxu0 0.0
  %2384 = vmatprep.subr.mxu0 0.0
  %2385 = vmatpush1.msra.mxu0 0.0
  %2386 = vmatprep.subr.mxu0 0.0
  %2387 = vmatpush1.msra.mxu0 0.0
  %2388 = vmatprep.subr.mxu0 0.0
  %2389 = vmatpush1.msra.mxu0 0.0
  %2390 = vmatprep.subr.mxu0 0.0
  %2391 = vmatpush1.msra.mxu0 0.0
  %2392 = vmatprep.subr.mxu0 0.0
  %2393 = vmatpush1.msra.mxu0 0.0
  %2394 = vmatprep.subr.mxu0 0.0
  %2395 = vmatpush1.msra.mxu0 0.0
  %2396 = vmatprep.subr.mxu0 0.0
  %2397 = vmatpush1.msra.mxu0 0.0
  %2398 = vmatprep.subr.mxu0 0.0
  %2399 = vmatpush1.msra.mxu0 0.0
  %2400 = vmatprep.subr.mxu0 0.0
  %2401 = vmatpush1.msra.mxu0 0.0
  %2402 = vmatprep.subr.mxu0 0.0
  %2403 = vmatpush1.msra.mxu0 0.0
  %2404 = vmatprep.subr.mxu0 0.0
  %2405 = vmatpush1.msra.mxu0 0.0
  %2406 = vmatprep.subr.mxu0 0.0
  %2407 = vmatpush1.msra.mxu0 0.0
  %2408 = vmatprep.subr.mxu0 0.0
  %2409 = vmatpush1.msra.mxu0 0.0
  %2410 = vmatprep.subr.mxu0 0.0
  %2411 = vmatpush1.msra.mxu0 0.0
  %2412 = vmatprep.subr.mxu0 0.0
  %2413 = vmatpush1.msra.mxu0 0.0
  %2414 = vmatprep.mubr.f32.mxu0 0.0
  %2415 = vmatmul.mubr.f32.gmra.mrb[0].mxu0 %v2349
  %v2416 = vpop.f32.mrb[0].mxu0
  %v2417 = vadd.f32 %v286, %v2416
  %v2418 = vpop.f32.mrb[0].mxu0
  %2419 = vdwg.mxu0
  %s2420 = scalar_lea.vmem %s8, 8
  %2421 = vst [vmem:[%s2420] sm:$0xff] %v2417
  %2422 = vmatprep.subr.mxu0 %v116
  %2423 = vmatpush1.msra.mxu0 %v115
  %2424 = vmatprep.subr.mxu0 %v120
  %2425 = vmatpush1.msra.mxu0 %v119
  %2426 = vmatprep.subr.mxu0 %v124
  %2427 = vmatpush1.msra.mxu0 %v123
  %2428 = vmatprep.subr.mxu0 %v128
  %2429 = vmatpush1.msra.mxu0 %v127
  %2430 = vmatprep.subr.mxu0 %v132
  %2431 = vmatpush1.msra.mxu0 %v131
  %2432 = vmatprep.subr.mxu0 %v136
  %2433 = vmatpush1.msra.mxu0 %v135
  %2434 = vmatprep.subr.mxu0 %v140
  %2435 = vmatpush1.msra.mxu0 %v139
  %2436 = vmatprep.subr.mxu0 %v144
  %2437 = vmatpush1.msra.mxu0 %v143
  %2438 = vmatprep.subr.mxu0 %v148
  %2439 = vmatpush1.msra.mxu0 %v147
  %2440 = vmatprep.subr.mxu0 %v152
  %2441 = vmatpush1.msra.mxu0 %v151
  %2442 = vmatprep.subr.mxu0 %v156
  %2443 = vmatpush1.msra.mxu0 %v155
  %2444 = vmatprep.subr.mxu0 %v160
  %2445 = vmatpush1.msra.mxu0 %v159
  %2446 = vmatprep.subr.mxu0 %v164
  %2447 = vmatpush1.msra.mxu0 %v163
  %2448 = vmatprep.subr.mxu0 %v168
  %2449 = vmatpush1.msra.mxu0 %v167
  %2450 = vmatprep.subr.mxu0 %v172
  %2451 = vmatpush1.msra.mxu0 %v171
  %2452 = vmatprep.subr.mxu0 %v176
  %2453 = vmatpush1.msra.mxu0 %v175
  %2454 = vmatprep.subr.mxu0 %v180
  %2455 = vmatpush1.msra.mxu0 %v179
  %2456 = vmatprep.subr.mxu0 %v184
  %2457 = vmatpush1.msra.mxu0 %v183
  %2458 = vmatprep.subr.mxu0 %v188
  %2459 = vmatpush1.msra.mxu0 %v187
  %2460 = vmatprep.subr.mxu0 %v192
  %2461 = vmatpush1.msra.mxu0 %v191
  %2462 = vmatprep.subr.mxu0 %v196
  %2463 = vmatpush1.msra.mxu0 %v195
  %2464 = vmatprep.subr.mxu0 %v200
  %2465 = vmatpush1.msra.mxu0 %v199
  %2466 = vmatprep.subr.mxu0 %v204
  %2467 = vmatpush1.msra.mxu0 %v203
  %2468 = vmatprep.subr.mxu0 %v208
  %2469 = vmatpush1.msra.mxu0 %v207
  %2470 = vmatprep.subr.mxu0 %v212
  %2471 = vmatpush1.msra.mxu0 %v211
  %2472 = vmatprep.subr.mxu0 %v216
  %2473 = vmatpush1.msra.mxu0 %v215
  %2474 = vmatprep.subr.mxu0 %v220
  %2475 = vmatpush1.msra.mxu0 %v219
  %2476 = vmatprep.subr.mxu0 %v224
  %2477 = vmatpush1.msra.mxu0 %v223
  %2478 = vmatprep.subr.mxu0 %v228
  %2479 = vmatpush1.msra.mxu0 %v227
  %2480 = vmatprep.subr.mxu0 %v232
  %2481 = vmatpush1.msra.mxu0 %v231
  %2482 = vmatprep.subr.mxu0 %v236
  %2483 = vmatpush1.msra.mxu0 %v235
  %2484 = vmatprep.subr.mxu0 %v240
  %2485 = vmatpush1.msra.mxu0 %v239
  %2486 = vmatprep.mubr.f32.mxu0 %v2349
  %2487 = vmatmul.mubr.f32.gmra.mrb[0].mxu0 %v2417
  %v2488 = vpop.f32.mrb[0].mxu0
  %v2489 = vadd.f32 %v248, %v2488
  %v2490 = vpop.f32.mrb[0].mxu0
  %v2491 = vadd.f32 %v252, %v2490
  %2492 = vdwg.mxu0
  %2493 = vmatprep.subr.mxu0 %v118
  %2494 = vmatpush1.msra.mxu0 %v117
  %2495 = vmatprep.subr.mxu0 %v122
  %2496 = vmatpush1.msra.mxu0 %v121
  %2497 = vmatprep.subr.mxu0 %v126
  %2498 = vmatpush1.msra.mxu0 %v125
  %2499 = vmatprep.subr.mxu0 %v130
  %2500 = vmatpush1.msra.mxu0 %v129
  %2501 = vmatprep.subr.mxu0 %v134
  %2502 = vmatpush1.msra.mxu0 %v133
  %2503 = vmatprep.subr.mxu0 %v138
  %2504 = vmatpush1.msra.mxu0 %v137
  %2505 = vmatprep.subr.mxu0 %v142
  %2506 = vmatpush1.msra.mxu0 %v141
  %2507 = vmatprep.subr.mxu0 %v146
  %2508 = vmatpush1.msra.mxu0 %v145
  %2509 = vmatprep.subr.mxu0 %v150
  %2510 = vmatpush1.msra.mxu0 %v149
  %2511 = vmatprep.subr.mxu0 %v154
  %2512 = vmatpush1.msra.mxu0 %v153
  %2513 = vmatprep.subr.mxu0 %v158
  %2514 = vmatpush1.msra.mxu0 %v157
  %2515 = vmatprep.subr.mxu0 %v162
  %2516 = vmatpush1.msra.mxu0 %v161
  %2517 = vmatprep.subr.mxu0 %v166
  %2518 = vmatpush1.msra.mxu0 %v165
  %2519 = vmatprep.subr.mxu0 %v170
  %2520 = vmatpush1.msra.mxu0 %v169
  %2521 = vmatprep.subr.mxu0 %v174
  %2522 = vmatpush1.msra.mxu0 %v173
  %2523 = vmatprep.subr.mxu0 %v178
  %2524 = vmatpush1.msra.mxu0 %v177
  %2525 = vmatprep.subr.mxu0 %v182
  %2526 = vmatpush1.msra.mxu0 %v181
  %2527 = vmatprep.subr.mxu0 %v186
  %2528 = vmatpush1.msra.mxu0 %v185
  %2529 = vmatprep.subr.mxu0 %v190
  %2530 = vmatpush1.msra.mxu0 %v189
  %2531 = vmatprep.subr.mxu0 %v194
  %2532 = vmatpush1.msra.mxu0 %v193
  %2533 = vmatprep.subr.mxu0 %v198
  %2534 = vmatpush1.msra.mxu0 %v197
  %2535 = vmatprep.subr.mxu0 %v202
  %2536 = vmatpush1.msra.mxu0 %v201
  %2537 = vmatprep.subr.mxu0 %v206
  %2538 = vmatpush1.msra.mxu0 %v205
  %2539 = vmatprep.subr.mxu0 %v210
  %2540 = vmatpush1.msra.mxu0 %v209
  %2541 = vmatprep.subr.mxu0 %v214
  %2542 = vmatpush1.msra.mxu0 %v213
  %2543 = vmatprep.subr.mxu0 %v218
  %2544 = vmatpush1.msra.mxu0 %v217
  %2545 = vmatprep.subr.mxu0 %v222
  %2546 = vmatpush1.msra.mxu0 %v221
  %2547 = vmatprep.subr.mxu0 %v226
  %2548 = vmatpush1.msra.mxu0 %v225
  %2549 = vmatprep.subr.mxu0 %v230
  %2550 = vmatpush1.msra.mxu0 %v229
  %2551 = vmatprep.subr.mxu0 %v234
  %2552 = vmatpush1.msra.mxu0 %v233
  %2553 = vmatprep.subr.mxu0 %v238
  %2554 = vmatpush1.msra.mxu0 %v237
  %2555 = vmatprep.subr.mxu0 %v242
  %2556 = vmatpush1.msra.mxu0 %v241
  %2557 = vmatprep.mubr.f32.mxu0 %v2349
  %2558 = vmatmul.mubr.f32.gmra.mrb[0].mxu0 %v2417
  %v2559 = vpop.f32.mrb[0].mxu0
  %v2560 = vadd.f32 %v256, %v2559
  %v2561 = vpop.f32.mrb[0].mxu0
  %v2562 = vadd.f32 %v260, %v2561
  %2563 = vdwg.mxu0
  %v2564 = vxor.u32 %v2489, 2147483648
  %v2565 = vmul.f32 %v2564, 1.442695
  %v2566 = vpow.pop %v2565
  %v2567 = vadd.f32 %v2566, 1.0
  %v2568 = vrcp.pop %v2567
  %v2569 = vmul.f32 1.0, %v2568
  %v2570 = vxor.u32 %v2491, 2147483648
  %v2571 = vmul.f32 %v2570, 1.442695
  %v2572 = vpow.pop %v2571
  %v2573 = vadd.f32 %v2572, 1.0
  %v2574 = vrcp.pop %v2573
  %v2575 = vmul.f32 1.0, %v2574
  %v2576 = vtanh.pop %v2560
  %v2577 = vxor.u32 %v2562, 2147483648
  %v2578 = vmul.f32 %v2577, 1.442695
  %v2579 = vpow.pop %v2578
  %v2580 = vadd.f32 %v2579, 1.0
  %v2581 = vrcp.pop %v2580
  %v2582 = vmul.f32 1.0, %v2581
  %v2583 = vmul.f32 %v2575, %v2347
  %v2584 = vmul.f32 %v2569, %v2576
  %v2585 = vadd.f32 %v2583, %v2584
  %v2586 = vtanh.pop %v2585
  %v2587 = vmul.f32 %v2582, %v2586
  %2588 = vmatprep.subr.mxu0 0.0
  %2589 = vmatpush1.msra.mxu0 %v265
  %2590 = vmatprep.subr.mxu0 0.0
  %2591 = vmatpush1.msra.mxu0 %v266
  %2592 = vmatprep.subr.mxu0 0.0
  %2593 = vmatpush1.msra.mxu0 %v267
  %2594 = vmatprep.subr.mxu0 0.0
  %2595 = vmatpush1.msra.mxu0 %v268
  %2596 = vmatprep.subr.mxu0 0.0
  %2597 = vmatpush1.msra.mxu0 %v269
  %2598 = vmatprep.subr.mxu0 0.0
  %2599 = vmatpush1.msra.mxu0 %v270
  %2600 = vmatprep.subr.mxu0 0.0
  %2601 = vmatpush1.msra.mxu0 %v271
  %2602 = vmatprep.subr.mxu0 0.0
  %2603 = vmatpush1.msra.mxu0 %v272
  %2604 = vmatprep.subr.mxu0 0.0
  %2605 = vmatpush1.msra.mxu0 %v273
  %2606 = vmatprep.subr.mxu0 0.0
  %2607 = vmatpush1.msra.mxu0 %v274
  %2608 = vmatprep.subr.mxu0 0.0
  %2609 = vmatpush1.msra.mxu0 %v275
  %2610 = vmatprep.subr.mxu0 0.0
  %2611 = vmatpush1.msra.mxu0 %v276
  %2612 = vmatprep.subr.mxu0 0.0
  %2613 = vmatpush1.msra.mxu0 %v277
  %2614 = vmatprep.subr.mxu0 0.0
  %2615 = vmatpush1.msra.mxu0 %v278
  %2616 = vmatprep.subr.mxu0 0.0
  %2617 = vmatpush1.msra.mxu0 %v279
  %2618 = vmatprep.subr.mxu0 0.0
  %2619 = vmatpush1.msra.mxu0 %v280
  %2620 = vmatprep.subr.mxu0 0.0
  %2621 = vmatpush1.msra.mxu0 0.0
  %2622 = vmatprep.subr.mxu0 0.0
  %2623 = vmatpush1.msra.mxu0 0.0
  %2624 = vmatprep.subr.mxu0 0.0
  %2625 = vmatpush1.msra.mxu0 0.0
  %2626 = vmatprep.subr.mxu0 0.0
  %2627 = vmatpush1.msra.mxu0 0.0
  %2628 = vmatprep.subr.mxu0 0.0
  %2629 = vmatpush1.msra.mxu0 0.0
  %2630 = vmatprep.subr.mxu0 0.0
  %2631 = vmatpush1.msra.mxu0 0.0
  %2632 = vmatprep.subr.mxu0 0.0
  %2633 = vmatpush1.msra.mxu0 0.0
  %2634 = vmatprep.subr.mxu0 0.0
  %2635 = vmatpush1.msra.mxu0 0.0
  %2636 = vmatprep.subr.mxu0 0.0
  %2637 = vmatpush1.msra.mxu0 0.0
  %2638 = vmatprep.subr.mxu0 0.0
  %2639 = vmatpush1.msra.mxu0 0.0
  %2640 = vmatprep.subr.mxu0 0.0
  %2641 = vmatpush1.msra.mxu0 0.0
  %2642 = vmatprep.subr.mxu0 0.0
  %2643 = vmatpush1.msra.mxu0 0.0
  %2644 = vmatprep.subr.mxu0 0.0
  %2645 = vmatpush1.msra.mxu0 0.0
  %2646 = vmatprep.subr.mxu0 0.0
  %2647 = vmatpush1.msra.mxu0 0.0
  %2648 = vmatprep.subr.mxu0 0.0
  %2649 = vmatpush1.msra.mxu0 0.0
  %2650 = vmatprep.subr.mxu0 0.0
  %2651 = vmatpush1.msra.mxu0 0.0
  %2652 = vmatprep.mubr.f32.mxu0 0.0
  %2653 = vmatmul.mubr.f32.gmra.mrb[0].mxu0 %v2587
  %v2654 = vpop.f32.mrb[0].mxu0
  %v2655 = vadd.f32 %v286, %v2654
  %v2656 = vpop.f32.mrb[0].mxu0
  %2657 = vdwg.mxu0
  %s2658 = scalar_lea.vmem %s8, 16
  %2659 = vst [vmem:[%s2658] sm:$0xff] %v2655
  %2660 = vmatprep.subr.mxu0 %v116
  %2661 = vmatpush1.msra.mxu0 %v115
  %2662 = vmatprep.subr.mxu0 %v120
  %2663 = vmatpush1.msra.mxu0 %v119
  %2664 = vmatprep.subr.mxu0 %v124
  %2665 = vmatpush1.msra.mxu0 %v123
  %2666 = vmatprep.subr.mxu0 %v128
  %2667 = vmatpush1.msra.mxu0 %v127
  %2668 = vmatprep.subr.mxu0 %v132
  %2669 = vmatpush1.msra.mxu0 %v131
  %2670 = vmatprep.subr.mxu0 %v136
  %2671 = vmatpush1.msra.mxu0 %v135
  %2672 = vmatprep.subr.mxu0 %v140
  %2673 = vmatpush1.msra.mxu0 %v139
  %2674 = vmatprep.subr.mxu0 %v144
  %2675 = vmatpush1.msra.mxu0 %v143
  %2676 = vmatprep.subr.mxu0 %v148
  %2677 = vmatpush1.msra.mxu0 %v147
  %2678 = vmatprep.subr.mxu0 %v152
  %2679 = vmatpush1.msra.mxu0 %v151
  %2680 = vmatprep.subr.mxu0 %v156
  %2681 = vmatpush1.msra.mxu0 %v155
  %2682 = vmatprep.subr.mxu0 %v160
  %2683 = vmatpush1.msra.mxu0 %v159
  %2684 = vmatprep.subr.mxu0 %v164
  %2685 = vmatpush1.msra.mxu0 %v163
  %2686 = vmatprep.subr.mxu0 %v168
  %2687 = vmatpush1.msra.mxu0 %v167
  %2688 = vmatprep.subr.mxu0 %v172
  %2689 = vmatpush1.msra.mxu0 %v171
  %2690 = vmatprep.subr.mxu0 %v176
  %2691 = vmatpush1.msra.mxu0 %v175
  %2692 = vmatprep.subr.mxu0 %v180
  %2693 = vmatpush1.msra.mxu0 %v179
  %2694 = vmatprep.subr.mxu0 %v184
  %2695 = vmatpush1.msra.mxu0 %v183
  %2696 = vmatprep.subr.mxu0 %v188
  %2697 = vmatpush1.msra.mxu0 %v187
  %2698 = vmatprep.subr.mxu0 %v192
  %2699 = vmatpush1.msra.mxu0 %v191
  %2700 = vmatprep.subr.mxu0 %v196
  %2701 = vmatpush1.msra.mxu0 %v195
  %2702 = vmatprep.subr.mxu0 %v200
  %2703 = vmatpush1.msra.mxu0 %v199
  %2704 = vmatprep.subr.mxu0 %v204
  %2705 = vmatpush1.msra.mxu0 %v203
  %2706 = vmatprep.subr.mxu0 %v208
  %2707 = vmatpush1.msra.mxu0 %v207
  %2708 = vmatprep.subr.mxu0 %v212
  %2709 = vmatpush1.msra.mxu0 %v211
  %2710 = vmatprep.subr.mxu0 %v216
  %2711 = vmatpush1.msra.mxu0 %v215
  %2712 = vmatprep.subr.mxu0 %v220
  %2713 = vmatpush1.msra.mxu0 %v219
  %2714 = vmatprep.subr.mxu0 %v224
  %2715 = vmatpush1.msra.mxu0 %v223
  %2716 = vmatprep.subr.mxu0 %v228
  %2717 = vmatpush1.msra.mxu0 %v227
  %2718 = vmatprep.subr.mxu0 %v232
  %2719 = vmatpush1.msra.mxu0 %v231
  %2720 = vmatprep.subr.mxu0 %v236
  %2721 = vmatpush1.msra.mxu0 %v235
  %2722 = vmatprep.subr.mxu0 %v240
  %2723 = vmatpush1.msra.mxu0 %v239
  %2724 = vmatprep.mubr.f32.mxu0 %v2587
  %2725 = vmatmul.mubr.f32.gmra.mrb[0].mxu0 %v2655
  %v2726 = vpop.f32.mrb[0].mxu0
  %v2727 = vadd.f32 %v248, %v2726
  %v2728 = vpop.f32.mrb[0].mxu0
  %v2729 = vadd.f32 %v252, %v2728
  %2730 = vdwg.mxu0
  %2731 = vmatprep.subr.mxu0 %v118
  %2732 = vmatpush1.msra.mxu0 %v117
  %2733 = vmatprep.subr.mxu0 %v122
  %2734 = vmatpush1.msra.mxu0 %v121
  %2735 = vmatprep.subr.mxu0 %v126
  %2736 = vmatpush1.msra.mxu0 %v125
  %2737 = vmatprep.subr.mxu0 %v130
  %2738 = vmatpush1.msra.mxu0 %v129
  %2739 = vmatprep.subr.mxu0 %v134
  %2740 = vmatpush1.msra.mxu0 %v133
  %2741 = vmatprep.subr.mxu0 %v138
  %2742 = vmatpush1.msra.mxu0 %v137
  %2743 = vmatprep.subr.mxu0 %v142
  %2744 = vmatpush1.msra.mxu0 %v141
  %2745 = vmatprep.subr.mxu0 %v146
  %2746 = vmatpush1.msra.mxu0 %v145
  %2747 = vmatprep.subr.mxu0 %v150
  %2748 = vmatpush1.msra.mxu0 %v149
  %2749 = vmatprep.subr.mxu0 %v154
  %2750 = vmatpush1.msra.mxu0 %v153
  %2751 = vmatprep.subr.mxu0 %v158
  %2752 = vmatpush1.msra.mxu0 %v157
  %2753 = vmatprep.subr.mxu0 %v162
  %2754 = vmatpush1.msra.mxu0 %v161
  %2755 = vmatprep.subr.mxu0 %v166
  %2756 = vmatpush1.msra.mxu0 %v165
  %2757 = vmatprep.subr.mxu0 %v170
  %2758 = vmatpush1.msra.mxu0 %v169
  %2759 = vmatprep.subr.mxu0 %v174
  %2760 = vmatpush1.msra.mxu0 %v173
  %2761 = vmatprep.subr.mxu0 %v178
  %2762 = vmatpush1.msra.mxu0 %v177
  %2763 = vmatprep.subr.mxu0 %v182
  %2764 = vmatpush1.msra.mxu0 %v181
  %2765 = vmatprep.subr.mxu0 %v186
  %2766 = vmatpush1.msra.mxu0 %v185
  %2767 = vmatprep.subr.mxu0 %v190
  %2768 = vmatpush1.msra.mxu0 %v189
  %2769 = vmatprep.subr.mxu0 %v194
  %2770 = vmatpush1.msra.mxu0 %v193
  %2771 = vmatprep.subr.mxu0 %v198
  %2772 = vmatpush1.msra.mxu0 %v197
  %2773 = vmatprep.subr.mxu0 %v202
  %2774 = vmatpush1.msra.mxu0 %v201
  %2775 = vmatprep.subr.mxu0 %v206
  %2776 = vmatpush1.msra.mxu0 %v205
  %2777 = vmatprep.subr.mxu0 %v210
  %2778 = vmatpush1.msra.mxu0 %v209
  %2779 = vmatprep.subr.mxu0 %v214
  %2780 = vmatpush1.msra.mxu0 %v213
  %2781 = vmatprep.subr.mxu0 %v218
  %2782 = vmatpush1.msra.mxu0 %v217
  %2783 = vmatprep.subr.mxu0 %v222
  %2784 = vmatpush1.msra.mxu0 %v221
  %2785 = vmatprep.subr.mxu0 %v226
  %2786 = vmatpush1.msra.mxu0 %v225
  %2787 = vmatprep.subr.mxu0 %v230
  %2788 = vmatpush1.msra.mxu0 %v229
  %2789 = vmatprep.subr.mxu0 %v234
  %2790 = vmatpush1.msra.mxu0 %v233
  %2791 = vmatprep.subr.mxu0 %v238
  %2792 = vmatpush1.msra.mxu0 %v237
  %2793 = vmatprep.subr.mxu0 %v242
  %2794 = vmatpush1.msra.mxu0 %v241
  %2795 = vmatprep.mubr.f32.mxu0 %v2587
  %2796 = vmatmul.mubr.f32.gmra.mrb[0].mxu0 %v2655
  %v2797 = vpop.f32.mrb[0].mxu0
  %v2798 = vadd.f32 %v256, %v2797
  %v2799 = vpop.f32.mrb[0].mxu0
  %v2800 = vadd.f32 %v260, %v2799
  %2801 = vdwg.mxu0
  %v2802 = vxor.u32 %v2727, 2147483648
  %v2803 = vmul.f32 %v2802, 1.442695
  %v2804 = vpow.pop %v2803
  %v2805 = vadd.f32 %v2804, 1.0
  %v2806 = vrcp.pop %v2805
  %v2807 = vmul.f32 1.0, %v2806
  %v2808 = vxor.u32 %v2729, 2147483648
  %v2809 = vmul.f32 %v2808, 1.442695
  %v2810 = vpow.pop %v2809
  %v2811 = vadd.f32 %v2810, 1.0
  %v2812 = vrcp.pop %v2811
  %v2813 = vmul.f32 1.0, %v2812
  %v2814 = vtanh.pop %v2798
  %v2815 = vxor.u32 %v2800, 2147483648
  %v2816 = vmul.f32 %v2815, 1.442695
  %v2817 = vpow.pop %v2816
  %v2818 = vadd.f32 %v2817, 1.0
  %v2819 = vrcp.pop %v2818
  %v2820 = vmul.f32 1.0, %v2819
  %v2821 = vmul.f32 %v2813, %v2585
  %v2822 = vmul.f32 %v2807, %v2814
  %v2823 = vadd.f32 %v2821, %v2822
  %v2824 = vtanh.pop %v2823
  %v2825 = vmul.f32 %v2820, %v2824
  %2826 = vmatprep.subr.mxu0 0.0
  %2827 = vmatpush1.msra.mxu0 %v265
  %2828 = vmatprep.subr.mxu0 0.0
  %2829 = vmatpush1.msra.mxu0 %v266
  %2830 = vmatprep.subr.mxu0 0.0
  %2831 = vmatpush1.msra.mxu0 %v267
  %2832 = vmatprep.subr.mxu0 0.0
  %2833 = vmatpush1.msra.mxu0 %v268
  %2834 = vmatprep.subr.mxu0 0.0
  %2835 = vmatpush1.msra.mxu0 %v269
  %2836 = vmatprep.subr.mxu0 0.0
  %2837 = vmatpush1.msra.mxu0 %v270
  %2838 = vmatprep.subr.mxu0 0.0
  %2839 = vmatpush1.msra.mxu0 %v271
  %2840 = vmatprep.subr.mxu0 0.0
  %2841 = vmatpush1.msra.mxu0 %v272
  %2842 = vmatprep.subr.mxu0 0.0
  %2843 = vmatpush1.msra.mxu0 %v273
  %2844 = vmatprep.subr.mxu0 0.0
  %2845 = vmatpush1.msra.mxu0 %v274
  %2846 = vmatprep.subr.mxu0 0.0
  %2847 = vmatpush1.msra.mxu0 %v275
  %2848 = vmatprep.subr.mxu0 0.0
  %2849 = vmatpush1.msra.mxu0 %v276
  %2850 = vmatprep.subr.mxu0 0.0
  %2851 = vmatpush1.msra.mxu0 %v277
  %2852 = vmatprep.subr.mxu0 0.0
  %2853 = vmatpush1.msra.mxu0 %v278
  %2854 = vmatprep.subr.mxu0 0.0
  %2855 = vmatpush1.msra.mxu0 %v279
  %2856 = vmatprep.subr.mxu0 0.0
  %2857 = vmatpush1.msra.mxu0 %v280
  %2858 = vmatprep.subr.mxu0 0.0
  %2859 = vmatpush1.msra.mxu0 0.0
  %2860 = vmatprep.subr.mxu0 0.0
  %2861 = vmatpush1.msra.mxu0 0.0
  %2862 = vmatprep.subr.mxu0 0.0
  %2863 = vmatpush1.msra.mxu0 0.0
  %2864 = vmatprep.subr.mxu0 0.0
  %2865 = vmatpush1.msra.mxu0 0.0
  %2866 = vmatprep.subr.mxu0 0.0
  %2867 = vmatpush1.msra.mxu0 0.0
  %2868 = vmatprep.subr.mxu0 0.0
  %2869 = vmatpush1.msra.mxu0 0.0
  %2870 = vmatprep.subr.mxu0 0.0
  %2871 = vmatpush1.msra.mxu0 0.0
  %2872 = vmatprep.subr.mxu0 0.0
  %2873 = vmatpush1.msra.mxu0 0.0
  %2874 = vmatprep.subr.mxu0 0.0
  %2875 = vmatpush1.msra.mxu0 0.0
  %2876 = vmatprep.subr.mxu0 0.0
  %2877 = vmatpush1.msra.mxu0 0.0
  %2878 = vmatprep.subr.mxu0 0.0
  %2879 = vmatpush1.msra.mxu0 0.0
  %2880 = vmatprep.subr.mxu0 0.0
  %2881 = vmatpush1.msra.mxu0 0.0
  %2882 = vmatprep.subr.mxu0 0.0
  %2883 = vmatpush1.msra.mxu0 0.0
  %2884 = vmatprep.subr.mxu0 0.0
  %2885 = vmatpush1.msra.mxu0 0.0
  %2886 = vmatprep.subr.mxu0 0.0
  %2887 = vmatpush1.msra.mxu0 0.0
  %2888 = vmatprep.subr.mxu0 0.0
  %2889 = vmatpush1.msra.mxu0 0.0
  %2890 = vmatprep.mubr.f32.mxu0 0.0
  %2891 = vmatmul.mubr.f32.gmra.mrb[0].mxu0 %v2825
  %v2892 = vpop.f32.mrb[0].mxu0
  %v2893 = vadd.f32 %v286, %v2892
  %v2894 = vpop.f32.mrb[0].mxu0
  %2895 = vdwg.mxu0
  %s2896 = scalar_lea.vmem %s8, 24
  %2897 = vst [vmem:[%s2896] sm:$0xff] %v2893
  %2898 = vmatprep.subr.mxu0 %v116
  %2899 = vmatpush1.msra.mxu0 %v115
  %2900 = vmatprep.subr.mxu0 %v120
  %2901 = vmatpush1.msra.mxu0 %v119
  %2902 = vmatprep.subr.mxu0 %v124
  %2903 = vmatpush1.msra.mxu0 %v123
  %2904 = vmatprep.subr.mxu0 %v128
  %2905 = vmatpush1.msra.mxu0 %v127
  %2906 = vmatprep.subr.mxu0 %v132
  %2907 = vmatpush1.msra.mxu0 %v131
  %2908 = vmatprep.subr.mxu0 %v136
  %2909 = vmatpush1.msra.mxu0 %v135
  %2910 = vmatprep.subr.mxu0 %v140
  %2911 = vmatpush1.msra.mxu0 %v139
  %2912 = vmatprep.subr.mxu0 %v144
  %2913 = vmatpush1.msra.mxu0 %v143
  %2914 = vmatprep.subr.mxu0 %v148
  %2915 = vmatpush1.msra.mxu0 %v147
  %2916 = vmatprep.subr.mxu0 %v152
  %2917 = vmatpush1.msra.mxu0 %v151
  %2918 = vmatprep.subr.mxu0 %v156
  %2919 = vmatpush1.msra.mxu0 %v155
  %2920 = vmatprep.subr.mxu0 %v160
  %2921 = vmatpush1.msra.mxu0 %v159
  %2922 = vmatprep.subr.mxu0 %v164
  %2923 = vmatpush1.msra.mxu0 %v163
  %2924 = vmatprep.subr.mxu0 %v168
  %2925 = vmatpush1.msra.mxu0 %v167
  %2926 = vmatprep.subr.mxu0 %v172
  %2927 = vmatpush1.msra.mxu0 %v171
  %2928 = vmatprep.subr.mxu0 %v176
  %2929 = vmatpush1.msra.mxu0 %v175
  %2930 = vmatprep.subr.mxu0 %v180
  %2931 = vmatpush1.msra.mxu0 %v179
  %2932 = vmatprep.subr.mxu0 %v184
  %2933 = vmatpush1.msra.mxu0 %v183
  %2934 = vmatprep.subr.mxu0 %v188
  %2935 = vmatpush1.msra.mxu0 %v187
  %2936 = vmatprep.subr.mxu0 %v192
  %2937 = vmatpush1.msra.mxu0 %v191
  %2938 = vmatprep.subr.mxu0 %v196
  %2939 = vmatpush1.msra.mxu0 %v195
  %2940 = vmatprep.subr.mxu0 %v200
  %2941 = vmatpush1.msra.mxu0 %v199
  %2942 = vmatprep.subr.mxu0 %v204
  %2943 = vmatpush1.msra.mxu0 %v203
  %2944 = vmatprep.subr.mxu0 %v208
  %2945 = vmatpush1.msra.mxu0 %v207
  %2946 = vmatprep.subr.mxu0 %v212
  %2947 = vmatpush1.msra.mxu0 %v211
  %2948 = vmatprep.subr.mxu0 %v216
  %2949 = vmatpush1.msra.mxu0 %v215
  %2950 = vmatprep.subr.mxu0 %v220
  %2951 = vmatpush1.msra.mxu0 %v219
  %2952 = vmatprep.subr.mxu0 %v224
  %2953 = vmatpush1.msra.mxu0 %v223
  %2954 = vmatprep.subr.mxu0 %v228
  %2955 = vmatpush1.msra.mxu0 %v227
  %2956 = vmatprep.subr.mxu0 %v232
  %2957 = vmatpush1.msra.mxu0 %v231
  %2958 = vmatprep.subr.mxu0 %v236
  %2959 = vmatpush1.msra.mxu0 %v235
  %2960 = vmatprep.subr.mxu0 %v240
  %2961 = vmatpush1.msra.mxu0 %v239
  %2962 = vmatprep.mubr.f32.mxu0 %v2825
  %2963 = vmatmul.mubr.f32.gmra.mrb[0].mxu0 %v2893
  %v2964 = vpop.f32.mrb[0].mxu0
  %v2965 = vadd.f32 %v248, %v2964
  %v2966 = vpop.f32.mrb[0].mxu0
  %v2967 = vadd.f32 %v252, %v2966
  %2968 = vdwg.mxu0
  %2969 = vmatprep.subr.mxu0 %v118
  %2970 = vmatpush1.msra.mxu0 %v117
  %2971 = vmatprep.subr.mxu0 %v122
  %2972 = vmatpush1.msra.mxu0 %v121
  %2973 = vmatprep.subr.mxu0 %v126
  %2974 = vmatpush1.msra.mxu0 %v125
  %2975 = vmatprep.subr.mxu0 %v130
  %2976 = vmatpush1.msra.mxu0 %v129
  %2977 = vmatprep.subr.mxu0 %v134
  %2978 = vmatpush1.msra.mxu0 %v133
  %2979 = vmatprep.subr.mxu0 %v138
  %2980 = vmatpush1.msra.mxu0 %v137
  %2981 = vmatprep.subr.mxu0 %v142
  %2982 = vmatpush1.msra.mxu0 %v141
  %2983 = vmatprep.subr.mxu0 %v146
  %2984 = vmatpush1.msra.mxu0 %v145
  %2985 = vmatprep.subr.mxu0 %v150
  %2986 = vmatpush1.msra.mxu0 %v149
  %2987 = vmatprep.subr.mxu0 %v154
  %2988 = vmatpush1.msra.mxu0 %v153
  %2989 = vmatprep.subr.mxu0 %v158
  %2990 = vmatpush1.msra.mxu0 %v157
  %2991 = vmatprep.subr.mxu0 %v162
  %2992 = vmatpush1.msra.mxu0 %v161
  %2993 = vmatprep.subr.mxu0 %v166
  %2994 = vmatpush1.msra.mxu0 %v165
  %2995 = vmatprep.subr.mxu0 %v170
  %2996 = vmatpush1.msra.mxu0 %v169
  %2997 = vmatprep.subr.mxu0 %v174
  %2998 = vmatpush1.msra.mxu0 %v173
  %2999 = vmatprep.subr.mxu0 %v178
  %3000 = vmatpush1.msra.mxu0 %v177
  %3001 = vmatprep.subr.mxu0 %v182
  %3002 = vmatpush1.msra.mxu0 %v181
  %3003 = vmatprep.subr.mxu0 %v186
  %3004 = vmatpush1.msra.mxu0 %v185
  %3005 = vmatprep.subr.mxu0 %v190
  %3006 = vmatpush1.msra.mxu0 %v189
  %3007 = vmatprep.subr.mxu0 %v194
  %3008 = vmatpush1.msra.mxu0 %v193
  %3009 = vmatprep.subr.mxu0 %v198
  %3010 = vmatpush1.msra.mxu0 %v197
  %3011 = vmatprep.subr.mxu0 %v202
  %3012 = vmatpush1.msra.mxu0 %v201
  %3013 = vmatprep.subr.mxu0 %v206
  %3014 = vmatpush1.msra.mxu0 %v205
  %3015 = vmatprep.subr.mxu0 %v210
  %3016 = vmatpush1.msra.mxu0 %v209
  %3017 = vmatprep.subr.mxu0 %v214
  %3018 = vmatpush1.msra.mxu0 %v213
  %3019 = vmatprep.subr.mxu0 %v218
  %3020 = vmatpush1.msra.mxu0 %v217
  %3021 = vmatprep.subr.mxu0 %v222
  %3022 = vmatpush1.msra.mxu0 %v221
  %3023 = vmatprep.subr.mxu0 %v226
  %3024 = vmatpush1.msra.mxu0 %v225
  %3025 = vmatprep.subr.mxu0 %v230
  %3026 = vmatpush1.msra.mxu0 %v229
  %3027 = vmatprep.subr.mxu0 %v234
  %3028 = vmatpush1.msra.mxu0 %v233
  %3029 = vmatprep.subr.mxu0 %v238
  %3030 = vmatpush1.msra.mxu0 %v237
  %3031 = vmatprep.subr.mxu0 %v242
  %3032 = vmatpush1.msra.mxu0 %v241
  %3033 = vmatprep.mubr.f32.mxu0 %v2825
  %3034 = vmatmul.mubr.f32.gmra.mrb[0].mxu0 %v2893
  %v3035 = vpop.f32.mrb[0].mxu0
  %v3036 = vadd.f32 %v256, %v3035
  %v3037 = vpop.f32.mrb[0].mxu0
  %v3038 = vadd.f32 %v260, %v3037
  %3039 = vdwg.mxu0
  %v3040 = vxor.u32 %v2965, 2147483648
  %v3041 = vmul.f32 %v3040, 1.442695
  %v3042 = vpow.pop %v3041
  %v3043 = vadd.f32 %v3042, 1.0
  %v3044 = vrcp.pop %v3043
  %v3045 = vmul.f32 1.0, %v3044
  %v3046 = vxor.u32 %v2967, 2147483648
  %v3047 = vmul.f32 %v3046, 1.442695
  %v3048 = vpow.pop %v3047
  %v3049 = vadd.f32 %v3048, 1.0
  %v3050 = vrcp.pop %v3049
  %v3051 = vmul.f32 1.0, %v3050
  %v3052 = vtanh.pop %v3036
  %v3053 = vxor.u32 %v3038, 2147483648
  %v3054 = vmul.f32 %v3053, 1.442695
  %v3055 = vpow.pop %v3054
  %v3056 = vadd.f32 %v3055, 1.0
  %v3057 = vrcp.pop %v3056
  %v3058 = vmul.f32 1.0, %v3057
  %v3059 = vmul.f32 %v3051, %v2823
  %v3060 = vmul.f32 %v3045, %v3052
  %v3061 = vadd.f32 %v3059, %v3060
  %v3062 = vtanh.pop %v3061
  %v3063 = vmul.f32 %v3058, %v3062
  %3064 = vmatprep.subr.mxu0 0.0
  %3065 = vmatpush1.msra.mxu0 %v265
  %3066 = vmatprep.subr.mxu0 0.0
  %3067 = vmatpush1.msra.mxu0 %v266
  %3068 = vmatprep.subr.mxu0 0.0
  %3069 = vmatpush1.msra.mxu0 %v267
  %3070 = vmatprep.subr.mxu0 0.0
  %3071 = vmatpush1.msra.mxu0 %v268
  %3072 = vmatprep.subr.mxu0 0.0
  %3073 = vmatpush1.msra.mxu0 %v269
  %3074 = vmatprep.subr.mxu0 0.0
  %3075 = vmatpush1.msra.mxu0 %v270
  %3076 = vmatprep.subr.mxu0 0.0
  %3077 = vmatpush1.msra.mxu0 %v271
  %3078 = vmatprep.subr.mxu0 0.0
  %3079 = vmatpush1.msra.mxu0 %v272
  %3080 = vmatprep.subr.mxu0 0.0
  %3081 = vmatpush1.msra.mxu0 %v273
  %3082 = vmatprep.subr.mxu0 0.0
  %3083 = vmatpush1.msra.mxu0 %v274
  %3084 = vmatprep.subr.mxu0 0.0
  %3085 = vmatpush1.msra.mxu0 %v275
  %3086 = vmatprep.subr.mxu0 0.0
  %3087 = vmatpush1.msra.mxu0 %v276
  %3088 = vmatprep.subr.mxu0 0.0
  %3089 = vmatpush1.msra.mxu0 %v277
  %3090 = vmatprep.subr.mxu0 0.0
  %3091 = vmatpush1.msra.mxu0 %v278
  %3092 = vmatprep.subr.mxu0 0.0
  %3093 = vmatpush1.msra.mxu0 %v279
  %3094 = vmatprep.subr.mxu0 0.0
  %3095 = vmatpush1.msra.mxu0 %v280
  %3096 = vmatprep.subr.mxu0 0.0
  %3097 = vmatpush1.msra.mxu0 0.0
  %3098 = vmatprep.subr.mxu0 0.0
  %3099 = vmatpush1.msra.mxu0 0.0
  %3100 = vmatprep.subr.mxu0 0.0
  %3101 = vmatpush1.msra.mxu0 0.0
  %3102 = vmatprep.subr.mxu0 0.0
  %3103 = vmatpush1.msra.mxu0 0.0
  %3104 = vmatprep.subr.mxu0 0.0
  %3105 = vmatpush1.msra.mxu0 0.0
  %3106 = vmatprep.subr.mxu0 0.0
  %3107 = vmatpush1.msra.mxu0 0.0
  %3108 = vmatprep.subr.mxu0 0.0
  %3109 = vmatpush1.msra.mxu0 0.0
  %3110 = vmatprep.subr.mxu0 0.0
  %3111 = vmatpush1.msra.mxu0 0.0
  %3112 = vmatprep.subr.mxu0 0.0
  %3113 = vmatpush1.msra.mxu0 0.0
  %3114 = vmatprep.subr.mxu0 0.0
  %3115 = vmatpush1.msra.mxu0 0.0
  %3116 = vmatprep.subr.mxu0 0.0
  %3117 = vmatpush1.msra.mxu0 0.0
  %3118 = vmatprep.subr.mxu0 0.0
  %3119 = vmatpush1.msra.mxu0 0.0
  %3120 = vmatprep.subr.mxu0 0.0
  %3121 = vmatpush1.msra.mxu0 0.0
  %3122 = vmatprep.subr.mxu0 0.0
  %3123 = vmatpush1.msra.mxu0 0.0
  %3124 = vmatprep.subr.mxu0 0.0
  %3125 = vmatpush1.msra.mxu0 0.0
  %3126 = vmatprep.subr.mxu0 0.0
  %3127 = vmatpush1.msra.mxu0 0.0
  %3128 = vmatprep.mubr.f32.mxu0 0.0
  %3129 = vmatmul.mubr.f32.gmra.mrb[0].mxu0 %v3063
  %v3130 = vpop.f32.mrb[0].mxu0
  %v3131 = vadd.f32 %v286, %v3130
  %v3132 = vpop.f32.mrb[0].mxu0
  %3133 = vdwg.mxu0
  %s3134 = scalar_lea.vmem %s8, 32
  %3135 = vst [vmem:[%s3134] sm:$0xff] %v3131
  %3136 = vmatprep.subr.mxu0 %v116
  %3137 = vmatpush1.msra.mxu0 %v115
  %3138 = vmatprep.subr.mxu0 %v120
  %3139 = vmatpush1.msra.mxu0 %v119
  %3140 = vmatprep.subr.mxu0 %v124
  %3141 = vmatpush1.msra.mxu0 %v123
  %3142 = vmatprep.subr.mxu0 %v128
  %3143 = vmatpush1.msra.mxu0 %v127
  %3144 = vmatprep.subr.mxu0 %v132
  %3145 = vmatpush1.msra.mxu0 %v131
  %3146 = vmatprep.subr.mxu0 %v136
  %3147 = vmatpush1.msra.mxu0 %v135
  %3148 = vmatprep.subr.mxu0 %v140
  %3149 = vmatpush1.msra.mxu0 %v139
  %3150 = vmatprep.subr.mxu0 %v144
  %3151 = vmatpush1.msra.mxu0 %v143
  %3152 = vmatprep.subr.mxu0 %v148
  %3153 = vmatpush1.msra.mxu0 %v147
  %3154 = vmatprep.subr.mxu0 %v152
  %3155 = vmatpush1.msra.mxu0 %v151
  %3156 = vmatprep.subr.mxu0 %v156
  %3157 = vmatpush1.msra.mxu0 %v155
  %3158 = vmatprep.subr.mxu0 %v160
  %3159 = vmatpush1.msra.mxu0 %v159
  %3160 = vmatprep.subr.mxu0 %v164
  %3161 = vmatpush1.msra.mxu0 %v163
  %3162 = vmatprep.subr.mxu0 %v168
  %3163 = vmatpush1.msra.mxu0 %v167
  %3164 = vmatprep.subr.mxu0 %v172
  %3165 = vmatpush1.msra.mxu0 %v171
  %3166 = vmatprep.subr.mxu0 %v176
  %3167 = vmatpush1.msra.mxu0 %v175
  %3168 = vmatprep.subr.mxu0 %v180
  %3169 = vmatpush1.msra.mxu0 %v179
  %3170 = vmatprep.subr.mxu0 %v184
  %3171 = vmatpush1.msra.mxu0 %v183
  %3172 = vmatprep.subr.mxu0 %v188
  %3173 = vmatpush1.msra.mxu0 %v187
  %3174 = vmatprep.subr.mxu0 %v192
  %3175 = vmatpush1.msra.mxu0 %v191
  %3176 = vmatprep.subr.mxu0 %v196
  %3177 = vmatpush1.msra.mxu0 %v195
  %3178 = vmatprep.subr.mxu0 %v200
  %3179 = vmatpush1.msra.mxu0 %v199
  %3180 = vmatprep.subr.mxu0 %v204
  %3181 = vmatpush1.msra.mxu0 %v203
  %3182 = vmatprep.subr.mxu0 %v208
  %3183 = vmatpush1.msra.mxu0 %v207
  %3184 = vmatprep.subr.mxu0 %v212
  %3185 = vmatpush1.msra.mxu0 %v211
  %3186 = vmatprep.subr.mxu0 %v216
  %3187 = vmatpush1.msra.mxu0 %v215
  %3188 = vmatprep.subr.mxu0 %v220
  %3189 = vmatpush1.msra.mxu0 %v219
  %3190 = vmatprep.subr.mxu0 %v224
  %3191 = vmatpush1.msra.mxu0 %v223
  %3192 = vmatprep.subr.mxu0 %v228
  %3193 = vmatpush1.msra.mxu0 %v227
  %3194 = vmatprep.subr.mxu0 %v232
  %3195 = vmatpush1.msra.mxu0 %v231
  %3196 = vmatprep.subr.mxu0 %v236
  %3197 = vmatpush1.msra.mxu0 %v235
  %3198 = vmatprep.subr.mxu0 %v240
  %3199 = vmatpush1.msra.mxu0 %v239
  %3200 = vmatprep.mubr.f32.mxu0 %v3063
  %3201 = vmatmul.mubr.f32.gmra.mrb[0].mxu0 %v3131
  %v3202 = vpop.f32.mrb[0].mxu0
  %v3203 = vadd.f32 %v248, %v3202
  %v3204 = vpop.f32.mrb[0].mxu0
  %v3205 = vadd.f32 %v252, %v3204
  %3206 = vdwg.mxu0
  %3207 = vmatprep.subr.mxu0 %v118
  %3208 = vmatpush1.msra.mxu0 %v117
  %3209 = vmatprep.subr.mxu0 %v122
  %3210 = vmatpush1.msra.mxu0 %v121
  %3211 = vmatprep.subr.mxu0 %v126
  %3212 = vmatpush1.msra.mxu0 %v125
  %3213 = vmatprep.subr.mxu0 %v130
  %3214 = vmatpush1.msra.mxu0 %v129
  %3215 = vmatprep.subr.mxu0 %v134
  %3216 = vmatpush1.msra.mxu0 %v133
  %3217 = vmatprep.subr.mxu0 %v138
  %3218 = vmatpush1.msra.mxu0 %v137
  %3219 = vmatprep.subr.mxu0 %v142
  %3220 = vmatpush1.msra.mxu0 %v141
  %3221 = vmatprep.subr.mxu0 %v146
  %3222 = vmatpush1.msra.mxu0 %v145
  %3223 = vmatprep.subr.mxu0 %v150
  %3224 = vmatpush1.msra.mxu0 %v149
  %3225 = vmatprep.subr.mxu0 %v154
  %3226 = vmatpush1.msra.mxu0 %v153
  %3227 = vmatprep.subr.mxu0 %v158
  %3228 = vmatpush1.msra.mxu0 %v157
  %3229 = vmatprep.subr.mxu0 %v162
  %3230 = vmatpush1.msra.mxu0 %v161
  %3231 = vmatprep.subr.mxu0 %v166
  %3232 = vmatpush1.msra.mxu0 %v165
  %3233 = vmatprep.subr.mxu0 %v170
  %3234 = vmatpush1.msra.mxu0 %v169
  %3235 = vmatprep.subr.mxu0 %v174
  %3236 = vmatpush1.msra.mxu0 %v173
  %3237 = vmatprep.subr.mxu0 %v178
  %3238 = vmatpush1.msra.mxu0 %v177
  %3239 = vmatprep.subr.mxu0 %v182
  %3240 = vmatpush1.msra.mxu0 %v181
  %3241 = vmatprep.subr.mxu0 %v186
  %3242 = vmatpush1.msra.mxu0 %v185
  %3243 = vmatprep.subr.mxu0 %v190
  %3244 = vmatpush1.msra.mxu0 %v189
  %3245 = vmatprep.subr.mxu0 %v194
  %3246 = vmatpush1.msra.mxu0 %v193
  %3247 = vmatprep.subr.mxu0 %v198
  %3248 = vmatpush1.msra.mxu0 %v197
  %3249 = vmatprep.subr.mxu0 %v202
  %3250 = vmatpush1.msra.mxu0 %v201
  %3251 = vmatprep.subr.mxu0 %v206
  %3252 = vmatpush1.msra.mxu0 %v205
  %3253 = vmatprep.subr.mxu0 %v210
  %3254 = vmatpush1.msra.mxu0 %v209
  %3255 = vmatprep.subr.mxu0 %v214
  %3256 = vmatpush1.msra.mxu0 %v213
  %3257 = vmatprep.subr.mxu0 %v218
  %3258 = vmatpush1.msra.mxu0 %v217
  %3259 = vmatprep.subr.mxu0 %v222
  %3260 = vmatpush1.msra.mxu0 %v221
  %3261 = vmatprep.subr.mxu0 %v226
  %3262 = vmatpush1.msra.mxu0 %v225
  %3263 = vmatprep.subr.mxu0 %v230
  %3264 = vmatpush1.msra.mxu0 %v229
  %3265 = vmatprep.subr.mxu0 %v234
  %3266 = vmatpush1.msra.mxu0 %v233
  %3267 = vmatprep.subr.mxu0 %v238
  %3268 = vmatpush1.msra.mxu0 %v237
  %3269 = vmatprep.subr.mxu0 %v242
  %3270 = vmatpush1.msra.mxu0 %v241
  %3271 = vmatprep.mubr.f32.mxu0 %v3063
  %3272 = vmatmul.mubr.f32.gmra.mrb[0].mxu0 %v3131
  %v3273 = vpop.f32.mrb[0].mxu0
  %v3274 = vadd.f32 %v256, %v3273
  %v3275 = vpop.f32.mrb[0].mxu0
  %v3276 = vadd.f32 %v260, %v3275
  %3277 = vdwg.mxu0
  %v3278 = vxor.u32 %v3203, 2147483648
  %v3279 = vmul.f32 %v3278, 1.442695
  %v3280 = vpow.pop %v3279
  %v3281 = vadd.f32 %v3280, 1.0
  %v3282 = vrcp.pop %v3281
  %v3283 = vmul.f32 1.0, %v3282
  %v3284 = vxor.u32 %v3205, 2147483648
  %v3285 = vmul.f32 %v3284, 1.442695
  %v3286 = vpow.pop %v3285
  %v3287 = vadd.f32 %v3286, 1.0
  %v3288 = vrcp.pop %v3287
  %v3289 = vmul.f32 1.0, %v3288
  %v3290 = vtanh.pop %v3274
  %v3291 = vxor.u32 %v3276, 2147483648
  %v3292 = vmul.f32 %v3291, 1.442695
  %v3293 = vpow.pop %v3292
  %v3294 = vadd.f32 %v3293, 1.0
  %v3295 = vrcp.pop %v3294
  %v3296 = vmul.f32 1.0, %v3295
  %v3297 = vmul.f32 %v3289, %v3061
  %v3298 = vmul.f32 %v3283, %v3290
  %v3299 = vadd.f32 %v3297, %v3298
  %v3300 = vtanh.pop %v3299
  %v3301 = vmul.f32 %v3296, %v3300
  %3302 = vmatprep.subr.mxu0 0.0
  %3303 = vmatpush1.msra.mxu0 %v265
  %3304 = vmatprep.subr.mxu0 0.0
  %3305 = vmatpush1.msra.mxu0 %v266
  %3306 = vmatprep.subr.mxu0 0.0
  %3307 = vmatpush1.msra.mxu0 %v267
  %3308 = vmatprep.subr.mxu0 0.0
  %3309 = vmatpush1.msra.mxu0 %v268
  %3310 = vmatprep.subr.mxu0 0.0
  %3311 = vmatpush1.msra.mxu0 %v269
  %3312 = vmatprep.subr.mxu0 0.0
  %3313 = vmatpush1.msra.mxu0 %v270
  %3314 = vmatprep.subr.mxu0 0.0
  %3315 = vmatpush1.msra.mxu0 %v271
  %3316 = vmatprep.subr.mxu0 0.0
  %3317 = vmatpush1.msra.mxu0 %v272
  %3318 = vmatprep.subr.mxu0 0.0
  %3319 = vmatpush1.msra.mxu0 %v273
  %3320 = vmatprep.subr.mxu0 0.0
  %3321 = vmatpush1.msra.mxu0 %v274
  %3322 = vmatprep.subr.mxu0 0.0
  %3323 = vmatpush1.msra.mxu0 %v275
  %3324 = vmatprep.subr.mxu0 0.0
  %3325 = vmatpush1.msra.mxu0 %v276
  %3326 = vmatprep.subr.mxu0 0.0
  %3327 = vmatpush1.msra.mxu0 %v277
  %3328 = vmatprep.subr.mxu0 0.0
  %3329 = vmatpush1.msra.mxu0 %v278
  %3330 = vmatprep.subr.mxu0 0.0
  %3331 = vmatpush1.msra.mxu0 %v279
  %3332 = vmatprep.subr.mxu0 0.0
  %3333 = vmatpush1.msra.mxu0 %v280
  %3334 = vmatprep.subr.mxu0 0.0
  %3335 = vmatpush1.msra.mxu0 0.0
  %3336 = vmatprep.subr.mxu0 0.0
  %3337 = vmatpush1.msra.mxu0 0.0
  %3338 = vmatprep.subr.mxu0 0.0
  %3339 = vmatpush1.msra.mxu0 0.0
  %3340 = vmatprep.subr.mxu0 0.0
  %3341 = vmatpush1.msra.mxu0 0.0
  %3342 = vmatprep.subr.mxu0 0.0
  %3343 = vmatpush1.msra.mxu0 0.0
  %3344 = vmatprep.subr.mxu0 0.0
  %3345 = vmatpush1.msra.mxu0 0.0
  %3346 = vmatprep.subr.mxu0 0.0
  %3347 = vmatpush1.msra.mxu0 0.0
  %3348 = vmatprep.subr.mxu0 0.0
  %3349 = vmatpush1.msra.mxu0 0.0
  %3350 = vmatprep.subr.mxu0 0.0
  %3351 = vmatpush1.msra.mxu0 0.0
  %3352 = vmatprep.subr.mxu0 0.0
  %3353 = vmatpush1.msra.mxu0 0.0
  %3354 = vmatprep.subr.mxu0 0.0
  %3355 = vmatpush1.msra.mxu0 0.0
  %3356 = vmatprep.subr.mxu0 0.0
  %3357 = vmatpush1.msra.mxu0 0.0
  %3358 = vmatprep.subr.mxu0 0.0
  %3359 = vmatpush1.msra.mxu0 0.0
  %3360 = vmatprep.subr.mxu0 0.0
  %3361 = vmatpush1.msra.mxu0 0.0
  %3362 = vmatprep.subr.mxu0 0.0
  %3363 = vmatpush1.msra.mxu0 0.0
  %3364 = vmatprep.subr.mxu0 0.0
  %3365 = vmatpush1.msra.mxu0 0.0
  %3366 = vmatprep.mubr.f32.mxu0 0.0
  %3367 = vmatmul.mubr.f32.gmra.mrb[0].mxu0 %v3301
  %v3368 = vpop.f32.mrb[0].mxu0
  %v3369 = vadd.f32 %v286, %v3368
  %v3370 = vpop.f32.mrb[0].mxu0
  %3371 = vdwg.mxu0
  %s3372 = scalar_lea.vmem %s8, 40
  %3373 = vst [vmem:[%s3372] sm:$0xff] %v3369
  %3374 = vmatprep.subr.mxu0 %v116
  %3375 = vmatpush1.msra.mxu0 %v115
  %3376 = vmatprep.subr.mxu0 %v120
  %3377 = vmatpush1.msra.mxu0 %v119
  %3378 = vmatprep.subr.mxu0 %v124
  %3379 = vmatpush1.msra.mxu0 %v123
  %3380 = vmatprep.subr.mxu0 %v128
  %3381 = vmatpush1.msra.mxu0 %v127
  %3382 = vmatprep.subr.mxu0 %v132
  %3383 = vmatpush1.msra.mxu0 %v131
  %3384 = vmatprep.subr.mxu0 %v136
  %3385 = vmatpush1.msra.mxu0 %v135
  %3386 = vmatprep.subr.mxu0 %v140
  %3387 = vmatpush1.msra.mxu0 %v139
  %3388 = vmatprep.subr.mxu0 %v144
  %3389 = vmatpush1.msra.mxu0 %v143
  %3390 = vmatprep.subr.mxu0 %v148
  %3391 = vmatpush1.msra.mxu0 %v147
  %3392 = vmatprep.subr.mxu0 %v152
  %3393 = vmatpush1.msra.mxu0 %v151
  %3394 = vmatprep.subr.mxu0 %v156
  %3395 = vmatpush1.msra.mxu0 %v155
  %3396 = vmatprep.subr.mxu0 %v160
  %3397 = vmatpush1.msra.mxu0 %v159
  %3398 = vmatprep.subr.mxu0 %v164
  %3399 = vmatpush1.msra.mxu0 %v163
  %3400 = vmatprep.subr.mxu0 %v168
  %3401 = vmatpush1.msra.mxu0 %v167
  %3402 = vmatprep.subr.mxu0 %v172
  %3403 = vmatpush1.msra.mxu0 %v171
  %3404 = vmatprep.subr.mxu0 %v176
  %3405 = vmatpush1.msra.mxu0 %v175
  %3406 = vmatprep.subr.mxu0 %v180
  %3407 = vmatpush1.msra.mxu0 %v179
  %3408 = vmatprep.subr.mxu0 %v184
  %3409 = vmatpush1.msra.mxu0 %v183
  %3410 = vmatprep.subr.mxu0 %v188
  %3411 = vmatpush1.msra.mxu0 %v187
  %3412 = vmatprep.subr.mxu0 %v192
  %3413 = vmatpush1.msra.mxu0 %v191
  %3414 = vmatprep.subr.mxu0 %v196
  %3415 = vmatpush1.msra.mxu0 %v195
  %3416 = vmatprep.subr.mxu0 %v200
  %3417 = vmatpush1.msra.mxu0 %v199
  %3418 = vmatprep.subr.mxu0 %v204
  %3419 = vmatpush1.msra.mxu0 %v203
  %3420 = vmatprep.subr.mxu0 %v208
  %3421 = vmatpush1.msra.mxu0 %v207
  %3422 = vmatprep.subr.mxu0 %v212
  %3423 = vmatpush1.msra.mxu0 %v211
  %3424 = vmatprep.subr.mxu0 %v216
  %3425 = vmatpush1.msra.mxu0 %v215
  %3426 = vmatprep.subr.mxu0 %v220
  %3427 = vmatpush1.msra.mxu0 %v219
  %3428 = vmatprep.subr.mxu0 %v224
  %3429 = vmatpush1.msra.mxu0 %v223
  %3430 = vmatprep.subr.mxu0 %v228
  %3431 = vmatpush1.msra.mxu0 %v227
  %3432 = vmatprep.subr.mxu0 %v232
  %3433 = vmatpush1.msra.mxu0 %v231
  %3434 = vmatprep.subr.mxu0 %v236
  %3435 = vmatpush1.msra.mxu0 %v235
  %3436 = vmatprep.subr.mxu0 %v240
  %3437 = vmatpush1.msra.mxu0 %v239
  %3438 = vmatprep.mubr.f32.mxu0 %v3301
  %3439 = vmatmul.mubr.f32.gmra.mrb[0].mxu0 %v3369
  %v3440 = vpop.f32.mrb[0].mxu0
  %v3441 = vadd.f32 %v248, %v3440
  %v3442 = vpop.f32.mrb[0].mxu0
  %v3443 = vadd.f32 %v252, %v3442
  %3444 = vdwg.mxu0
  %3445 = vmatprep.subr.mxu0 %v118
  %3446 = vmatpush1.msra.mxu0 %v117
  %3447 = vmatprep.subr.mxu0 %v122
  %3448 = vmatpush1.msra.mxu0 %v121
  %3449 = vmatprep.subr.mxu0 %v126
  %3450 = vmatpush1.msra.mxu0 %v125
  %3451 = vmatprep.subr.mxu0 %v130
  %3452 = vmatpush1.msra.mxu0 %v129
  %3453 = vmatprep.subr.mxu0 %v134
  %3454 = vmatpush1.msra.mxu0 %v133
  %3455 = vmatprep.subr.mxu0 %v138
  %3456 = vmatpush1.msra.mxu0 %v137
  %3457 = vmatprep.subr.mxu0 %v142
  %3458 = vmatpush1.msra.mxu0 %v141
  %3459 = vmatprep.subr.mxu0 %v146
  %3460 = vmatpush1.msra.mxu0 %v145
  %3461 = vmatprep.subr.mxu0 %v150
  %3462 = vmatpush1.msra.mxu0 %v149
  %3463 = vmatprep.subr.mxu0 %v154
  %3464 = vmatpush1.msra.mxu0 %v153
  %3465 = vmatprep.subr.mxu0 %v158
  %3466 = vmatpush1.msra.mxu0 %v157
  %3467 = vmatprep.subr.mxu0 %v162
  %3468 = vmatpush1.msra.mxu0 %v161
  %3469 = vmatprep.subr.mxu0 %v166
  %3470 = vmatpush1.msra.mxu0 %v165
  %3471 = vmatprep.subr.mxu0 %v170
  %3472 = vmatpush1.msra.mxu0 %v169
  %3473 = vmatprep.subr.mxu0 %v174
  %3474 = vmatpush1.msra.mxu0 %v173
  %3475 = vmatprep.subr.mxu0 %v178
  %3476 = vmatpush1.msra.mxu0 %v177
  %3477 = vmatprep.subr.mxu0 %v182
  %3478 = vmatpush1.msra.mxu0 %v181
  %3479 = vmatprep.subr.mxu0 %v186
  %3480 = vmatpush1.msra.mxu0 %v185
  %3481 = vmatprep.subr.mxu0 %v190
  %3482 = vmatpush1.msra.mxu0 %v189
  %3483 = vmatprep.subr.mxu0 %v194
  %3484 = vmatpush1.msra.mxu0 %v193
  %3485 = vmatprep.subr.mxu0 %v198
  %3486 = vmatpush1.msra.mxu0 %v197
  %3487 = vmatprep.subr.mxu0 %v202
  %3488 = vmatpush1.msra.mxu0 %v201
  %3489 = vmatprep.subr.mxu0 %v206
  %3490 = vmatpush1.msra.mxu0 %v205
  %3491 = vmatprep.subr.mxu0 %v210
  %3492 = vmatpush1.msra.mxu0 %v209
  %3493 = vmatprep.subr.mxu0 %v214
  %3494 = vmatpush1.msra.mxu0 %v213
  %3495 = vmatprep.subr.mxu0 %v218
  %3496 = vmatpush1.msra.mxu0 %v217
  %3497 = vmatprep.subr.mxu0 %v222
  %3498 = vmatpush1.msra.mxu0 %v221
  %3499 = vmatprep.subr.mxu0 %v226
  %3500 = vmatpush1.msra.mxu0 %v225
  %3501 = vmatprep.subr.mxu0 %v230
  %3502 = vmatpush1.msra.mxu0 %v229
  %3503 = vmatprep.subr.mxu0 %v234
  %3504 = vmatpush1.msra.mxu0 %v233
  %3505 = vmatprep.subr.mxu0 %v238
  %3506 = vmatpush1.msra.mxu0 %v237
  %3507 = vmatprep.subr.mxu0 %v242
  %3508 = vmatpush1.msra.mxu0 %v241
  %3509 = vmatprep.mubr.f32.mxu0 %v3301
  %3510 = vmatmul.mubr.f32.gmra.mrb[0].mxu0 %v3369
  %v3511 = vpop.f32.mrb[0].mxu0
  %v3512 = vadd.f32 %v256, %v3511
  %v3513 = vpop.f32.mrb[0].mxu0
  %v3514 = vadd.f32 %v260, %v3513
  %3515 = vdwg.mxu0
  %v3516 = vxor.u32 %v3441, 2147483648
  %v3517 = vmul.f32 %v3516, 1.442695
  %v3518 = vpow.pop %v3517
  %v3519 = vadd.f32 %v3518, 1.0
  %v3520 = vrcp.pop %v3519
  %v3521 = vmul.f32 1.0, %v3520
  %v3522 = vxor.u32 %v3443, 2147483648
  %v3523 = vmul.f32 %v3522, 1.442695
  %v3524 = vpow.pop %v3523
  %v3525 = vadd.f32 %v3524, 1.0
  %v3526 = vrcp.pop %v3525
  %v3527 = vmul.f32 1.0, %v3526
  %v3528 = vtanh.pop %v3512
  %v3529 = vxor.u32 %v3514, 2147483648
  %v3530 = vmul.f32 %v3529, 1.442695
  %v3531 = vpow.pop %v3530
  %v3532 = vadd.f32 %v3531, 1.0
  %v3533 = vrcp.pop %v3532
  %v3534 = vmul.f32 1.0, %v3533
  %v3535 = vmul.f32 %v3527, %v3299
  %v3536 = vmul.f32 %v3521, %v3528
  %v3537 = vadd.f32 %v3535, %v3536
  %v3538 = vtanh.pop %v3537
  %v3539 = vmul.f32 %v3534, %v3538
  %3540 = vmatprep.subr.mxu0 0.0
  %3541 = vmatpush1.msra.mxu0 %v265
  %3542 = vmatprep.subr.mxu0 0.0
  %3543 = vmatpush1.msra.mxu0 %v266
  %3544 = vmatprep.subr.mxu0 0.0
  %3545 = vmatpush1.msra.mxu0 %v267
  %3546 = vmatprep.subr.mxu0 0.0
  %3547 = vmatpush1.msra.mxu0 %v268
  %3548 = vmatprep.subr.mxu0 0.0
  %3549 = vmatpush1.msra.mxu0 %v269
  %3550 = vmatprep.subr.mxu0 0.0
  %3551 = vmatpush1.msra.mxu0 %v270
  %3552 = vmatprep.subr.mxu0 0.0
  %3553 = vmatpush1.msra.mxu0 %v271
  %3554 = vmatprep.subr.mxu0 0.0
  %3555 = vmatpush1.msra.mxu0 %v272
  %3556 = vmatprep.subr.mxu0 0.0
  %3557 = vmatpush1.msra.mxu0 %v273
  %3558 = vmatprep.subr.mxu0 0.0
  %3559 = vmatpush1.msra.mxu0 %v274
  %3560 = vmatprep.subr.mxu0 0.0
  %3561 = vmatpush1.msra.mxu0 %v275
  %3562 = vmatprep.subr.mxu0 0.0
  %3563 = vmatpush1.msra.mxu0 %v276
  %3564 = vmatprep.subr.mxu0 0.0
  %3565 = vmatpush1.msra.mxu0 %v277
  %3566 = vmatprep.subr.mxu0 0.0
  %3567 = vmatpush1.msra.mxu0 %v278
  %3568 = vmatprep.subr.mxu0 0.0
  %3569 = vmatpush1.msra.mxu0 %v279
  %3570 = vmatprep.subr.mxu0 0.0
  %3571 = vmatpush1.msra.mxu0 %v280
  %3572 = vmatprep.subr.mxu0 0.0
  %3573 = vmatpush1.msra.mxu0 0.0
  %3574 = vmatprep.subr.mxu0 0.0
  %3575 = vmatpush1.msra.mxu0 0.0
  %3576 = vmatprep.subr.mxu0 0.0
  %3577 = vmatpush1.msra.mxu0 0.0
  %3578 = vmatprep.subr.mxu0 0.0
  %3579 = vmatpush1.msra.mxu0 0.0
  %3580 = vmatprep.subr.mxu0 0.0
  %3581 = vmatpush1.msra.mxu0 0.0
  %3582 = vmatprep.subr.mxu0 0.0
  %3583 = vmatpush1.msra.mxu0 0.0
  %3584 = vmatprep.subr.mxu0 0.0
  %3585 = vmatpush1.msra.mxu0 0.0
  %3586 = vmatprep.subr.mxu0 0.0
  %3587 = vmatpush1.msra.mxu0 0.0
  %3588 = vmatprep.subr.mxu0 0.0
  %3589 = vmatpush1.msra.mxu0 0.0
  %3590 = vmatprep.subr.mxu0 0.0
  %3591 = vmatpush1.msra.mxu0 0.0
  %3592 = vmatprep.subr.mxu0 0.0
  %3593 = vmatpush1.msra.mxu0 0.0
  %3594 = vmatprep.subr.mxu0 0.0
  %3595 = vmatpush1.msra.mxu0 0.0
  %3596 = vmatprep.subr.mxu0 0.0
  %3597 = vmatpush1.msra.mxu0 0.0
  %3598 = vmatprep.subr.mxu0 0.0
  %3599 = vmatpush1.msra.mxu0 0.0
  %3600 = vmatprep.subr.mxu0 0.0
  %3601 = vmatpush1.msra.mxu0 0.0
  %3602 = vmatprep.subr.mxu0 0.0
  %3603 = vmatpush1.msra.mxu0 0.0
  %3604 = vmatprep.mubr.f32.mxu0 0.0
  %3605 = vmatmul.mubr.f32.gmra.mrb[0].mxu0 %v3539
  %v3606 = vpop.f32.mrb[0].mxu0
  %v3607 = vadd.f32 %v286, %v3606
  %v3608 = vpop.f32.mrb[0].mxu0
  %3609 = vdwg.mxu0
  %s3610 = scalar_lea.vmem %s8, 48
  %3611 = vst [vmem:[%s3610] sm:$0xff] %v3607
  %3612 = vmatprep.subr.mxu0 %v116
  %3613 = vmatpush1.msra.mxu0 %v115
  %3614 = vmatprep.subr.mxu0 %v120
  %3615 = vmatpush1.msra.mxu0 %v119
  %3616 = vmatprep.subr.mxu0 %v124
  %3617 = vmatpush1.msra.mxu0 %v123
  %3618 = vmatprep.subr.mxu0 %v128
  %3619 = vmatpush1.msra.mxu0 %v127
  %3620 = vmatprep.subr.mxu0 %v132
  %3621 = vmatpush1.msra.mxu0 %v131
  %3622 = vmatprep.subr.mxu0 %v136
  %3623 = vmatpush1.msra.mxu0 %v135
  %3624 = vmatprep.subr.mxu0 %v140
  %3625 = vmatpush1.msra.mxu0 %v139
  %3626 = vmatprep.subr.mxu0 %v144
  %3627 = vmatpush1.msra.mxu0 %v143
  %3628 = vmatprep.subr.mxu0 %v148
  %3629 = vmatpush1.msra.mxu0 %v147
  %3630 = vmatprep.subr.mxu0 %v152
  %3631 = vmatpush1.msra.mxu0 %v151
  %3632 = vmatprep.subr.mxu0 %v156
  %3633 = vmatpush1.msra.mxu0 %v155
  %3634 = vmatprep.subr.mxu0 %v160
  %3635 = vmatpush1.msra.mxu0 %v159
  %3636 = vmatprep.subr.mxu0 %v164
  %3637 = vmatpush1.msra.mxu0 %v163
  %3638 = vmatprep.subr.mxu0 %v168
  %3639 = vmatpush1.msra.mxu0 %v167
  %3640 = vmatprep.subr.mxu0 %v172
  %3641 = vmatpush1.msra.mxu0 %v171
  %3642 = vmatprep.subr.mxu0 %v176
  %3643 = vmatpush1.msra.mxu0 %v175
  %3644 = vmatprep.subr.mxu0 %v180
  %3645 = vmatpush1.msra.mxu0 %v179
  %3646 = vmatprep.subr.mxu0 %v184
  %3647 = vmatpush1.msra.mxu0 %v183
  %3648 = vmatprep.subr.mxu0 %v188
  %3649 = vmatpush1.msra.mxu0 %v187
  %3650 = vmatprep.subr.mxu0 %v192
  %3651 = vmatpush1.msra.mxu0 %v191
  %3652 = vmatprep.subr.mxu0 %v196
  %3653 = vmatpush1.msra.mxu0 %v195
  %3654 = vmatprep.subr.mxu0 %v200
  %3655 = vmatpush1.msra.mxu0 %v199
  %3656 = vmatprep.subr.mxu0 %v204
  %3657 = vmatpush1.msra.mxu0 %v203
  %3658 = vmatprep.subr.mxu0 %v208
  %3659 = vmatpush1.msra.mxu0 %v207
  %3660 = vmatprep.subr.mxu0 %v212
  %3661 = vmatpush1.msra.mxu0 %v211
  %3662 = vmatprep.subr.mxu0 %v216
  %3663 = vmatpush1.msra.mxu0 %v215
  %3664 = vmatprep.subr.mxu0 %v220
  %3665 = vmatpush1.msra.mxu0 %v219
  %3666 = vmatprep.subr.mxu0 %v224
  %3667 = vmatpush1.msra.mxu0 %v223
  %3668 = vmatprep.subr.mxu0 %v228
  %3669 = vmatpush1.msra.mxu0 %v227
  %3670 = vmatprep.subr.mxu0 %v232
  %3671 = vmatpush1.msra.mxu0 %v231
  %3672 = vmatprep.subr.mxu0 %v236
  %3673 = vmatpush1.msra.mxu0 %v235
  %3674 = vmatprep.subr.mxu0 %v240
  %3675 = vmatpush1.msra.mxu0 %v239
  %3676 = vmatprep.mubr.f32.mxu0 %v3539
  %3677 = vmatmul.mubr.f32.gmra.mrb[0].mxu0 %v3607
  %v3678 = vpop.f32.mrb[0].mxu0
  %v3679 = vadd.f32 %v248, %v3678
  %v3680 = vpop.f32.mrb[0].mxu0
  %v3681 = vadd.f32 %v252, %v3680
  %3682 = vdwg.mxu0
  %3683 = vmatprep.subr.mxu0 %v118
  %3684 = vmatpush1.msra.mxu0 %v117
  %3685 = vmatprep.subr.mxu0 %v122
  %3686 = vmatpush1.msra.mxu0 %v121
  %3687 = vmatprep.subr.mxu0 %v126
  %3688 = vmatpush1.msra.mxu0 %v125
  %3689 = vmatprep.subr.mxu0 %v130
  %3690 = vmatpush1.msra.mxu0 %v129
  %3691 = vmatprep.subr.mxu0 %v134
  %3692 = vmatpush1.msra.mxu0 %v133
  %3693 = vmatprep.subr.mxu0 %v138
  %3694 = vmatpush1.msra.mxu0 %v137
  %3695 = vmatprep.subr.mxu0 %v142
  %3696 = vmatpush1.msra.mxu0 %v141
  %3697 = vmatprep.subr.mxu0 %v146
  %3698 = vmatpush1.msra.mxu0 %v145
  %3699 = vmatprep.subr.mxu0 %v150
  %3700 = vmatpush1.msra.mxu0 %v149
  %3701 = vmatprep.subr.mxu0 %v154
  %3702 = vmatpush1.msra.mxu0 %v153
  %3703 = vmatprep.subr.mxu0 %v158
  %3704 = vmatpush1.msra.mxu0 %v157
  %3705 = vmatprep.subr.mxu0 %v162
  %3706 = vmatpush1.msra.mxu0 %v161
  %3707 = vmatprep.subr.mxu0 %v166
  %3708 = vmatpush1.msra.mxu0 %v165
  %3709 = vmatprep.subr.mxu0 %v170
  %3710 = vmatpush1.msra.mxu0 %v169
  %3711 = vmatprep.subr.mxu0 %v174
  %3712 = vmatpush1.msra.mxu0 %v173
  %3713 = vmatprep.subr.mxu0 %v178
  %3714 = vmatpush1.msra.mxu0 %v177
  %3715 = vmatprep.subr.mxu0 %v182
  %3716 = vmatpush1.msra.mxu0 %v181
  %3717 = vmatprep.subr.mxu0 %v186
  %3718 = vmatpush1.msra.mxu0 %v185
  %3719 = vmatprep.subr.mxu0 %v190
  %3720 = vmatpush1.msra.mxu0 %v189
  %3721 = vmatprep.subr.mxu0 %v194
  %3722 = vmatpush1.msra.mxu0 %v193
  %3723 = vmatprep.subr.mxu0 %v198
  %3724 = vmatpush1.msra.mxu0 %v197
  %3725 = vmatprep.subr.mxu0 %v202
  %3726 = vmatpush1.msra.mxu0 %v201
  %3727 = vmatprep.subr.mxu0 %v206
  %3728 = vmatpush1.msra.mxu0 %v205
  %3729 = vmatprep.subr.mxu0 %v210
  %3730 = vmatpush1.msra.mxu0 %v209
  %3731 = vmatprep.subr.mxu0 %v214
  %3732 = vmatpush1.msra.mxu0 %v213
  %3733 = vmatprep.subr.mxu0 %v218
  %3734 = vmatpush1.msra.mxu0 %v217
  %3735 = vmatprep.subr.mxu0 %v222
  %3736 = vmatpush1.msra.mxu0 %v221
  %3737 = vmatprep.subr.mxu0 %v226
  %3738 = vmatpush1.msra.mxu0 %v225
  %3739 = vmatprep.subr.mxu0 %v230
  %3740 = vmatpush1.msra.mxu0 %v229
  %3741 = vmatprep.subr.mxu0 %v234
  %3742 = vmatpush1.msra.mxu0 %v233
  %3743 = vmatprep.subr.mxu0 %v238
  %3744 = vmatpush1.msra.mxu0 %v237
  %3745 = vmatprep.subr.mxu0 %v242
  %3746 = vmatpush1.msra.mxu0 %v241
  %3747 = vmatprep.mubr.f32.mxu0 %v3539
  %3748 = vmatmul.mubr.f32.gmra.mrb[0].mxu0 %v3607
  %v3749 = vpop.f32.mrb[0].mxu0
  %v3750 = vadd.f32 %v256, %v3749
  %v3751 = vpop.f32.mrb[0].mxu0
  %v3752 = vadd.f32 %v260, %v3751
  %3753 = vdwg.mxu0
  %v3754 = vxor.u32 %v3679, 2147483648
  %v3755 = vmul.f32 %v3754, 1.442695
  %v3756 = vpow.pop %v3755
  %v3757 = vadd.f32 %v3756, 1.0
  %v3758 = vrcp.pop %v3757
  %v3759 = vmul.f32 1.0, %v3758
  %v3760 = vxor.u32 %v3681, 2147483648
  %v3761 = vmul.f32 %v3760, 1.442695
  %v3762 = vpow.pop %v3761
  %v3763 = vadd.f32 %v3762, 1.0
  %v3764 = vrcp.pop %v3763
  %v3765 = vmul.f32 1.0, %v3764
  %v3766 = vtanh.pop %v3750
  %v3767 = vxor.u32 %v3752, 2147483648
  %v3768 = vmul.f32 %v3767, 1.442695
  %v3769 = vpow.pop %v3768
  %v3770 = vadd.f32 %v3769, 1.0
  %v3771 = vrcp.pop %v3770
  %v3772 = vmul.f32 1.0, %v3771
  %v3773 = vmul.f32 %v3765, %v3537
  %v3774 = vmul.f32 %v3759, %v3766
  %v3775 = vadd.f32 %v3773, %v3774
  %v3776 = vtanh.pop %v3775
  %v3777 = vmul.f32 %v3772, %v3776
  %3778 = vmatprep.subr.mxu0 0.0
  %3779 = vmatpush1.msra.mxu0 %v265
  %3780 = vmatprep.subr.mxu0 0.0
  %3781 = vmatpush1.msra.mxu0 %v266
  %3782 = vmatprep.subr.mxu0 0.0
  %3783 = vmatpush1.msra.mxu0 %v267
  %3784 = vmatprep.subr.mxu0 0.0
  %3785 = vmatpush1.msra.mxu0 %v268
  %3786 = vmatprep.subr.mxu0 0.0
  %3787 = vmatpush1.msra.mxu0 %v269
  %3788 = vmatprep.subr.mxu0 0.0
  %3789 = vmatpush1.msra.mxu0 %v270
  %3790 = vmatprep.subr.mxu0 0.0
  %3791 = vmatpush1.msra.mxu0 %v271
  %3792 = vmatprep.subr.mxu0 0.0
  %3793 = vmatpush1.msra.mxu0 %v272
  %3794 = vmatprep.subr.mxu0 0.0
  %3795 = vmatpush1.msra.mxu0 %v273
  %3796 = vmatprep.subr.mxu0 0.0
  %3797 = vmatpush1.msra.mxu0 %v274
  %3798 = vmatprep.subr.mxu0 0.0
  %3799 = vmatpush1.msra.mxu0 %v275
  %3800 = vmatprep.subr.mxu0 0.0
  %3801 = vmatpush1.msra.mxu0 %v276
  %3802 = vmatprep.subr.mxu0 0.0
  %3803 = vmatpush1.msra.mxu0 %v277
  %3804 = vmatprep.subr.mxu0 0.0
  %3805 = vmatpush1.msra.mxu0 %v278
  %3806 = vmatprep.subr.mxu0 0.0
  %3807 = vmatpush1.msra.mxu0 %v279
  %3808 = vmatprep.subr.mxu0 0.0
  %3809 = vmatpush1.msra.mxu0 %v280
  %3810 = vmatprep.subr.mxu0 0.0
  %3811 = vmatpush1.msra.mxu0 0.0
  %3812 = vmatprep.subr.mxu0 0.0
  %3813 = vmatpush1.msra.mxu0 0.0
  %3814 = vmatprep.subr.mxu0 0.0
  %3815 = vmatpush1.msra.mxu0 0.0
  %3816 = vmatprep.subr.mxu0 0.0
  %3817 = vmatpush1.msra.mxu0 0.0
  %3818 = vmatprep.subr.mxu0 0.0
  %3819 = vmatpush1.msra.mxu0 0.0
  %3820 = vmatprep.subr.mxu0 0.0
  %3821 = vmatpush1.msra.mxu0 0.0
  %3822 = vmatprep.subr.mxu0 0.0
  %3823 = vmatpush1.msra.mxu0 0.0
  %3824 = vmatprep.subr.mxu0 0.0
  %3825 = vmatpush1.msra.mxu0 0.0
  %3826 = vmatprep.subr.mxu0 0.0
  %3827 = vmatpush1.msra.mxu0 0.0
  %3828 = vmatprep.subr.mxu0 0.0
  %3829 = vmatpush1.msra.mxu0 0.0
  %3830 = vmatprep.subr.mxu0 0.0
  %3831 = vmatpush1.msra.mxu0 0.0
  %3832 = vmatprep.subr.mxu0 0.0
  %3833 = vmatpush1.msra.mxu0 0.0
  %3834 = vmatprep.subr.mxu0 0.0
  %3835 = vmatpush1.msra.mxu0 0.0
  %3836 = vmatprep.subr.mxu0 0.0
  %3837 = vmatpush1.msra.mxu0 0.0
  %3838 = vmatprep.subr.mxu0 0.0
  %3839 = vmatpush1.msra.mxu0 0.0
  %3840 = vmatprep.subr.mxu0 0.0
  %3841 = vmatpush1.msra.mxu0 0.0
  %3842 = vmatprep.mubr.f32.mxu0 0.0
  %3843 = vmatmul.mubr.f32.gmra.mrb[0].mxu0 %v3777
  %v3844 = vpop.f32.mrb[0].mxu0
  %v3845 = vadd.f32 %v286, %v3844
  %v3846 = vpop.f32.mrb[0].mxu0
  %3847 = vdwg.mxu0
  %s3848 = scalar_lea.vmem %s8, 56
  %3849 = vst [vmem:[%s3848] sm:$0xff] %v3845
  %3850 = vmatprep.subr.mxu0 %v116
  %3851 = vmatpush1.msra.mxu0 %v115
  %3852 = vmatprep.subr.mxu0 %v120
  %3853 = vmatpush1.msra.mxu0 %v119
  %3854 = vmatprep.subr.mxu0 %v124
  %3855 = vmatpush1.msra.mxu0 %v123
  %3856 = vmatprep.subr.mxu0 %v128
  %3857 = vmatpush1.msra.mxu0 %v127
  %3858 = vmatprep.subr.mxu0 %v132
  %3859 = vmatpush1.msra.mxu0 %v131
  %3860 = vmatprep.subr.mxu0 %v136
  %3861 = vmatpush1.msra.mxu0 %v135
  %3862 = vmatprep.subr.mxu0 %v140
  %3863 = vmatpush1.msra.mxu0 %v139
  %3864 = vmatprep.subr.mxu0 %v144
  %3865 = vmatpush1.msra.mxu0 %v143
  %3866 = vmatprep.subr.mxu0 %v148
  %3867 = vmatpush1.msra.mxu0 %v147
  %3868 = vmatprep.subr.mxu0 %v152
  %3869 = vmatpush1.msra.mxu0 %v151
  %3870 = vmatprep.subr.mxu0 %v156
  %3871 = vmatpush1.msra.mxu0 %v155
  %3872 = vmatprep.subr.mxu0 %v160
  %3873 = vmatpush1.msra.mxu0 %v159
  %3874 = vmatprep.subr.mxu0 %v164
  %3875 = vmatpush1.msra.mxu0 %v163
  %3876 = vmatprep.subr.mxu0 %v168
  %3877 = vmatpush1.msra.mxu0 %v167
  %3878 = vmatprep.subr.mxu0 %v172
  %3879 = vmatpush1.msra.mxu0 %v171
  %3880 = vmatprep.subr.mxu0 %v176
  %3881 = vmatpush1.msra.mxu0 %v175
  %3882 = vmatprep.subr.mxu0 %v180
  %3883 = vmatpush1.msra.mxu0 %v179
  %3884 = vmatprep.subr.mxu0 %v184
  %3885 = vmatpush1.msra.mxu0 %v183
  %3886 = vmatprep.subr.mxu0 %v188
  %3887 = vmatpush1.msra.mxu0 %v187
  %3888 = vmatprep.subr.mxu0 %v192
  %3889 = vmatpush1.msra.mxu0 %v191
  %3890 = vmatprep.subr.mxu0 %v196
  %3891 = vmatpush1.msra.mxu0 %v195
  %3892 = vmatprep.subr.mxu0 %v200
  %3893 = vmatpush1.msra.mxu0 %v199
  %3894 = vmatprep.subr.mxu0 %v204
  %3895 = vmatpush1.msra.mxu0 %v203
  %3896 = vmatprep.subr.mxu0 %v208
  %3897 = vmatpush1.msra.mxu0 %v207
  %3898 = vmatprep.subr.mxu0 %v212
  %3899 = vmatpush1.msra.mxu0 %v211
  %3900 = vmatprep.subr.mxu0 %v216
  %3901 = vmatpush1.msra.mxu0 %v215
  %3902 = vmatprep.subr.mxu0 %v220
  %3903 = vmatpush1.msra.mxu0 %v219
  %3904 = vmatprep.subr.mxu0 %v224
  %3905 = vmatpush1.msra.mxu0 %v223
  %3906 = vmatprep.subr.mxu0 %v228
  %3907 = vmatpush1.msra.mxu0 %v227
  %3908 = vmatprep.subr.mxu0 %v232
  %3909 = vmatpush1.msra.mxu0 %v231
  %3910 = vmatprep.subr.mxu0 %v236
  %3911 = vmatpush1.msra.mxu0 %v235
  %3912 = vmatprep.subr.mxu0 %v240
  %3913 = vmatpush1.msra.mxu0 %v239
  %3914 = vmatprep.mubr.f32.mxu0 %v3777
  %3915 = vmatmul.mubr.f32.gmra.mrb[0].mxu0 %v3845
  %v3916 = vpop.f32.mrb[0].mxu0
  %v3917 = vadd.f32 %v248, %v3916
  %v3918 = vpop.f32.mrb[0].mxu0
  %v3919 = vadd.f32 %v252, %v3918
  %3920 = vdwg.mxu0
  %3921 = vmatprep.subr.mxu0 %v118
  %3922 = vmatpush1.msra.mxu0 %v117
  %3923 = vmatprep.subr.mxu0 %v122
  %3924 = vmatpush1.msra.mxu0 %v121
  %3925 = vmatprep.subr.mxu0 %v126
  %3926 = vmatpush1.msra.mxu0 %v125
  %3927 = vmatprep.subr.mxu0 %v130
  %3928 = vmatpush1.msra.mxu0 %v129
  %3929 = vmatprep.subr.mxu0 %v134
  %3930 = vmatpush1.msra.mxu0 %v133
  %3931 = vmatprep.subr.mxu0 %v138
  %3932 = vmatpush1.msra.mxu0 %v137
  %3933 = vmatprep.subr.mxu0 %v142
  %3934 = vmatpush1.msra.mxu0 %v141
  %3935 = vmatprep.subr.mxu0 %v146
  %3936 = vmatpush1.msra.mxu0 %v145
  %3937 = vmatprep.subr.mxu0 %v150
  %3938 = vmatpush1.msra.mxu0 %v149
  %3939 = vmatprep.subr.mxu0 %v154
  %3940 = vmatpush1.msra.mxu0 %v153
  %3941 = vmatprep.subr.mxu0 %v158
  %3942 = vmatpush1.msra.mxu0 %v157
  %3943 = vmatprep.subr.mxu0 %v162
  %3944 = vmatpush1.msra.mxu0 %v161
  %3945 = vmatprep.subr.mxu0 %v166
  %3946 = vmatpush1.msra.mxu0 %v165
  %3947 = vmatprep.subr.mxu0 %v170
  %3948 = vmatpush1.msra.mxu0 %v169
  %3949 = vmatprep.subr.mxu0 %v174
  %3950 = vmatpush1.msra.mxu0 %v173
  %3951 = vmatprep.subr.mxu0 %v178
  %3952 = vmatpush1.msra.mxu0 %v177
  %3953 = vmatprep.subr.mxu0 %v182
  %3954 = vmatpush1.msra.mxu0 %v181
  %3955 = vmatprep.subr.mxu0 %v186
  %3956 = vmatpush1.msra.mxu0 %v185
  %3957 = vmatprep.subr.mxu0 %v190
  %3958 = vmatpush1.msra.mxu0 %v189
  %3959 = vmatprep.subr.mxu0 %v194
  %3960 = vmatpush1.msra.mxu0 %v193
  %3961 = vmatprep.subr.mxu0 %v198
  %3962 = vmatpush1.msra.mxu0 %v197
  %3963 = vmatprep.subr.mxu0 %v202
  %3964 = vmatpush1.msra.mxu0 %v201
  %3965 = vmatprep.subr.mxu0 %v206
  %3966 = vmatpush1.msra.mxu0 %v205
  %3967 = vmatprep.subr.mxu0 %v210
  %3968 = vmatpush1.msra.mxu0 %v209
  %3969 = vmatprep.subr.mxu0 %v214
  %3970 = vmatpush1.msra.mxu0 %v213
  %3971 = vmatprep.subr.mxu0 %v218
  %3972 = vmatpush1.msra.mxu0 %v217
  %3973 = vmatprep.subr.mxu0 %v222
  %3974 = vmatpush1.msra.mxu0 %v221
  %3975 = vmatprep.subr.mxu0 %v226
  %3976 = vmatpush1.msra.mxu0 %v225
  %3977 = vmatprep.subr.mxu0 %v230
  %3978 = vmatpush1.msra.mxu0 %v229
  %3979 = vmatprep.subr.mxu0 %v234
  %3980 = vmatpush1.msra.mxu0 %v233
  %3981 = vmatprep.subr.mxu0 %v238
  %3982 = vmatpush1.msra.mxu0 %v237
  %3983 = vmatprep.subr.mxu0 %v242
  %3984 = vmatpush1.msra.mxu0 %v241
  %3985 = vmatprep.mubr.f32.mxu0 %v3777
  %3986 = vmatmul.mubr.f32.gmra.mrb[0].mxu0 %v3845
  %v3987 = vpop.f32.mrb[0].mxu0
  %v3988 = vadd.f32 %v256, %v3987
  %v3989 = vpop.f32.mrb[0].mxu0
  %v3990 = vadd.f32 %v260, %v3989
  %3991 = vdwg.mxu0
  %v3992 = vxor.u32 %v3917, 2147483648
  %v3993 = vmul.f32 %v3992, 1.442695
  %v3994 = vpow.pop %v3993
  %v3995 = vadd.f32 %v3994, 1.0
  %v3996 = vrcp.pop %v3995
  %v3997 = vmul.f32 1.0, %v3996
  %v3998 = vxor.u32 %v3919, 2147483648
  %v3999 = vmul.f32 %v3998, 1.442695
  %v4000 = vpow.pop %v3999
  %v4001 = vadd.f32 %v4000, 1.0
  %v4002 = vrcp.pop %v4001
  %v4003 = vmul.f32 1.0, %v4002
  %v4004 = vtanh.pop %v3988
  %v4005 = vxor.u32 %v3990, 2147483648
  %v4006 = vmul.f32 %v4005, 1.442695
  %v4007 = vpow.pop %v4006
  %v4008 = vadd.f32 %v4007, 1.0
  %v4009 = vrcp.pop %v4008
  %v4010 = vmul.f32 1.0, %v4009
  %v4011 = vmul.f32 %v4003, %v3775
  %v4012 = vmul.f32 %v3997, %v4004
  %v4013 = vadd.f32 %v4011, %v4012
  %v4014 = vtanh.pop %v4013
  %v4015 = vmul.f32 %v4010, %v4014
  %4016 = vmatprep.subr.mxu0 0.0
  %4017 = vmatpush1.msra.mxu0 %v265
  %4018 = vmatprep.subr.mxu0 0.0
  %4019 = vmatpush1.msra.mxu0 %v266
  %4020 = vmatprep.subr.mxu0 0.0
  %4021 = vmatpush1.msra.mxu0 %v267
  %4022 = vmatprep.subr.mxu0 0.0
  %4023 = vmatpush1.msra.mxu0 %v268
  %4024 = vmatprep.subr.mxu0 0.0
  %4025 = vmatpush1.msra.mxu0 %v269
  %4026 = vmatprep.subr.mxu0 0.0
  %4027 = vmatpush1.msra.mxu0 %v270
  %4028 = vmatprep.subr.mxu0 0.0
  %4029 = vmatpush1.msra.mxu0 %v271
  %4030 = vmatprep.subr.mxu0 0.0
  %4031 = vmatpush1.msra.mxu0 %v272
  %4032 = vmatprep.subr.mxu0 0.0
  %4033 = vmatpush1.msra.mxu0 %v273
  %4034 = vmatprep.subr.mxu0 0.0
  %4035 = vmatpush1.msra.mxu0 %v274
  %4036 = vmatprep.subr.mxu0 0.0
  %4037 = vmatpush1.msra.mxu0 %v275
  %4038 = vmatprep.subr.mxu0 0.0
  %4039 = vmatpush1.msra.mxu0 %v276
  %4040 = vmatprep.subr.mxu0 0.0
  %4041 = vmatpush1.msra.mxu0 %v277
  %4042 = vmatprep.subr.mxu0 0.0
  %4043 = vmatpush1.msra.mxu0 %v278
  %4044 = vmatprep.subr.mxu0 0.0
  %4045 = vmatpush1.msra.mxu0 %v279
  %4046 = vmatprep.subr.mxu0 0.0
  %4047 = vmatpush1.msra.mxu0 %v280
  %4048 = vmatprep.subr.mxu0 0.0
  %4049 = vmatpush1.msra.mxu0 0.0
  %4050 = vmatprep.subr.mxu0 0.0
  %4051 = vmatpush1.msra.mxu0 0.0
  %4052 = vmatprep.subr.mxu0 0.0
  %4053 = vmatpush1.msra.mxu0 0.0
  %4054 = vmatprep.subr.mxu0 0.0
  %4055 = vmatpush1.msra.mxu0 0.0
  %4056 = vmatprep.subr.mxu0 0.0
  %4057 = vmatpush1.msra.mxu0 0.0
  %4058 = vmatprep.subr.mxu0 0.0
  %4059 = vmatpush1.msra.mxu0 0.0
  %4060 = vmatprep.subr.mxu0 0.0
  %4061 = vmatpush1.msra.mxu0 0.0
  %4062 = vmatprep.subr.mxu0 0.0
  %4063 = vmatpush1.msra.mxu0 0.0
  %4064 = vmatprep.subr.mxu0 0.0
  %4065 = vmatpush1.msra.mxu0 0.0
  %4066 = vmatprep.subr.mxu0 0.0
  %4067 = vmatpush1.msra.mxu0 0.0
  %4068 = vmatprep.subr.mxu0 0.0
  %4069 = vmatpush1.msra.mxu0 0.0
  %4070 = vmatprep.subr.mxu0 0.0
  %4071 = vmatpush1.msra.mxu0 0.0
  %4072 = vmatprep.subr.mxu0 0.0
  %4073 = vmatpush1.msra.mxu0 0.0
  %4074 = vmatprep.subr.mxu0 0.0
  %4075 = vmatpush1.msra.mxu0 0.0
  %4076 = vmatprep.subr.mxu0 0.0
  %4077 = vmatpush1.msra.mxu0 0.0
  %4078 = vmatprep.subr.mxu0 0.0
  %4079 = vmatpush1.msra.mxu0 0.0
  %4080 = vmatprep.mubr.f32.mxu0 0.0
  %4081 = vmatmul.mubr.f32.gmra.mrb[0].mxu0 %v4015
  %v4082 = vpop.f32.mrb[0].mxu0
  %v4083 = vadd.f32 %v286, %v4082
  %v4084 = vpop.f32.mrb[0].mxu0
  %4085 = vdwg.mxu0
  %s4086 = scalar_lea.vmem %s8, 64
  %4087 = vst [vmem:[%s4086] sm:$0xff] %v4083
  %4088 = vmatprep.subr.mxu0 %v116
  %4089 = vmatpush1.msra.mxu0 %v115
  %4090 = vmatprep.subr.mxu0 %v120
  %4091 = vmatpush1.msra.mxu0 %v119
  %4092 = vmatprep.subr.mxu0 %v124
  %4093 = vmatpush1.msra.mxu0 %v123
  %4094 = vmatprep.subr.mxu0 %v128
  %4095 = vmatpush1.msra.mxu0 %v127
  %4096 = vmatprep.subr.mxu0 %v132
  %4097 = vmatpush1.msra.mxu0 %v131
  %4098 = vmatprep.subr.mxu0 %v136
  %4099 = vmatpush1.msra.mxu0 %v135
  %4100 = vmatprep.subr.mxu0 %v140
  %4101 = vmatpush1.msra.mxu0 %v139
  %4102 = vmatprep.subr.mxu0 %v144
  %4103 = vmatpush1.msra.mxu0 %v143
  %4104 = vmatprep.subr.mxu0 %v148
  %4105 = vmatpush1.msra.mxu0 %v147
  %4106 = vmatprep.subr.mxu0 %v152
  %4107 = vmatpush1.msra.mxu0 %v151
  %4108 = vmatprep.subr.mxu0 %v156
  %4109 = vmatpush1.msra.mxu0 %v155
  %4110 = vmatprep.subr.mxu0 %v160
  %4111 = vmatpush1.msra.mxu0 %v159
  %4112 = vmatprep.subr.mxu0 %v164
  %4113 = vmatpush1.msra.mxu0 %v163
  %4114 = vmatprep.subr.mxu0 %v168
  %4115 = vmatpush1.msra.mxu0 %v167
  %4116 = vmatprep.subr.mxu0 %v172
  %4117 = vmatpush1.msra.mxu0 %v171
  %4118 = vmatprep.subr.mxu0 %v176
  %4119 = vmatpush1.msra.mxu0 %v175
  %4120 = vmatprep.subr.mxu0 %v180
  %4121 = vmatpush1.msra.mxu0 %v179
  %4122 = vmatprep.subr.mxu0 %v184
  %4123 = vmatpush1.msra.mxu0 %v183
  %4124 = vmatprep.subr.mxu0 %v188
  %4125 = vmatpush1.msra.mxu0 %v187
  %4126 = vmatprep.subr.mxu0 %v192
  %4127 = vmatpush1.msra.mxu0 %v191
  %4128 = vmatprep.subr.mxu0 %v196
  %4129 = vmatpush1.msra.mxu0 %v195
  %4130 = vmatprep.subr.mxu0 %v200
  %4131 = vmatpush1.msra.mxu0 %v199
  %4132 = vmatprep.subr.mxu0 %v204
  %4133 = vmatpush1.msra.mxu0 %v203
  %4134 = vmatprep.subr.mxu0 %v208
  %4135 = vmatpush1.msra.mxu0 %v207
  %4136 = vmatprep.subr.mxu0 %v212
  %4137 = vmatpush1.msra.mxu0 %v211
  %4138 = vmatprep.subr.mxu0 %v216
  %4139 = vmatpush1.msra.mxu0 %v215
  %4140 = vmatprep.subr.mxu0 %v220
  %4141 = vmatpush1.msra.mxu0 %v219
  %4142 = vmatprep.subr.mxu0 %v224
  %4143 = vmatpush1.msra.mxu0 %v223
  %4144 = vmatprep.subr.mxu0 %v228
  %4145 = vmatpush1.msra.mxu0 %v227
  %4146 = vmatprep.subr.mxu0 %v232
  %4147 = vmatpush1.msra.mxu0 %v231
  %4148 = vmatprep.subr.mxu0 %v236
  %4149 = vmatpush1.msra.mxu0 %v235
  %4150 = vmatprep.subr.mxu0 %v240
  %4151 = vmatpush1.msra.mxu0 %v239
  %4152 = vmatprep.mubr.f32.mxu0 %v4015
  %4153 = vmatmul.mubr.f32.gmra.mrb[0].mxu0 %v4083
  %v4154 = vpop.f32.mrb[0].mxu0
  %v4155 = vadd.f32 %v248, %v4154
  %v4156 = vpop.f32.mrb[0].mxu0
  %v4157 = vadd.f32 %v252, %v4156
  %4158 = vdwg.mxu0
  %4159 = vmatprep.subr.mxu0 %v118
  %4160 = vmatpush1.msra.mxu0 %v117
  %4161 = vmatprep.subr.mxu0 %v122
  %4162 = vmatpush1.msra.mxu0 %v121
  %4163 = vmatprep.subr.mxu0 %v126
  %4164 = vmatpush1.msra.mxu0 %v125
  %4165 = vmatprep.subr.mxu0 %v130
  %4166 = vmatpush1.msra.mxu0 %v129
  %4167 = vmatprep.subr.mxu0 %v134
  %4168 = vmatpush1.msra.mxu0 %v133
  %4169 = vmatprep.subr.mxu0 %v138
  %4170 = vmatpush1.msra.mxu0 %v137
  %4171 = vmatprep.subr.mxu0 %v142
  %4172 = vmatpush1.msra.mxu0 %v141
  %4173 = vmatprep.subr.mxu0 %v146
  %4174 = vmatpush1.msra.mxu0 %v145
  %4175 = vmatprep.subr.mxu0 %v150
  %4176 = vmatpush1.msra.mxu0 %v149
  %4177 = vmatprep.subr.mxu0 %v154
  %4178 = vmatpush1.msra.mxu0 %v153
  %4179 = vmatprep.subr.mxu0 %v158
  %4180 = vmatpush1.msra.mxu0 %v157
  %4181 = vmatprep.subr.mxu0 %v162
  %4182 = vmatpush1.msra.mxu0 %v161
  %4183 = vmatprep.subr.mxu0 %v166
  %4184 = vmatpush1.msra.mxu0 %v165
  %4185 = vmatprep.subr.mxu0 %v170
  %4186 = vmatpush1.msra.mxu0 %v169
  %4187 = vmatprep.subr.mxu0 %v174
  %4188 = vmatpush1.msra.mxu0 %v173
  %4189 = vmatprep.subr.mxu0 %v178
  %4190 = vmatpush1.msra.mxu0 %v177
  %4191 = vmatprep.subr.mxu0 %v182
  %4192 = vmatpush1.msra.mxu0 %v181
  %4193 = vmatprep.subr.mxu0 %v186
  %4194 = vmatpush1.msra.mxu0 %v185
  %4195 = vmatprep.subr.mxu0 %v190
  %4196 = vmatpush1.msra.mxu0 %v189
  %4197 = vmatprep.subr.mxu0 %v194
  %4198 = vmatpush1.msra.mxu0 %v193
  %4199 = vmatprep.subr.mxu0 %v198
  %4200 = vmatpush1.msra.mxu0 %v197
  %4201 = vmatprep.subr.mxu0 %v202
  %4202 = vmatpush1.msra.mxu0 %v201
  %4203 = vmatprep.subr.mxu0 %v206
  %4204 = vmatpush1.msra.mxu0 %v205
  %4205 = vmatprep.subr.mxu0 %v210
  %4206 = vmatpush1.msra.mxu0 %v209
  %4207 = vmatprep.subr.mxu0 %v214
  %4208 = vmatpush1.msra.mxu0 %v213
  %4209 = vmatprep.subr.mxu0 %v218
  %4210 = vmatpush1.msra.mxu0 %v217
  %4211 = vmatprep.subr.mxu0 %v222
  %4212 = vmatpush1.msra.mxu0 %v221
  %4213 = vmatprep.subr.mxu0 %v226
  %4214 = vmatpush1.msra.mxu0 %v225
  %4215 = vmatprep.subr.mxu0 %v230
  %4216 = vmatpush1.msra.mxu0 %v229
  %4217 = vmatprep.subr.mxu0 %v234
  %4218 = vmatpush1.msra.mxu0 %v233
  %4219 = vmatprep.subr.mxu0 %v238
  %4220 = vmatpush1.msra.mxu0 %v237
  %4221 = vmatprep.subr.mxu0 %v242
  %4222 = vmatpush1.msra.mxu0 %v241
  %4223 = vmatprep.mubr.f32.mxu0 %v4015
  %4224 = vmatmul.mubr.f32.gmra.mrb[0].mxu0 %v4083
  %v4225 = vpop.f32.mrb[0].mxu0
  %v4226 = vadd.f32 %v256, %v4225
  %v4227 = vpop.f32.mrb[0].mxu0
  %v4228 = vadd.f32 %v260, %v4227
  %4229 = vdwg.mxu0
  %v4230 = vxor.u32 %v4155, 2147483648
  %v4231 = vmul.f32 %v4230, 1.442695
  %v4232 = vpow.pop %v4231
  %v4233 = vadd.f32 %v4232, 1.0
  %v4234 = vrcp.pop %v4233
  %v4235 = vmul.f32 1.0, %v4234
  %v4236 = vxor.u32 %v4157, 2147483648
  %v4237 = vmul.f32 %v4236, 1.442695
  %v4238 = vpow.pop %v4237
  %v4239 = vadd.f32 %v4238, 1.0
  %v4240 = vrcp.pop %v4239
  %v4241 = vmul.f32 1.0, %v4240
  %v4242 = vtanh.pop %v4226
  %v4243 = vxor.u32 %v4228, 2147483648
  %v4244 = vmul.f32 %v4243, 1.442695
  %v4245 = vpow.pop %v4244
  %v4246 = vadd.f32 %v4245, 1.0
  %v4247 = vrcp.pop %v4246
  %v4248 = vmul.f32 1.0, %v4247
  %v4249 = vmul.f32 %v4241, %v4013
  %v4250 = vmul.f32 %v4235, %v4242
  %v4251 = vadd.f32 %v4249, %v4250
  %v4252 = vtanh.pop %v4251
  %v4253 = vmul.f32 %v4248, %v4252
  %4254 = vmatprep.subr.mxu0 0.0
  %4255 = vmatpush1.msra.mxu0 %v265
  %4256 = vmatprep.subr.mxu0 0.0
  %4257 = vmatpush1.msra.mxu0 %v266
  %4258 = vmatprep.subr.mxu0 0.0
  %4259 = vmatpush1.msra.mxu0 %v267
  %4260 = vmatprep.subr.mxu0 0.0
  %4261 = vmatpush1.msra.mxu0 %v268
  %4262 = vmatprep.subr.mxu0 0.0
  %4263 = vmatpush1.msra.mxu0 %v269
  %4264 = vmatprep.subr.mxu0 0.0
  %4265 = vmatpush1.msra.mxu0 %v270
  %4266 = vmatprep.subr.mxu0 0.0
  %4267 = vmatpush1.msra.mxu0 %v271
  %4268 = vmatprep.subr.mxu0 0.0
  %4269 = vmatpush1.msra.mxu0 %v272
  %4270 = vmatprep.subr.mxu0 0.0
  %4271 = vmatpush1.msra.mxu0 %v273
  %4272 = vmatprep.subr.mxu0 0.0
  %4273 = vmatpush1.msra.mxu0 %v274
  %4274 = vmatprep.subr.mxu0 0.0
  %4275 = vmatpush1.msra.mxu0 %v275
  %4276 = vmatprep.subr.mxu0 0.0
  %4277 = vmatpush1.msra.mxu0 %v276
  %4278 = vmatprep.subr.mxu0 0.0
  %4279 = vmatpush1.msra.mxu0 %v277
  %4280 = vmatprep.subr.mxu0 0.0
  %4281 = vmatpush1.msra.mxu0 %v278
  %4282 = vmatprep.subr.mxu0 0.0
  %4283 = vmatpush1.msra.mxu0 %v279
  %4284 = vmatprep.subr.mxu0 0.0
  %4285 = vmatpush1.msra.mxu0 %v280
  %4286 = vmatprep.subr.mxu0 0.0
  %4287 = vmatpush1.msra.mxu0 0.0
  %4288 = vmatprep.subr.mxu0 0.0
  %4289 = vmatpush1.msra.mxu0 0.0
  %4290 = vmatprep.subr.mxu0 0.0
  %4291 = vmatpush1.msra.mxu0 0.0
  %4292 = vmatprep.subr.mxu0 0.0
  %4293 = vmatpush1.msra.mxu0 0.0
  %4294 = vmatprep.subr.mxu0 0.0
  %4295 = vmatpush1.msra.mxu0 0.0
  %4296 = vmatprep.subr.mxu0 0.0
  %4297 = vmatpush1.msra.mxu0 0.0
  %4298 = vmatprep.subr.mxu0 0.0
  %4299 = vmatpush1.msra.mxu0 0.0
  %4300 = vmatprep.subr.mxu0 0.0
  %4301 = vmatpush1.msra.mxu0 0.0
  %4302 = vmatprep.subr.mxu0 0.0
  %4303 = vmatpush1.msra.mxu0 0.0
  %4304 = vmatprep.subr.mxu0 0.0
  %4305 = vmatpush1.msra.mxu0 0.0
  %4306 = vmatprep.subr.mxu0 0.0
  %4307 = vmatpush1.msra.mxu0 0.0
  %4308 = vmatprep.subr.mxu0 0.0
  %4309 = vmatpush1.msra.mxu0 0.0
  %4310 = vmatprep.subr.mxu0 0.0
  %4311 = vmatpush1.msra.mxu0 0.0
  %4312 = vmatprep.subr.mxu0 0.0
  %4313 = vmatpush1.msra.mxu0 0.0
  %4314 = vmatprep.subr.mxu0 0.0
  %4315 = vmatpush1.msra.mxu0 0.0
  %4316 = vmatprep.subr.mxu0 0.0
  %4317 = vmatpush1.msra.mxu0 0.0
  %4318 = vmatprep.mubr.f32.mxu0 0.0
  %4319 = vmatmul.mubr.f32.gmra.mrb[0].mxu0 %v4253
  %v4320 = vpop.f32.mrb[0].mxu0
  %v4321 = vadd.f32 %v286, %v4320
  %v4322 = vpop.f32.mrb[0].mxu0
  %4323 = vdwg.mxu0
  %s4324 = scalar_lea.vmem %s8, 72
  %4325 = vst [vmem:[%s4324] sm:$0xff] %v4321
  // Predicated region
  $region34: #{encoder_decoder_forward.1} parent=0 // pred_check
    _
  $region35: #{encoder_decoder_forward.1} parent=0 // pred_check_branch
    %4327 = sbr.rel (0) target = $region37
  $region36: #{encoder_decoder_forward.1} parent=0 // pred_region
    _
  $region37: #{encoder_decoder_forward.1} parent=0 // pred_fallthru
    _
  // Predicated region
  $region38: #{encoder_decoder_forward.1} parent=0 // pred_check
    _
  $region39: #{encoder_decoder_forward.1} parent=0 // pred_check_branch
    %4329 = sbr.rel (0) target = $region41
  $region40: #{encoder_decoder_forward.1} parent=0 // pred_region
    _
  $region41: #{encoder_decoder_forward.1} parent=0 // pred_fallthru
    _

</llo_original>
